<compile_context>
chip_gen: v6e
topology: v6e:2x2x1
jax: 0.10.0
libtpu: 0.0.40
codegen_flags: <defaults>
</compile_context>

<pallas_src>
import jax
import jax.numpy as jnp
from jax import lax
from jax.experimental import pallas as pl
from jax.experimental.pallas import tpu as pltpu

EPS = 1e-5


# ----------------------------------------------------------------------------------
# MaxUnpool2d(2, 2)
# ----------------------------------------------------------------------------------
def max_unpool2d_2x2(x, indices):
    """MaxUnpool2d(kernel=2, stride=2), scatter-free (nearest-upsample + compare).

    Assumes, as nn.MaxPool2d(2, 2, return_indices=True) guarantees, that each index
    points inside its own 2x2 output window.
    """
    # TODO(synk): MaxUnpool2d is a data-dependent scatter; it is implemented as a JAX
    # pre-pass here instead of inside the Pallas kernel (not cleanly expressible in the
    # rectangular-tile model).
    n, c, hs, ws = x.shape
    ho, wo = 2 * hs, 2 * ws
    up_x = jnp.repeat(jnp.repeat(x, 2, axis=2), 2, axis=3)
    up_i = jnp.repeat(jnp.repeat(indices, 2, axis=2), 2, axis=3)
    pos = (jnp.arange(ho, dtype=up_i.dtype)[:, None] * wo
           + jnp.arange(wo, dtype=up_i.dtype)[None, :])
    return jnp.where(up_i == pos[None, None], up_x, jnp.zeros_like(up_x))


def _bn_scale_shift(bn, eps=EPS):
    gamma, beta, mean, var = bn
    s = gamma / jnp.sqrt(var + eps)
    return s, beta - mean * s


# ----------------------------------------------------------------------------------
# Fused BasicBlock forward as a single pallas_call
# ----------------------------------------------------------------------------------
def _basic_block_pallas(x, params):
    """x: (N, C_in, H, W) f32 -> (N, C_out, H, W) f32 (BasicBlock.forward, eval-mode BN)."""
    n, c_in, h, w = x.shape
    hw = h * w
    c_out = params["w1"].shape[0]
    # Lane-aligned flat padding that covers all 9 conv taps (needs >= w + 1 per side).
    pad = ((w + 1 + 127) // 128) * 128
    hwp = hw + 2 * pad

    # ---- host-side folding of BatchNorm (inference / running stats) ----
    s1, _ = _bn_scale_shift(params["bn1"])
    s2, t2 = _bn_scale_shift(params["bn2"])
    st, tt = _bn_scale_shift(params["bnt"])

    # conv1 with bn1 folded: (C_out, C_in, 3, 3) -> (9, C_out, C_in)
    w1f = jnp.transpose(params["w1"] * s1[:, None, None, None], (2, 3, 0, 1))
    w1f = w1f.reshape(9, c_out, c_in)
    b1f = (s1 * (params["b1"] - params["bn1"][2]) + params["bn1"][1])[:, None]
    # conv2 raw (bn2 is applied after the residual add, inside the kernel)
    w2f = jnp.transpose(params["w2"], (2, 3, 0, 1)).reshape(9, c_out, c_out)
    b2f = params["b2"][:, None]
    # 1x1 transform (no bias) with its BN folded in
    wt_f = st[:, None] * params["wt"][:, :, 0, 0]
    bt_f = tt[:, None]
    s2v, t2v = s2[:, None], t2[:, None]
    a_pr = jnp.reshape(params["prelu"].astype(jnp.float32), (1,))

    x_flat = x.reshape(n, c_in, hw)  # free reshape, stays channel-major

    def kernel(x_ref, w1_ref, b1_ref, w2_ref, b2_ref, wt_ref, bt_ref,
               s2_ref, t2_ref, a_ref, o_ref, xpad_ref, h1pad_ref):
        a = a_ref[0]
        wcol = lax.broadcasted_iota(jnp.int32, (1, hw), 1) % w

        def prelu(v):
            return jnp.where(v >= 0, v, a * v)

        def contract(wk, xt):
            # wk: (co, k), xt: (k, hw). For tiny K use VPU FMAs (exact f32, no MXU
            # K-padding waste); fall back to the MXU for larger channel counts.
            k = xt.shape[0]
            if k <= 16:
                acc = None
                for i in range(k):
                    term = wk[:, i:i + 1] * xt[i:i + 1, :]
                    acc = term if acc is None else acc + term
                return acc
            return jnp.dot(wk, xt, preferred_element_type=jnp.float32)

        def conv3x3(pad_ref, wk_ref, bk_ref):
            acc = None
            for ky in range(3):
                for kx in range(3):
                    dy, dx = ky - 1, kx - 1
                    start = pad + dy * w + dx
                    xt = pad_ref[:, start:start + hw]
                    if dx == -1:      # zero out columns that wrapped across a row
                        xt = jnp.where(wcol >= 1, xt, 0.0)
                    elif dx == 1:
                        xt = jnp.where(wcol <= w - 2, xt, 0.0)
                    c = contract(wk_ref[ky * 3 + kx], xt)
                    acc = c if acc is None else acc + c
            return acc + bk_ref[...]

        xin = x_ref[0]                                   # (C_in, HW)
        xpad_ref[...] = jnp.zeros_like(xpad_ref)
        xpad_ref[:, pad:pad + hw] = xin

        h1 = prelu(conv3x3(xpad_ref, w1_ref, b1_ref))    # prelu(bn1(conv1(x)))

        h1pad_ref[...] = jnp.zeros_like(h1pad_ref)
        h1pad_ref[:, pad:pad + hw] = h1
        h2 = conv3x3(h1pad_ref, w2_ref, b2_ref)          # conv2(.)

        res = contract(wt_ref[...], xin) + bt_ref[...]   # transform(x) = bn_t(conv1x1(x))
        z = s2_ref[...] * (h2 + res) + t2_ref[...]       # bn2(conv2 + transform)
        o_ref[0] = prelu(z).astype(o_ref.dtype)

    flops = 2 * n * hw * (9 * c_in * c_out + 9 * c_out * c_out + c_in * c_out) \
        + 12 * n * c_out * hw
    bytes_accessed = 4 * (n * c_in * hw + n * c_out * hw
                          + 9 * c_out * (c_in + c_out) + c_out * c_in + 8 * c_out + 1)

    out_flat = pl.pallas_call(
        kernel,
        out_shape=jax.ShapeDtypeStruct((n, c_out, hw), x.dtype),
        grid_spec=pltpu.PrefetchScalarGridSpec(
            num_scalar_prefetch=0,
            grid=(n,),
            in_specs=[
                pl.BlockSpec((1, c_in, hw), lambda i: (i, 0, 0)),
                pl.BlockSpec((9, c_out, c_in), lambda i: (0, 0, 0)),
                pl.BlockSpec((c_out, 1), lambda i: (0, 0)),
                pl.BlockSpec((9, c_out, c_out), lambda i: (0, 0, 0)),
                pl.BlockSpec((c_out, 1), lambda i: (0, 0)),
                pl.BlockSpec((c_out, c_in), lambda i: (0, 0)),
                pl.BlockSpec((c_out, 1), lambda i: (0, 0)),
                pl.BlockSpec((c_out, 1), lambda i: (0, 0)),
                pl.BlockSpec((c_out, 1), lambda i: (0, 0)),
                pl.BlockSpec(memory_space=pltpu.MemorySpace.SMEM),  # PReLU scalar
            ],
            out_specs=pl.BlockSpec((1, c_out, hw), lambda i: (i, 0, 0)),
            scratch_shapes=[
                pltpu.VMEM((c_in, hwp), jnp.float32),   # zero-padded flat input
                pltpu.VMEM((c_out, hwp), jnp.float32),  # zero-padded flat conv1 output
            ],
        ),
        compiler_params=pltpu.CompilerParams(
            dimension_semantics=("parallel",),
        ),
        cost_estimate=pl.CostEstimate(
            flops=int(flops), transcendentals=0, bytes_accessed=int(bytes_accessed)),
    )(x_flat, w1f, b1f, w2f, b2f, wt_f, bt_f, s2v, t2v, a_pr)

    return out_flat.reshape(n, c_out, h, w)


@jax.jit
def decoder_block_forward(x_in, out_block, indices, params):
    """DecoderBlock.forward: unpool(input, indices) -> concat(out_block, .) -> BasicBlock."""
    up = max_unpool2d_2x2(x_in, indices)
    xcat = jnp.concatenate([out_block, up], axis=1)   # channel-major, no transpose
    return _basic_block_pallas(xcat, params)


# ----------------------------------------------------------------------------------
# Pure-JAX reference (independent formulation) for the self-check
# ----------------------------------------------------------------------------------
def _ref_max_unpool2d(x, indices):
    n, c, hs, ws = x.shape
    ho, wo = 2 * hs, 2 * ws
    out = jnp.zeros((n, c, ho * wo), x.dtype)
    out = out.at[jnp.arange(n)[:, None, None],
                 jnp.arange(c)[None, :, None],
                 indices.reshape(n, c, hs * ws)].set(x.reshape(n, c, hs * ws))
    return out.reshape(n, c, ho, wo)


def reference_forward(x_in, out_block, indices, params, eps=EPS):
    xcat = jnp.concatenate([out_block, _ref_max_unpool2d(x_in, indices)], axis=1)
    a = params["prelu"]

    def conv(z, wgt, padding):
        return lax.conv_general_dilated(
            z, wgt, (1, 1), padding,
            dimension_numbers=("NCHW", "OIHW", "NCHW"),
            precision=lax.Precision.HIGHEST)

    def bn(z, p):
        g, be, m, v = p
        inv = 1.0 / jnp.sqrt(v + eps)
        return (g * inv)[None, :, None, None] * (z - m[None, :, None, None]) \
            + be[None, :, None, None]

    def prelu(z):
        return jnp.where(z >= 0, z, a * z)

    out = prelu(bn(conv(xcat, params["w1"], ((1, 1), (1, 1)))
                   + params["b1"][None, :, None, None], params["bn1"]))
    out = conv(out, params["w2"], ((1, 1), (1, 1))) + params["b2"][None, :, None, None]
    res = bn(conv(xcat, params["wt"], ((0, 0), (0, 0))), params["bnt"])
    return prelu(bn(out + res, params["bn2"]))


# ----------------------------------------------------------------------------------
if __name__ == "__main__":
    N = 2
    C_UP, C_SKIP = 4, 4            # channels of `input` (pre-unpool) and of `out_block`
    C_IN = C_UP + C_SKIP           # concat channels -> BasicBlock in_ch
    C_OUT = 4                      # BasicBlock out_ch (!= in_ch -> transform branch active)
    HS = WS = 8                    # spatial size of `input` / `indices`
    H, W = 2 * HS, 2 * WS          # 16x16 after MaxUnpool2d(2, 2)

    key = jax.random.PRNGKey(0)
    ks = jax.random.split(key, 20)

    x_in = jax.random.normal(ks[0], (N, C_UP, HS, WS), jnp.float32)
    out_block = jax.random.normal(ks[1], (N, C_SKIP, H, W), jnp.float32)
    # Valid MaxPool2d(2,2) indices: each pooled cell picks one of its 2x2 output positions.
    ab = jax.random.randint(ks[2], (2, N, C_UP, HS, WS), 0, 2)
    row = 2 * jnp.arange(HS, dtype=jnp.int32)[:, None] + ab[0]
    col = 2 * jnp.arange(WS, dtype=jnp.int32)[None, :] + ab[1]
    indices = (row * (2 * WS) + col).astype(jnp.int32)

    def nrm(k, shape, scale=0.1):
        return scale * jax.random.normal(k, shape, jnp.float32)

    params = dict(
        w1=nrm(ks[3], (C_OUT, C_IN, 3, 3)),
        b1=nrm(ks[4], (C_OUT,)),
        w2=nrm(ks[5], (C_OUT, C_OUT, 3, 3)),
        b2=nrm(ks[6], (C_OUT,)),
        wt=nrm(ks[7], (C_OUT, C_IN, 1, 1)),
        bn1=(1.0 + nrm(ks[8], (C_OUT,)), nrm(ks[9], (C_OUT,)),
             nrm(ks[10], (C_OUT,)), 0.5 + jnp.abs(nrm(ks[11], (C_OUT,)))),
        bn2=(1.0 + nrm(ks[12], (C_OUT,)), nrm(ks[13], (C_OUT,)),
             nrm(ks[14], (C_OUT,)), 0.5 + jnp.abs(nrm(ks[15], (C_OUT,)))),
        bnt=(1.0 + nrm(ks[16], (C_OUT,)), nrm(ks[17], (C_OUT,)),
             nrm(ks[18], (C_OUT,)), 0.5 + jnp.abs(nrm(ks[19], (C_OUT,)))),
        prelu=jnp.float32(0.25),   # nn.PReLU() default shared scalar
    )

    out = decoder_block_forward(x_in, out_block, indices, params)
    out = jax.block_until_ready(out)

    ref = reference_forward(x_in, out_block, indices, params)
    assert out.shape == (N, C_OUT, H, W), out.shape
    assert jnp.allclose(out, ref, atol=1e-3, rtol=1e-3), \
        float(jnp.max(jnp.abs(out - ref)))

    print("KERNEL_OK")
</pallas_src>

<mosaic_0001>
module attributes {stable_mosaic.version = 11 : i64} {
  func.func @kernel(%arg0: i32, %arg1: memref<1x8x256xf32, #tpu.memory_space<vmem>>, %arg2: memref<9x4x8xf32, #tpu.memory_space<vmem>>, %arg3: memref<4x1xf32, #tpu.memory_space<vmem>>, %arg4: memref<9x4x4xf32, #tpu.memory_space<vmem>>, %arg5: memref<4x1xf32, #tpu.memory_space<vmem>>, %arg6: memref<4x8xf32, #tpu.memory_space<vmem>>, %arg7: memref<4x1xf32, #tpu.memory_space<vmem>>, %arg8: memref<4x1xf32, #tpu.memory_space<vmem>>, %arg9: memref<4x1xf32, #tpu.memory_space<vmem>>, %arg10: memref<1xf32, #tpu.memory_space<smem>>, %arg11: memref<1x4x256xf32, #tpu.memory_space<vmem>>, %arg12: memref<8x512xf32, #tpu.memory_space<vmem>>, %arg13: memref<4x512xf32, #tpu.memory_space<vmem>>) attributes {dimension_semantics = [#tpu.dimension_semantics<parallel>], iteration_bounds = array<i64: 2>, scalar_prefetch = 0 : i64, scratch_operands = 2 : i64, tpu.core_type = #tpu.core_type<tc>, window_params = [{transform_indices = @transform_0, window_bounds = array<i64: 1, 8, 256>}, {pipeline_mode = #tpu.pipeline_mode<synchronous>, transform_indices = @transform_1, window_bounds = array<i64: 9, 4, 8>}, {pipeline_mode = #tpu.pipeline_mode<synchronous>, transform_indices = @transform_2, window_bounds = array<i64: 4, 1>}, {pipeline_mode = #tpu.pipeline_mode<synchronous>, transform_indices = @transform_3, window_bounds = array<i64: 9, 4, 4>}, {pipeline_mode = #tpu.pipeline_mode<synchronous>, transform_indices = @transform_4, window_bounds = array<i64: 4, 1>}, {pipeline_mode = #tpu.pipeline_mode<synchronous>, transform_indices = @transform_5, window_bounds = array<i64: 4, 8>}, {pipeline_mode = #tpu.pipeline_mode<synchronous>, transform_indices = @transform_6, window_bounds = array<i64: 4, 1>}, {pipeline_mode = #tpu.pipeline_mode<synchronous>, transform_indices = @transform_7, window_bounds = array<i64: 4, 1>}, {pipeline_mode = #tpu.pipeline_mode<synchronous>, transform_indices = @transform_8, window_bounds = array<i64: 4, 1>}, {transform_indices = @transform_9, window_bounds = array<i64: 1>}, {transform_indices = @transform_10, window_bounds = array<i64: 1, 4, 256>}]} {
    %c0 = arith.constant 0 : index
    %0 = memref.load %arg10[%c0] : memref<1xf32, #tpu.memory_space<smem>>
    %1 = tpu.iota {dimensions = array<i32: 1>} : vector<1x256xi32>
    %c16_i32 = arith.constant 16 : i32
    %c0_i32 = arith.constant 0 : i32
    %2 = arith.cmpi eq, %c16_i32, %c0_i32 : i32
    %c1_i32 = arith.constant 1 : i32
    %3 = arith.select %2, %c1_i32, %c16_i32 : i32
    %4 = vector.broadcast %3 : i32 to vector<1x256xi32>
    %5 = arith.remsi %1, %4 : vector<1x256xi32>
    %c0_i32_0 = arith.constant 0 : i32
    %6 = vector.broadcast %c0_i32_0 : i32 to vector<1x256xi32>
    %7 = arith.cmpi ne, %5, %6 : vector<1x256xi32>
    %c0_i32_1 = arith.constant 0 : i32
    %8 = vector.broadcast %c0_i32_1 : i32 to vector<1x256xi32>
    %9 = arith.cmpi slt, %5, %8 : vector<1x256xi32>
    %c0_i32_2 = arith.constant 0 : i32
    %10 = arith.cmpi slt, %3, %c0_i32_2 : i32
    %11 = vector.broadcast %10 : i1 to vector<1x256xi1>
    %12 = vector.broadcast %11 : vector<1x256xi1> to vector<1x256xi1>
    %13 = arith.xori %9, %12 : vector<1x256xi1>
    %14 = arith.andi %13, %7 : vector<1x256xi1>
    %15 = vector.broadcast %3 : i32 to vector<1x256xi32>
    %16 = arith.addi %5, %15 : vector<1x256xi32>
    %17 = arith.select %14, %16, %5 : vector<1x256xi1>, vector<1x256xi32>
    %c0_3 = arith.constant 0 : index
    %c0_4 = arith.constant 0 : index
    %c0_5 = arith.constant 0 : index
    %18 = vector.load %arg1[%c0_3, %c0_4, %c0_5] : memref<1x8x256xf32, #tpu.memory_space<vmem>>, vector<1x8x256xf32>
    %19 = vector.shape_cast %18 : vector<1x8x256xf32> to vector<8x256xf32>
    %cst = arith.constant 0.000000e+00 : f32
    %20 = vector.broadcast %cst : f32 to vector<8x512xf32>
    %c0_6 = arith.constant 0 : index
    %c0_7 = arith.constant 0 : index
    %21 = vector.load %arg12[%c0_6, %c0_7] : memref<8x512xf32, #tpu.memory_space<vmem>>, vector<8x512xf32>
    tpu.vector_store %arg12[%c0_6, %c0_7], %20 {strides = array<i32>} : memref<8x512xf32, #tpu.memory_space<vmem>>, vector<8x512xf32>,
    %c0_8 = arith.constant 0 : index
    %c128 = arith.constant 128 : index
    %22 = vector.load %arg12[%c0_8, %c128] : memref<8x512xf32, #tpu.memory_space<vmem>>, vector<8x256xf32>
    tpu.vector_store %arg12[%c0_8, %c128], %19 {strides = array<i32>} : memref<8x512xf32, #tpu.memory_space<vmem>>, vector<8x256xf32>,
    %c0_9 = arith.constant 0 : index
    %c111 = arith.constant 111 : index
    %23 = vector.load %arg12[%c0_9, %c111] : memref<8x512xf32, #tpu.memory_space<vmem>>, vector<8x256xf32>
    %c1_i32_10 = arith.constant 1 : i32
    %24 = vector.broadcast %c1_i32_10 : i32 to vector<1x256xi32>
    %25 = arith.cmpi sge, %17, %24 : vector<1x256xi32>
    %cst_11 = arith.constant 0.000000e+00 : f32
    %26 = vector.shape_cast %25 : vector<1x256xi1> to vector<1x256xi1>
    %27 = vector.broadcast %26 : vector<1x256xi1> to vector<8x256xi1>
    %28 = vector.broadcast %cst_11 : f32 to vector<8x256xf32>
    %29 = arith.select %27, %23, %28 : vector<8x256xi1>, vector<8x256xf32>
    %c0_12 = arith.constant 0 : index
    %c0_13 = arith.constant 0 : index
    %c0_14 = arith.constant 0 : index
    %30 = vector.load %arg2[%c0_12, %c0_13, %c0_14] : memref<9x4x8xf32, #tpu.memory_space<vmem>>, vector<1x4x8xf32>
    %31 = vector.shape_cast %30 : vector<1x4x8xf32> to vector<4x8xf32>
    %32 = vector.extract_strided_slice %31 {offsets = [0, 0], sizes = [4, 1], strides = [1, 1]} : vector<4x8xf32> to vector<4x1xf32>
    %33 = vector.extract_strided_slice %29 {offsets = [0, 0], sizes = [1, 256], strides = [1, 1]} : vector<8x256xf32> to vector<1x256xf32>
    %34 = vector.broadcast %32 : vector<4x1xf32> to vector<4x256xf32>
    %35 = vector.broadcast %33 : vector<1x256xf32> to vector<4x256xf32>
    %36 = arith.mulf %34, %35 : vector<4x256xf32>
    %37 = vector.extract_strided_slice %31 {offsets = [0, 1], sizes = [4, 1], strides = [1, 1]} : vector<4x8xf32> to vector<4x1xf32>
    %38 = vector.extract_strided_slice %29 {offsets = [1, 0], sizes = [1, 256], strides = [1, 1]} : vector<8x256xf32> to vector<1x256xf32>
    %39 = vector.broadcast %37 : vector<4x1xf32> to vector<4x256xf32>
    %40 = vector.broadcast %38 : vector<1x256xf32> to vector<4x256xf32>
    %41 = arith.mulf %39, %40 : vector<4x256xf32>
    %42 = arith.addf %36, %41 : vector<4x256xf32>
    %43 = vector.extract_strided_slice %31 {offsets = [0, 2], sizes = [4, 1], strides = [1, 1]} : vector<4x8xf32> to vector<4x1xf32>
    %44 = vector.extract_strided_slice %29 {offsets = [2, 0], sizes = [1, 256], strides = [1, 1]} : vector<8x256xf32> to vector<1x256xf32>
    %45 = vector.broadcast %43 : vector<4x1xf32> to vector<4x256xf32>
    %46 = vector.broadcast %44 : vector<1x256xf32> to vector<4x256xf32>
    %47 = arith.mulf %45, %46 : vector<4x256xf32>
    %48 = arith.addf %42, %47 : vector<4x256xf32>
    %49 = vector.extract_strided_slice %31 {offsets = [0, 3], sizes = [4, 1], strides = [1, 1]} : vector<4x8xf32> to vector<4x1xf32>
    %50 = vector.extract_strided_slice %29 {offsets = [3, 0], sizes = [1, 256], strides = [1, 1]} : vector<8x256xf32> to vector<1x256xf32>
    %51 = vector.broadcast %49 : vector<4x1xf32> to vector<4x256xf32>
    %52 = vector.broadcast %50 : vector<1x256xf32> to vector<4x256xf32>
    %53 = arith.mulf %51, %52 : vector<4x256xf32>
    %54 = arith.addf %48, %53 : vector<4x256xf32>
    %55 = vector.extract_strided_slice %31 {offsets = [0, 4], sizes = [4, 1], strides = [1, 1]} : vector<4x8xf32> to vector<4x1xf32>
    %56 = vector.extract_strided_slice %29 {offsets = [4, 0], sizes = [1, 256], strides = [1, 1]} : vector<8x256xf32> to vector<1x256xf32>
    %57 = vector.broadcast %55 : vector<4x1xf32> to vector<4x256xf32>
    %58 = vector.broadcast %56 : vector<1x256xf32> to vector<4x256xf32>
    %59 = arith.mulf %57, %58 : vector<4x256xf32>
    %60 = arith.addf %54, %59 : vector<4x256xf32>
    %61 = vector.extract_strided_slice %31 {offsets = [0, 5], sizes = [4, 1], strides = [1, 1]} : vector<4x8xf32> to vector<4x1xf32>
    %62 = vector.extract_strided_slice %29 {offsets = [5, 0], sizes = [1, 256], strides = [1, 1]} : vector<8x256xf32> to vector<1x256xf32>
    %63 = vector.broadcast %61 : vector<4x1xf32> to vector<4x256xf32>
    %64 = vector.broadcast %62 : vector<1x256xf32> to vector<4x256xf32>
    %65 = arith.mulf %63, %64 : vector<4x256xf32>
    %66 = arith.addf %60, %65 : vector<4x256xf32>
    %67 = vector.extract_strided_slice %31 {offsets = [0, 6], sizes = [4, 1], strides = [1, 1]} : vector<4x8xf32> to vector<4x1xf32>
    %68 = vector.extract_strided_slice %29 {offsets = [6, 0], sizes = [1, 256], strides = [1, 1]} : vector<8x256xf32> to vector<1x256xf32>
    %69 = vector.broadcast %67 : vector<4x1xf32> to vector<4x256xf32>
    %70 = vector.broadcast %68 : vector<1x256xf32> to vector<4x256xf32>
    %71 = arith.mulf %69, %70 : vector<4x256xf32>
    %72 = arith.addf %66, %71 : vector<4x256xf32>
    %73 = vector.extract_strided_slice %31 {offsets = [0, 7], sizes = [4, 1], strides = [1, 1]} : vector<4x8xf32> to vector<4x1xf32>
    %74 = vector.extract_strided_slice %29 {offsets = [7, 0], sizes = [1, 256], strides = [1, 1]} : vector<8x256xf32> to vector<1x256xf32>
    %75 = vector.broadcast %73 : vector<4x1xf32> to vector<4x256xf32>
    %76 = vector.broadcast %74 : vector<1x256xf32> to vector<4x256xf32>
    %77 = arith.mulf %75, %76 : vector<4x256xf32>
    %78 = arith.addf %72, %77 : vector<4x256xf32>
    %c0_15 = arith.constant 0 : index
    %c112 = arith.constant 112 : index
    %79 = vector.load %arg12[%c0_15, %c112] : memref<8x512xf32, #tpu.memory_space<vmem>>, vector<8x256xf32>
    %c1 = arith.constant 1 : index
    %c0_16 = arith.constant 0 : index
    %c0_17 = arith.constant 0 : index
    %80 = vector.load %arg2[%c1, %c0_16, %c0_17] : memref<9x4x8xf32, #tpu.memory_space<vmem>>, vector<1x4x8xf32>
    %81 = vector.shape_cast %80 : vector<1x4x8xf32> to vector<4x8xf32>
    %82 = vector.extract_strided_slice %81 {offsets = [0, 0], sizes = [4, 1], strides = [1, 1]} : vector<4x8xf32> to vector<4x1xf32>
    %83 = vector.extract_strided_slice %79 {offsets = [0, 0], sizes = [1, 256], strides = [1, 1]} : vector<8x256xf32> to vector<1x256xf32>
    %84 = vector.broadcast %82 : vector<4x1xf32> to vector<4x256xf32>
    %85 = vector.broadcast %83 : vector<1x256xf32> to vector<4x256xf32>
    %86 = arith.mulf %84, %85 : vector<4x256xf32>
    %87 = vector.extract_strided_slice %81 {offsets = [0, 1], sizes = [4, 1], strides = [1, 1]} : vector<4x8xf32> to vector<4x1xf32>
    %88 = vector.extract_strided_slice %79 {offsets = [1, 0], sizes = [1, 256], strides = [1, 1]} : vector<8x256xf32> to vector<1x256xf32>
    %89 = vector.broadcast %87 : vector<4x1xf32> to vector<4x256xf32>
    %90 = vector.broadcast %88 : vector<1x256xf32> to vector<4x256xf32>
    %91 = arith.mulf %89, %90 : vector<4x256xf32>
    %92 = arith.addf %86, %91 : vector<4x256xf32>
    %93 = vector.extract_strided_slice %81 {offsets = [0, 2], sizes = [4, 1], strides = [1, 1]} : vector<4x8xf32> to vector<4x1xf32>
    %94 = vector.extract_strided_slice %79 {offsets = [2, 0], sizes = [1, 256], strides = [1, 1]} : vector<8x256xf32> to vector<1x256xf32>
    %95 = vector.broadcast %93 : vector<4x1xf32> to vector<4x256xf32>
    %96 = vector.broadcast %94 : vector<1x256xf32> to vector<4x256xf32>
    %97 = arith.mulf %95, %96 : vector<4x256xf32>
    %98 = arith.addf %92, %97 : vector<4x256xf32>
    %99 = vector.extract_strided_slice %81 {offsets = [0, 3], sizes = [4, 1], strides = [1, 1]} : vector<4x8xf32> to vector<4x1xf32>
    %100 = vector.extract_strided_slice %79 {offsets = [3, 0], sizes = [1, 256], strides = [1, 1]} : vector<8x256xf32> to vector<1x256xf32>
    %101 = vector.broadcast %99 : vector<4x1xf32> to vector<4x256xf32>
    %102 = vector.broadcast %100 : vector<1x256xf32> to vector<4x256xf32>
    %103 = arith.mulf %101, %102 : vector<4x256xf32>
    %104 = arith.addf %98, %103 : vector<4x256xf32>
    %105 = vector.extract_strided_slice %81 {offsets = [0, 4], sizes = [4, 1], strides = [1, 1]} : vector<4x8xf32> to vector<4x1xf32>
    %106 = vector.extract_strided_slice %79 {offsets = [4, 0], sizes = [1, 256], strides = [1, 1]} : vector<8x256xf32> to vector<1x256xf32>
    %107 = vector.broadcast %105 : vector<4x1xf32> to vector<4x256xf32>
    %108 = vector.broadcast %106 : vector<1x256xf32> to vector<4x256xf32>
    %109 = arith.mulf %107, %108 : vector<4x256xf32>
    %110 = arith.addf %104, %109 : vector<4x256xf32>
    %111 = vector.extract_strided_slice %81 {offsets = [0, 5], sizes = [4, 1], strides = [1, 1]} : vector<4x8xf32> to vector<4x1xf32>
    %112 = vector.extract_strided_slice %79 {offsets = [5, 0], sizes = [1, 256], strides = [1, 1]} : vector<8x256xf32> to vector<1x256xf32>
    %113 = vector.broadcast %111 : vector<4x1xf32> to vector<4x256xf32>
    %114 = vector.broadcast %112 : vector<1x256xf32> to vector<4x256xf32>
    %115 = arith.mulf %113, %114 : vector<4x256xf32>
    %116 = arith.addf %110, %115 : vector<4x256xf32>
    %117 = vector.extract_strided_slice %81 {offsets = [0, 6], sizes = [4, 1], strides = [1, 1]} : vector<4x8xf32> to vector<4x1xf32>
    %118 = vector.extract_strided_slice %79 {offsets = [6, 0], sizes = [1, 256], strides = [1, 1]} : vector<8x256xf32> to vector<1x256xf32>
    %119 = vector.broadcast %117 : vector<4x1xf32> to vector<4x256xf32>
    %120 = vector.broadcast %118 : vector<1x256xf32> to vector<4x256xf32>
    %121 = arith.mulf %119, %120 : vector<4x256xf32>
    %122 = arith.addf %116, %121 : vector<4x256xf32>
    %123 = vector.extract_strided_slice %81 {offsets = [0, 7], sizes = [4, 1], strides = [1, 1]} : vector<4x8xf32> to vector<4x1xf32>
    %124 = vector.extract_strided_slice %79 {offsets = [7, 0], sizes = [1, 256], strides = [1, 1]} : vector<8x256xf32> to vector<1x256xf32>
    %125 = vector.broadcast %123 : vector<4x1xf32> to vector<4x256xf32>
    %126 = vector.broadcast %124 : vector<1x256xf32> to vector<4x256xf32>
    %127 = arith.mulf %125, %126 : vector<4x256xf32>
    %128 = arith.addf %122, %127 : vector<4x256xf32>
    %129 = arith.addf %78, %128 : vector<4x256xf32>
    %c0_18 = arith.constant 0 : index
    %c113 = arith.constant 113 : index
    %130 = vector.load %arg12[%c0_18, %c113] : memref<8x512xf32, #tpu.memory_space<vmem>>, vector<8x256xf32>
    %c14_i32 = arith.constant 14 : i32
    %131 = vector.broadcast %c14_i32 : i32 to vector<1x256xi32>
    %132 = arith.cmpi sle, %17, %131 : vector<1x256xi32>
    %cst_19 = arith.constant 0.000000e+00 : f32
    %133 = vector.shape_cast %132 : vector<1x256xi1> to vector<1x256xi1>
    %134 = vector.broadcast %133 : vector<1x256xi1> to vector<8x256xi1>
    %135 = vector.broadcast %cst_19 : f32 to vector<8x256xf32>
    %136 = arith.select %134, %130, %135 : vector<8x256xi1>, vector<8x256xf32>
    %c2 = arith.constant 2 : index
    %c0_20 = arith.constant 0 : index
    %c0_21 = arith.constant 0 : index
    %137 = vector.load %arg2[%c2, %c0_20, %c0_21] : memref<9x4x8xf32, #tpu.memory_space<vmem>>, vector<1x4x8xf32>
    %138 = vector.shape_cast %137 : vector<1x4x8xf32> to vector<4x8xf32>
    %139 = vector.extract_strided_slice %138 {offsets = [0, 0], sizes = [4, 1], strides = [1, 1]} : vector<4x8xf32> to vector<4x1xf32>
    %140 = vector.extract_strided_slice %136 {offsets = [0, 0], sizes = [1, 256], strides = [1, 1]} : vector<8x256xf32> to vector<1x256xf32>
    %141 = vector.broadcast %139 : vector<4x1xf32> to vector<4x256xf32>
    %142 = vector.broadcast %140 : vector<1x256xf32> to vector<4x256xf32>
    %143 = arith.mulf %141, %142 : vector<4x256xf32>
    %144 = vector.extract_strided_slice %138 {offsets = [0, 1], sizes = [4, 1], strides = [1, 1]} : vector<4x8xf32> to vector<4x1xf32>
    %145 = vector.extract_strided_slice %136 {offsets = [1, 0], sizes = [1, 256], strides = [1, 1]} : vector<8x256xf32> to vector<1x256xf32>
    %146 = vector.broadcast %144 : vector<4x1xf32> to vector<4x256xf32>
    %147 = vector.broadcast %145 : vector<1x256xf32> to vector<4x256xf32>
    %148 = arith.mulf %146, %147 : vector<4x256xf32>
    %149 = arith.addf %143, %148 : vector<4x256xf32>
    %150 = vector.extract_strided_slice %138 {offsets = [0, 2], sizes = [4, 1], strides = [1, 1]} : vector<4x8xf32> to vector<4x1xf32>
    %151 = vector.extract_strided_slice %136 {offsets = [2, 0], sizes = [1, 256], strides = [1, 1]} : vector<8x256xf32> to vector<1x256xf32>
    %152 = vector.broadcast %150 : vector<4x1xf32> to vector<4x256xf32>
    %153 = vector.broadcast %151 : vector<1x256xf32> to vector<4x256xf32>
    %154 = arith.mulf %152, %153 : vector<4x256xf32>
    %155 = arith.addf %149, %154 : vector<4x256xf32>
    %156 = vector.extract_strided_slice %138 {offsets = [0, 3], sizes = [4, 1], strides = [1, 1]} : vector<4x8xf32> to vector<4x1xf32>
    %157 = vector.extract_strided_slice %136 {offsets = [3, 0], sizes = [1, 256], strides = [1, 1]} : vector<8x256xf32> to vector<1x256xf32>
    %158 = vector.broadcast %156 : vector<4x1xf32> to vector<4x256xf32>
    %159 = vector.broadcast %157 : vector<1x256xf32> to vector<4x256xf32>
    %160 = arith.mulf %158, %159 : vector<4x256xf32>
    %161 = arith.addf %155, %160 : vector<4x256xf32>
    %162 = vector.extract_strided_slice %138 {offsets = [0, 4], sizes = [4, 1], strides = [1, 1]} : vector<4x8xf32> to vector<4x1xf32>
    %163 = vector.extract_strided_slice %136 {offsets = [4, 0], sizes = [1, 256], strides = [1, 1]} : vector<8x256xf32> to vector<1x256xf32>
    %164 = vector.broadcast %162 : vector<4x1xf32> to vector<4x256xf32>
    %165 = vector.broadcast %163 : vector<1x256xf32> to vector<4x256xf32>
    %166 = arith.mulf %164, %165 : vector<4x256xf32>
    %167 = arith.addf %161, %166 : vector<4x256xf32>
    %168 = vector.extract_strided_slice %138 {offsets = [0, 5], sizes = [4, 1], strides = [1, 1]} : vector<4x8xf32> to vector<4x1xf32>
    %169 = vector.extract_strided_slice %136 {offsets = [5, 0], sizes = [1, 256], strides = [1, 1]} : vector<8x256xf32> to vector<1x256xf32>
    %170 = vector.broadcast %168 : vector<4x1xf32> to vector<4x256xf32>
    %171 = vector.broadcast %169 : vector<1x256xf32> to vector<4x256xf32>
    %172 = arith.mulf %170, %171 : vector<4x256xf32>
    %173 = arith.addf %167, %172 : vector<4x256xf32>
    %174 = vector.extract_strided_slice %138 {offsets = [0, 6], sizes = [4, 1], strides = [1, 1]} : vector<4x8xf32> to vector<4x1xf32>
    %175 = vector.extract_strided_slice %136 {offsets = [6, 0], sizes = [1, 256], strides = [1, 1]} : vector<8x256xf32> to vector<1x256xf32>
    %176 = vector.broadcast %174 : vector<4x1xf32> to vector<4x256xf32>
    %177 = vector.broadcast %175 : vector<1x256xf32> to vector<4x256xf32>
    %178 = arith.mulf %176, %177 : vector<4x256xf32>
    %179 = arith.addf %173, %178 : vector<4x256xf32>
    %180 = vector.extract_strided_slice %138 {offsets = [0, 7], sizes = [4, 1], strides = [1, 1]} : vector<4x8xf32> to vector<4x1xf32>
    %181 = vector.extract_strided_slice %136 {offsets = [7, 0], sizes = [1, 256], strides = [1, 1]} : vector<8x256xf32> to vector<1x256xf32>
    %182 = vector.broadcast %180 : vector<4x1xf32> to vector<4x256xf32>
    %183 = vector.broadcast %181 : vector<1x256xf32> to vector<4x256xf32>
    %184 = arith.mulf %182, %183 : vector<4x256xf32>
    %185 = arith.addf %179, %184 : vector<4x256xf32>
    %186 = arith.addf %129, %185 : vector<4x256xf32>
    %c0_22 = arith.constant 0 : index
    %c127 = arith.constant 127 : index
    %187 = vector.load %arg12[%c0_22, %c127] : memref<8x512xf32, #tpu.memory_space<vmem>>, vector<8x256xf32>
    %c1_i32_23 = arith.constant 1 : i32
    %188 = vector.broadcast %c1_i32_23 : i32 to vector<1x256xi32>
    %189 = arith.cmpi sge, %17, %188 : vector<1x256xi32>
    %cst_24 = arith.constant 0.000000e+00 : f32
    %190 = vector.shape_cast %189 : vector<1x256xi1> to vector<1x256xi1>
    %191 = vector.broadcast %190 : vector<1x256xi1> to vector<8x256xi1>
    %192 = vector.broadcast %cst_24 : f32 to vector<8x256xf32>
    %193 = arith.select %191, %187, %192 : vector<8x256xi1>, vector<8x256xf32>
    %c3 = arith.constant 3 : index
    %c0_25 = arith.constant 0 : index
    %c0_26 = arith.constant 0 : index
    %194 = vector.load %arg2[%c3, %c0_25, %c0_26] : memref<9x4x8xf32, #tpu.memory_space<vmem>>, vector<1x4x8xf32>
    %195 = vector.shape_cast %194 : vector<1x4x8xf32> to vector<4x8xf32>
    %196 = vector.extract_strided_slice %195 {offsets = [0, 0], sizes = [4, 1], strides = [1, 1]} : vector<4x8xf32> to vector<4x1xf32>
    %197 = vector.extract_strided_slice %193 {offsets = [0, 0], sizes = [1, 256], strides = [1, 1]} : vector<8x256xf32> to vector<1x256xf32>
    %198 = vector.broadcast %196 : vector<4x1xf32> to vector<4x256xf32>
    %199 = vector.broadcast %197 : vector<1x256xf32> to vector<4x256xf32>
    %200 = arith.mulf %198, %199 : vector<4x256xf32>
    %201 = vector.extract_strided_slice %195 {offsets = [0, 1], sizes = [4, 1], strides = [1, 1]} : vector<4x8xf32> to vector<4x1xf32>
    %202 = vector.extract_strided_slice %193 {offsets = [1, 0], sizes = [1, 256], strides = [1, 1]} : vector<8x256xf32> to vector<1x256xf32>
    %203 = vector.broadcast %201 : vector<4x1xf32> to vector<4x256xf32>
    %204 = vector.broadcast %202 : vector<1x256xf32> to vector<4x256xf32>
    %205 = arith.mulf %203, %204 : vector<4x256xf32>
    %206 = arith.addf %200, %205 : vector<4x256xf32>
    %207 = vector.extract_strided_slice %195 {offsets = [0, 2], sizes = [4, 1], strides = [1, 1]} : vector<4x8xf32> to vector<4x1xf32>
    %208 = vector.extract_strided_slice %193 {offsets = [2, 0], sizes = [1, 256], strides = [1, 1]} : vector<8x256xf32> to vector<1x256xf32>
    %209 = vector.broadcast %207 : vector<4x1xf32> to vector<4x256xf32>
    %210 = vector.broadcast %208 : vector<1x256xf32> to vector<4x256xf32>
    %211 = arith.mulf %209, %210 : vector<4x256xf32>
    %212 = arith.addf %206, %211 : vector<4x256xf32>
    %213 = vector.extract_strided_slice %195 {offsets = [0, 3], sizes = [4, 1], strides = [1, 1]} : vector<4x8xf32> to vector<4x1xf32>
    %214 = vector.extract_strided_slice %193 {offsets = [3, 0], sizes = [1, 256], strides = [1, 1]} : vector<8x256xf32> to vector<1x256xf32>
    %215 = vector.broadcast %213 : vector<4x1xf32> to vector<4x256xf32>
    %216 = vector.broadcast %214 : vector<1x256xf32> to vector<4x256xf32>
    %217 = arith.mulf %215, %216 : vector<4x256xf32>
    %218 = arith.addf %212, %217 : vector<4x256xf32>
    %219 = vector.extract_strided_slice %195 {offsets = [0, 4], sizes = [4, 1], strides = [1, 1]} : vector<4x8xf32> to vector<4x1xf32>
    %220 = vector.extract_strided_slice %193 {offsets = [4, 0], sizes = [1, 256], strides = [1, 1]} : vector<8x256xf32> to vector<1x256xf32>
    %221 = vector.broadcast %219 : vector<4x1xf32> to vector<4x256xf32>
    %222 = vector.broadcast %220 : vector<1x256xf32> to vector<4x256xf32>
    %223 = arith.mulf %221, %222 : vector<4x256xf32>
    %224 = arith.addf %218, %223 : vector<4x256xf32>
    %225 = vector.extract_strided_slice %195 {offsets = [0, 5], sizes = [4, 1], strides = [1, 1]} : vector<4x8xf32> to vector<4x1xf32>
    %226 = vector.extract_strided_slice %193 {offsets = [5, 0], sizes = [1, 256], strides = [1, 1]} : vector<8x256xf32> to vector<1x256xf32>
    %227 = vector.broadcast %225 : vector<4x1xf32> to vector<4x256xf32>
    %228 = vector.broadcast %226 : vector<1x256xf32> to vector<4x256xf32>
    %229 = arith.mulf %227, %228 : vector<4x256xf32>
    %230 = arith.addf %224, %229 : vector<4x256xf32>
    %231 = vector.extract_strided_slice %195 {offsets = [0, 6], sizes = [4, 1], strides = [1, 1]} : vector<4x8xf32> to vector<4x1xf32>
    %232 = vector.extract_strided_slice %193 {offsets = [6, 0], sizes = [1, 256], strides = [1, 1]} : vector<8x256xf32> to vector<1x256xf32>
    %233 = vector.broadcast %231 : vector<4x1xf32> to vector<4x256xf32>
    %234 = vector.broadcast %232 : vector<1x256xf32> to vector<4x256xf32>
    %235 = arith.mulf %233, %234 : vector<4x256xf32>
    %236 = arith.addf %230, %235 : vector<4x256xf32>
    %237 = vector.extract_strided_slice %195 {offsets = [0, 7], sizes = [4, 1], strides = [1, 1]} : vector<4x8xf32> to vector<4x1xf32>
    %238 = vector.extract_strided_slice %193 {offsets = [7, 0], sizes = [1, 256], strides = [1, 1]} : vector<8x256xf32> to vector<1x256xf32>
    %239 = vector.broadcast %237 : vector<4x1xf32> to vector<4x256xf32>
    %240 = vector.broadcast %238 : vector<1x256xf32> to vector<4x256xf32>
    %241 = arith.mulf %239, %240 : vector<4x256xf32>
    %242 = arith.addf %236, %241 : vector<4x256xf32>
    %243 = arith.addf %186, %242 : vector<4x256xf32>
    %c0_27 = arith.constant 0 : index
    %c128_28 = arith.constant 128 : index
    %244 = vector.load %arg12[%c0_27, %c128_28] : memref<8x512xf32, #tpu.memory_space<vmem>>, vector<8x256xf32>
    %c4 = arith.constant 4 : index
    %c0_29 = arith.constant 0 : index
    %c0_30 = arith.constant 0 : index
    %245 = vector.load %arg2[%c4, %c0_29, %c0_30] : memref<9x4x8xf32, #tpu.memory_space<vmem>>, vector<1x4x8xf32>
    %246 = vector.shape_cast %245 : vector<1x4x8xf32> to vector<4x8xf32>
    %247 = vector.extract_strided_slice %246 {offsets = [0, 0], sizes = [4, 1], strides = [1, 1]} : vector<4x8xf32> to vector<4x1xf32>
    %248 = vector.extract_strided_slice %244 {offsets = [0, 0], sizes = [1, 256], strides = [1, 1]} : vector<8x256xf32> to vector<1x256xf32>
    %249 = vector.broadcast %247 : vector<4x1xf32> to vector<4x256xf32>
    %250 = vector.broadcast %248 : vector<1x256xf32> to vector<4x256xf32>
    %251 = arith.mulf %249, %250 : vector<4x256xf32>
    %252 = vector.extract_strided_slice %246 {offsets = [0, 1], sizes = [4, 1], strides = [1, 1]} : vector<4x8xf32> to vector<4x1xf32>
    %253 = vector.extract_strided_slice %244 {offsets = [1, 0], sizes = [1, 256], strides = [1, 1]} : vector<8x256xf32> to vector<1x256xf32>
    %254 = vector.broadcast %252 : vector<4x1xf32> to vector<4x256xf32>
    %255 = vector.broadcast %253 : vector<1x256xf32> to vector<4x256xf32>
    %256 = arith.mulf %254, %255 : vector<4x256xf32>
    %257 = arith.addf %251, %256 : vector<4x256xf32>
    %258 = vector.extract_strided_slice %246 {offsets = [0, 2], sizes = [4, 1], strides = [1, 1]} : vector<4x8xf32> to vector<4x1xf32>
    %259 = vector.extract_strided_slice %244 {offsets = [2, 0], sizes = [1, 256], strides = [1, 1]} : vector<8x256xf32> to vector<1x256xf32>
    %260 = vector.broadcast %258 : vector<4x1xf32> to vector<4x256xf32>
    %261 = vector.broadcast %259 : vector<1x256xf32> to vector<4x256xf32>
    %262 = arith.mulf %260, %261 : vector<4x256xf32>
    %263 = arith.addf %257, %262 : vector<4x256xf32>
    %264 = vector.extract_strided_slice %246 {offsets = [0, 3], sizes = [4, 1], strides = [1, 1]} : vector<4x8xf32> to vector<4x1xf32>
    %265 = vector.extract_strided_slice %244 {offsets = [3, 0], sizes = [1, 256], strides = [1, 1]} : vector<8x256xf32> to vector<1x256xf32>
    %266 = vector.broadcast %264 : vector<4x1xf32> to vector<4x256xf32>
    %267 = vector.broadcast %265 : vector<1x256xf32> to vector<4x256xf32>
    %268 = arith.mulf %266, %267 : vector<4x256xf32>
    %269 = arith.addf %263, %268 : vector<4x256xf32>
    %270 = vector.extract_strided_slice %246 {offsets = [0, 4], sizes = [4, 1], strides = [1, 1]} : vector<4x8xf32> to vector<4x1xf32>
    %271 = vector.extract_strided_slice %244 {offsets = [4, 0], sizes = [1, 256], strides = [1, 1]} : vector<8x256xf32> to vector<1x256xf32>
    %272 = vector.broadcast %270 : vector<4x1xf32> to vector<4x256xf32>
    %273 = vector.broadcast %271 : vector<1x256xf32> to vector<4x256xf32>
    %274 = arith.mulf %272, %273 : vector<4x256xf32>
    %275 = arith.addf %269, %274 : vector<4x256xf32>
    %276 = vector.extract_strided_slice %246 {offsets = [0, 5], sizes = [4, 1], strides = [1, 1]} : vector<4x8xf32> to vector<4x1xf32>
    %277 = vector.extract_strided_slice %244 {offsets = [5, 0], sizes = [1, 256], strides = [1, 1]} : vector<8x256xf32> to vector<1x256xf32>
    %278 = vector.broadcast %276 : vector<4x1xf32> to vector<4x256xf32>
    %279 = vector.broadcast %277 : vector<1x256xf32> to vector<4x256xf32>
    %280 = arith.mulf %278, %279 : vector<4x256xf32>
    %281 = arith.addf %275, %280 : vector<4x256xf32>
    %282 = vector.extract_strided_slice %246 {offsets = [0, 6], sizes = [4, 1], strides = [1, 1]} : vector<4x8xf32> to vector<4x1xf32>
    %283 = vector.extract_strided_slice %244 {offsets = [6, 0], sizes = [1, 256], strides = [1, 1]} : vector<8x256xf32> to vector<1x256xf32>
    %284 = vector.broadcast %282 : vector<4x1xf32> to vector<4x256xf32>
    %285 = vector.broadcast %283 : vector<1x256xf32> to vector<4x256xf32>
    %286 = arith.mulf %284, %285 : vector<4x256xf32>
    %287 = arith.addf %281, %286 : vector<4x256xf32>
    %288 = vector.extract_strided_slice %246 {offsets = [0, 7], sizes = [4, 1], strides = [1, 1]} : vector<4x8xf32> to vector<4x1xf32>
    %289 = vector.extract_strided_slice %244 {offsets = [7, 0], sizes = [1, 256], strides = [1, 1]} : vector<8x256xf32> to vector<1x256xf32>
    %290 = vector.broadcast %288 : vector<4x1xf32> to vector<4x256xf32>
    %291 = vector.broadcast %289 : vector<1x256xf32> to vector<4x256xf32>
    %292 = arith.mulf %290, %291 : vector<4x256xf32>
    %293 = arith.addf %287, %292 : vector<4x256xf32>
    %294 = arith.addf %243, %293 : vector<4x256xf32>
    %c0_31 = arith.constant 0 : index
    %c129 = arith.constant 129 : index
    %295 = vector.load %arg12[%c0_31, %c129] : memref<8x512xf32, #tpu.memory_space<vmem>>, vector<8x256xf32>
    %c14_i32_32 = arith.constant 14 : i32
    %296 = vector.broadcast %c14_i32_32 : i32 to vector<1x256xi32>
    %297 = arith.cmpi sle, %17, %296 : vector<1x256xi32>
    %cst_33 = arith.constant 0.000000e+00 : f32
    %298 = vector.shape_cast %297 : vector<1x256xi1> to vector<1x256xi1>
    %299 = vector.broadcast %298 : vector<1x256xi1> to vector<8x256xi1>
    %300 = vector.broadcast %cst_33 : f32 to vector<8x256xf32>
    %301 = arith.select %299, %295, %300 : vector<8x256xi1>, vector<8x256xf32>
    %c5 = arith.constant 5 : index
    %c0_34 = arith.constant 0 : index
    %c0_35 = arith.constant 0 : index
    %302 = vector.load %arg2[%c5, %c0_34, %c0_35] : memref<9x4x8xf32, #tpu.memory_space<vmem>>, vector<1x4x8xf32>
    %303 = vector.shape_cast %302 : vector<1x4x8xf32> to vector<4x8xf32>
    %304 = vector.extract_strided_slice %303 {offsets = [0, 0], sizes = [4, 1], strides = [1, 1]} : vector<4x8xf32> to vector<4x1xf32>
    %305 = vector.extract_strided_slice %301 {offsets = [0, 0], sizes = [1, 256], strides = [1, 1]} : vector<8x256xf32> to vector<1x256xf32>
    %306 = vector.broadcast %304 : vector<4x1xf32> to vector<4x256xf32>
    %307 = vector.broadcast %305 : vector<1x256xf32> to vector<4x256xf32>
    %308 = arith.mulf %306, %307 : vector<4x256xf32>
    %309 = vector.extract_strided_slice %303 {offsets = [0, 1], sizes = [4, 1], strides = [1, 1]} : vector<4x8xf32> to vector<4x1xf32>
    %310 = vector.extract_strided_slice %301 {offsets = [1, 0], sizes = [1, 256], strides = [1, 1]} : vector<8x256xf32> to vector<1x256xf32>
    %311 = vector.broadcast %309 : vector<4x1xf32> to vector<4x256xf32>
    %312 = vector.broadcast %310 : vector<1x256xf32> to vector<4x256xf32>
    %313 = arith.mulf %311, %312 : vector<4x256xf32>
    %314 = arith.addf %308, %313 : vector<4x256xf32>
    %315 = vector.extract_strided_slice %303 {offsets = [0, 2], sizes = [4, 1], strides = [1, 1]} : vector<4x8xf32> to vector<4x1xf32>
    %316 = vector.extract_strided_slice %301 {offsets = [2, 0], sizes = [1, 256], strides = [1, 1]} : vector<8x256xf32> to vector<1x256xf32>
    %317 = vector.broadcast %315 : vector<4x1xf32> to vector<4x256xf32>
    %318 = vector.broadcast %316 : vector<1x256xf32> to vector<4x256xf32>
    %319 = arith.mulf %317, %318 : vector<4x256xf32>
    %320 = arith.addf %314, %319 : vector<4x256xf32>
    %321 = vector.extract_strided_slice %303 {offsets = [0, 3], sizes = [4, 1], strides = [1, 1]} : vector<4x8xf32> to vector<4x1xf32>
    %322 = vector.extract_strided_slice %301 {offsets = [3, 0], sizes = [1, 256], strides = [1, 1]} : vector<8x256xf32> to vector<1x256xf32>
    %323 = vector.broadcast %321 : vector<4x1xf32> to vector<4x256xf32>
    %324 = vector.broadcast %322 : vector<1x256xf32> to vector<4x256xf32>
    %325 = arith.mulf %323, %324 : vector<4x256xf32>
    %326 = arith.addf %320, %325 : vector<4x256xf32>
    %327 = vector.extract_strided_slice %303 {offsets = [0, 4], sizes = [4, 1], strides = [1, 1]} : vector<4x8xf32> to vector<4x1xf32>
    %328 = vector.extract_strided_slice %301 {offsets = [4, 0], sizes = [1, 256], strides = [1, 1]} : vector<8x256xf32> to vector<1x256xf32>
    %329 = vector.broadcast %327 : vector<4x1xf32> to vector<4x256xf32>
    %330 = vector.broadcast %328 : vector<1x256xf32> to vector<4x256xf32>
    %331 = arith.mulf %329, %330 : vector<4x256xf32>
    %332 = arith.addf %326, %331 : vector<4x256xf32>
    %333 = vector.extract_strided_slice %303 {offsets = [0, 5], sizes = [4, 1], strides = [1, 1]} : vector<4x8xf32> to vector<4x1xf32>
    %334 = vector.extract_strided_slice %301 {offsets = [5, 0], sizes = [1, 256], strides = [1, 1]} : vector<8x256xf32> to vector<1x256xf32>
    %335 = vector.broadcast %333 : vector<4x1xf32> to vector<4x256xf32>
    %336 = vector.broadcast %334 : vector<1x256xf32> to vector<4x256xf32>
    %337 = arith.mulf %335, %336 : vector<4x256xf32>
    %338 = arith.addf %332, %337 : vector<4x256xf32>
    %339 = vector.extract_strided_slice %303 {offsets = [0, 6], sizes = [4, 1], strides = [1, 1]} : vector<4x8xf32> to vector<4x1xf32>
    %340 = vector.extract_strided_slice %301 {offsets = [6, 0], sizes = [1, 256], strides = [1, 1]} : vector<8x256xf32> to vector<1x256xf32>
    %341 = vector.broadcast %339 : vector<4x1xf32> to vector<4x256xf32>
    %342 = vector.broadcast %340 : vector<1x256xf32> to vector<4x256xf32>
    %343 = arith.mulf %341, %342 : vector<4x256xf32>
    %344 = arith.addf %338, %343 : vector<4x256xf32>
    %345 = vector.extract_strided_slice %303 {offsets = [0, 7], sizes = [4, 1], strides = [1, 1]} : vector<4x8xf32> to vector<4x1xf32>
    %346 = vector.extract_strided_slice %301 {offsets = [7, 0], sizes = [1, 256], strides = [1, 1]} : vector<8x256xf32> to vector<1x256xf32>
    %347 = vector.broadcast %345 : vector<4x1xf32> to vector<4x256xf32>
    %348 = vector.broadcast %346 : vector<1x256xf32> to vector<4x256xf32>
    %349 = arith.mulf %347, %348 : vector<4x256xf32>
    %350 = arith.addf %344, %349 : vector<4x256xf32>
    %351 = arith.addf %294, %350 : vector<4x256xf32>
    %c0_36 = arith.constant 0 : index
    %c143 = arith.constant 143 : index
    %352 = vector.load %arg12[%c0_36, %c143] : memref<8x512xf32, #tpu.memory_space<vmem>>, vector<8x256xf32>
    %c1_i32_37 = arith.constant 1 : i32
    %353 = vector.broadcast %c1_i32_37 : i32 to vector<1x256xi32>
    %354 = arith.cmpi sge, %17, %353 : vector<1x256xi32>
    %cst_38 = arith.constant 0.000000e+00 : f32
    %355 = vector.shape_cast %354 : vector<1x256xi1> to vector<1x256xi1>
    %356 = vector.broadcast %355 : vector<1x256xi1> to vector<8x256xi1>
    %357 = vector.broadcast %cst_38 : f32 to vector<8x256xf32>
    %358 = arith.select %356, %352, %357 : vector<8x256xi1>, vector<8x256xf32>
    %c6 = arith.constant 6 : index
    %c0_39 = arith.constant 0 : index
    %c0_40 = arith.constant 0 : index
    %359 = vector.load %arg2[%c6, %c0_39, %c0_40] : memref<9x4x8xf32, #tpu.memory_space<vmem>>, vector<1x4x8xf32>
    %360 = vector.shape_cast %359 : vector<1x4x8xf32> to vector<4x8xf32>
    %361 = vector.extract_strided_slice %360 {offsets = [0, 0], sizes = [4, 1], strides = [1, 1]} : vector<4x8xf32> to vector<4x1xf32>
    %362 = vector.extract_strided_slice %358 {offsets = [0, 0], sizes = [1, 256], strides = [1, 1]} : vector<8x256xf32> to vector<1x256xf32>
    %363 = vector.broadcast %361 : vector<4x1xf32> to vector<4x256xf32>
    %364 = vector.broadcast %362 : vector<1x256xf32> to vector<4x256xf32>
    %365 = arith.mulf %363, %364 : vector<4x256xf32>
    %366 = vector.extract_strided_slice %360 {offsets = [0, 1], sizes = [4, 1], strides = [1, 1]} : vector<4x8xf32> to vector<4x1xf32>
    %367 = vector.extract_strided_slice %358 {offsets = [1, 0], sizes = [1, 256], strides = [1, 1]} : vector<8x256xf32> to vector<1x256xf32>
    %368 = vector.broadcast %366 : vector<4x1xf32> to vector<4x256xf32>
    %369 = vector.broadcast %367 : vector<1x256xf32> to vector<4x256xf32>
    %370 = arith.mulf %368, %369 : vector<4x256xf32>
    %371 = arith.addf %365, %370 : vector<4x256xf32>
    %372 = vector.extract_strided_slice %360 {offsets = [0, 2], sizes = [4, 1], strides = [1, 1]} : vector<4x8xf32> to vector<4x1xf32>
    %373 = vector.extract_strided_slice %358 {offsets = [2, 0], sizes = [1, 256], strides = [1, 1]} : vector<8x256xf32> to vector<1x256xf32>
    %374 = vector.broadcast %372 : vector<4x1xf32> to vector<4x256xf32>
    %375 = vector.broadcast %373 : vector<1x256xf32> to vector<4x256xf32>
    %376 = arith.mulf %374, %375 : vector<4x256xf32>
    %377 = arith.addf %371, %376 : vector<4x256xf32>
    %378 = vector.extract_strided_slice %360 {offsets = [0, 3], sizes = [4, 1], strides = [1, 1]} : vector<4x8xf32> to vector<4x1xf32>
    %379 = vector.extract_strided_slice %358 {offsets = [3, 0], sizes = [1, 256], strides = [1, 1]} : vector<8x256xf32> to vector<1x256xf32>
    %380 = vector.broadcast %378 : vector<4x1xf32> to vector<4x256xf32>
    %381 = vector.broadcast %379 : vector<1x256xf32> to vector<4x256xf32>
    %382 = arith.mulf %380, %381 : vector<4x256xf32>
    %383 = arith.addf %377, %382 : vector<4x256xf32>
    %384 = vector.extract_strided_slice %360 {offsets = [0, 4], sizes = [4, 1], strides = [1, 1]} : vector<4x8xf32> to vector<4x1xf32>
    %385 = vector.extract_strided_slice %358 {offsets = [4, 0], sizes = [1, 256], strides = [1, 1]} : vector<8x256xf32> to vector<1x256xf32>
    %386 = vector.broadcast %384 : vector<4x1xf32> to vector<4x256xf32>
    %387 = vector.broadcast %385 : vector<1x256xf32> to vector<4x256xf32>
    %388 = arith.mulf %386, %387 : vector<4x256xf32>
    %389 = arith.addf %383, %388 : vector<4x256xf32>
    %390 = vector.extract_strided_slice %360 {offsets = [0, 5], sizes = [4, 1], strides = [1, 1]} : vector<4x8xf32> to vector<4x1xf32>
    %391 = vector.extract_strided_slice %358 {offsets = [5, 0], sizes = [1, 256], strides = [1, 1]} : vector<8x256xf32> to vector<1x256xf32>
    %392 = vector.broadcast %390 : vector<4x1xf32> to vector<4x256xf32>
    %393 = vector.broadcast %391 : vector<1x256xf32> to vector<4x256xf32>
    %394 = arith.mulf %392, %393 : vector<4x256xf32>
    %395 = arith.addf %389, %394 : vector<4x256xf32>
    %396 = vector.extract_strided_slice %360 {offsets = [0, 6], sizes = [4, 1], strides = [1, 1]} : vector<4x8xf32> to vector<4x1xf32>
    %397 = vector.extract_strided_slice %358 {offsets = [6, 0], sizes = [1, 256], strides = [1, 1]} : vector<8x256xf32> to vector<1x256xf32>
    %398 = vector.broadcast %396 : vector<4x1xf32> to vector<4x256xf32>
    %399 = vector.broadcast %397 : vector<1x256xf32> to vector<4x256xf32>
    %400 = arith.mulf %398, %399 : vector<4x256xf32>
    %401 = arith.addf %395, %400 : vector<4x256xf32>
    %402 = vector.extract_strided_slice %360 {offsets = [0, 7], sizes = [4, 1], strides = [1, 1]} : vector<4x8xf32> to vector<4x1xf32>
    %403 = vector.extract_strided_slice %358 {offsets = [7, 0], sizes = [1, 256], strides = [1, 1]} : vector<8x256xf32> to vector<1x256xf32>
    %404 = vector.broadcast %402 : vector<4x1xf32> to vector<4x256xf32>
    %405 = vector.broadcast %403 : vector<1x256xf32> to vector<4x256xf32>
    %406 = arith.mulf %404, %405 : vector<4x256xf32>
    %407 = arith.addf %401, %406 : vector<4x256xf32>
    %408 = arith.addf %351, %407 : vector<4x256xf32>
    %c0_41 = arith.constant 0 : index
    %c144 = arith.constant 144 : index
    %409 = vector.load %arg12[%c0_41, %c144] : memref<8x512xf32, #tpu.memory_space<vmem>>, vector<8x256xf32>
    %c7 = arith.constant 7 : index
    %c0_42 = arith.constant 0 : index
    %c0_43 = arith.constant 0 : index
    %410 = vector.load %arg2[%c7, %c0_42, %c0_43] : memref<9x4x8xf32, #tpu.memory_space<vmem>>, vector<1x4x8xf32>
    %411 = vector.shape_cast %410 : vector<1x4x8xf32> to vector<4x8xf32>
    %412 = vector.extract_strided_slice %411 {offsets = [0, 0], sizes = [4, 1], strides = [1, 1]} : vector<4x8xf32> to vector<4x1xf32>
    %413 = vector.extract_strided_slice %409 {offsets = [0, 0], sizes = [1, 256], strides = [1, 1]} : vector<8x256xf32> to vector<1x256xf32>
    %414 = vector.broadcast %412 : vector<4x1xf32> to vector<4x256xf32>
    %415 = vector.broadcast %413 : vector<1x256xf32> to vector<4x256xf32>
    %416 = arith.mulf %414, %415 : vector<4x256xf32>
    %417 = vector.extract_strided_slice %411 {offsets = [0, 1], sizes = [4, 1], strides = [1, 1]} : vector<4x8xf32> to vector<4x1xf32>
    %418 = vector.extract_strided_slice %409 {offsets = [1, 0], sizes = [1, 256], strides = [1, 1]} : vector<8x256xf32> to vector<1x256xf32>
    %419 = vector.broadcast %417 : vector<4x1xf32> to vector<4x256xf32>
    %420 = vector.broadcast %418 : vector<1x256xf32> to vector<4x256xf32>
    %421 = arith.mulf %419, %420 : vector<4x256xf32>
    %422 = arith.addf %416, %421 : vector<4x256xf32>
    %423 = vector.extract_strided_slice %411 {offsets = [0, 2], sizes = [4, 1], strides = [1, 1]} : vector<4x8xf32> to vector<4x1xf32>
    %424 = vector.extract_strided_slice %409 {offsets = [2, 0], sizes = [1, 256], strides = [1, 1]} : vector<8x256xf32> to vector<1x256xf32>
    %425 = vector.broadcast %423 : vector<4x1xf32> to vector<4x256xf32>
    %426 = vector.broadcast %424 : vector<1x256xf32> to vector<4x256xf32>
    %427 = arith.mulf %425, %426 : vector<4x256xf32>
    %428 = arith.addf %422, %427 : vector<4x256xf32>
    %429 = vector.extract_strided_slice %411 {offsets = [0, 3], sizes = [4, 1], strides = [1, 1]} : vector<4x8xf32> to vector<4x1xf32>
    %430 = vector.extract_strided_slice %409 {offsets = [3, 0], sizes = [1, 256], strides = [1, 1]} : vector<8x256xf32> to vector<1x256xf32>
    %431 = vector.broadcast %429 : vector<4x1xf32> to vector<4x256xf32>
    %432 = vector.broadcast %430 : vector<1x256xf32> to vector<4x256xf32>
    %433 = arith.mulf %431, %432 : vector<4x256xf32>
    %434 = arith.addf %428, %433 : vector<4x256xf32>
    %435 = vector.extract_strided_slice %411 {offsets = [0, 4], sizes = [4, 1], strides = [1, 1]} : vector<4x8xf32> to vector<4x1xf32>
    %436 = vector.extract_strided_slice %409 {offsets = [4, 0], sizes = [1, 256], strides = [1, 1]} : vector<8x256xf32> to vector<1x256xf32>
    %437 = vector.broadcast %435 : vector<4x1xf32> to vector<4x256xf32>
    %438 = vector.broadcast %436 : vector<1x256xf32> to vector<4x256xf32>
    %439 = arith.mulf %437, %438 : vector<4x256xf32>
    %440 = arith.addf %434, %439 : vector<4x256xf32>
    %441 = vector.extract_strided_slice %411 {offsets = [0, 5], sizes = [4, 1], strides = [1, 1]} : vector<4x8xf32> to vector<4x1xf32>
    %442 = vector.extract_strided_slice %409 {offsets = [5, 0], sizes = [1, 256], strides = [1, 1]} : vector<8x256xf32> to vector<1x256xf32>
    %443 = vector.broadcast %441 : vector<4x1xf32> to vector<4x256xf32>
    %444 = vector.broadcast %442 : vector<1x256xf32> to vector<4x256xf32>
    %445 = arith.mulf %443, %444 : vector<4x256xf32>
    %446 = arith.addf %440, %445 : vector<4x256xf32>
    %447 = vector.extract_strided_slice %411 {offsets = [0, 6], sizes = [4, 1], strides = [1, 1]} : vector<4x8xf32> to vector<4x1xf32>
    %448 = vector.extract_strided_slice %409 {offsets = [6, 0], sizes = [1, 256], strides = [1, 1]} : vector<8x256xf32> to vector<1x256xf32>
    %449 = vector.broadcast %447 : vector<4x1xf32> to vector<4x256xf32>
    %450 = vector.broadcast %448 : vector<1x256xf32> to vector<4x256xf32>
    %451 = arith.mulf %449, %450 : vector<4x256xf32>
    %452 = arith.addf %446, %451 : vector<4x256xf32>
    %453 = vector.extract_strided_slice %411 {offsets = [0, 7], sizes = [4, 1], strides = [1, 1]} : vector<4x8xf32> to vector<4x1xf32>
    %454 = vector.extract_strided_slice %409 {offsets = [7, 0], sizes = [1, 256], strides = [1, 1]} : vector<8x256xf32> to vector<1x256xf32>
    %455 = vector.broadcast %453 : vector<4x1xf32> to vector<4x256xf32>
    %456 = vector.broadcast %454 : vector<1x256xf32> to vector<4x256xf32>
    %457 = arith.mulf %455, %456 : vector<4x256xf32>
    %458 = arith.addf %452, %457 : vector<4x256xf32>
    %459 = arith.addf %408, %458 : vector<4x256xf32>
    %c0_44 = arith.constant 0 : index
    %c145 = arith.constant 145 : index
    %460 = vector.load %arg12[%c0_44, %c145] : memref<8x512xf32, #tpu.memory_space<vmem>>, vector<8x256xf32>
    %c14_i32_45 = arith.constant 14 : i32
    %461 = vector.broadcast %c14_i32_45 : i32 to vector<1x256xi32>
    %462 = arith.cmpi sle, %17, %461 : vector<1x256xi32>
    %cst_46 = arith.constant 0.000000e+00 : f32
    %463 = vector.shape_cast %462 : vector<1x256xi1> to vector<1x256xi1>
    %464 = vector.broadcast %463 : vector<1x256xi1> to vector<8x256xi1>
    %465 = vector.broadcast %cst_46 : f32 to vector<8x256xf32>
    %466 = arith.select %464, %460, %465 : vector<8x256xi1>, vector<8x256xf32>
    %c8 = arith.constant 8 : index
    %c0_47 = arith.constant 0 : index
    %c0_48 = arith.constant 0 : index
    %467 = vector.load %arg2[%c8, %c0_47, %c0_48] : memref<9x4x8xf32, #tpu.memory_space<vmem>>, vector<1x4x8xf32>
    %468 = vector.shape_cast %467 : vector<1x4x8xf32> to vector<4x8xf32>
    %469 = vector.extract_strided_slice %468 {offsets = [0, 0], sizes = [4, 1], strides = [1, 1]} : vector<4x8xf32> to vector<4x1xf32>
    %470 = vector.extract_strided_slice %466 {offsets = [0, 0], sizes = [1, 256], strides = [1, 1]} : vector<8x256xf32> to vector<1x256xf32>
    %471 = vector.broadcast %469 : vector<4x1xf32> to vector<4x256xf32>
    %472 = vector.broadcast %470 : vector<1x256xf32> to vector<4x256xf32>
    %473 = arith.mulf %471, %472 : vector<4x256xf32>
    %474 = vector.extract_strided_slice %468 {offsets = [0, 1], sizes = [4, 1], strides = [1, 1]} : vector<4x8xf32> to vector<4x1xf32>
    %475 = vector.extract_strided_slice %466 {offsets = [1, 0], sizes = [1, 256], strides = [1, 1]} : vector<8x256xf32> to vector<1x256xf32>
    %476 = vector.broadcast %474 : vector<4x1xf32> to vector<4x256xf32>
    %477 = vector.broadcast %475 : vector<1x256xf32> to vector<4x256xf32>
    %478 = arith.mulf %476, %477 : vector<4x256xf32>
    %479 = arith.addf %473, %478 : vector<4x256xf32>
    %480 = vector.extract_strided_slice %468 {offsets = [0, 2], sizes = [4, 1], strides = [1, 1]} : vector<4x8xf32> to vector<4x1xf32>
    %481 = vector.extract_strided_slice %466 {offsets = [2, 0], sizes = [1, 256], strides = [1, 1]} : vector<8x256xf32> to vector<1x256xf32>
    %482 = vector.broadcast %480 : vector<4x1xf32> to vector<4x256xf32>
    %483 = vector.broadcast %481 : vector<1x256xf32> to vector<4x256xf32>
    %484 = arith.mulf %482, %483 : vector<4x256xf32>
    %485 = arith.addf %479, %484 : vector<4x256xf32>
    %486 = vector.extract_strided_slice %468 {offsets = [0, 3], sizes = [4, 1], strides = [1, 1]} : vector<4x8xf32> to vector<4x1xf32>
    %487 = vector.extract_strided_slice %466 {offsets = [3, 0], sizes = [1, 256], strides = [1, 1]} : vector<8x256xf32> to vector<1x256xf32>
    %488 = vector.broadcast %486 : vector<4x1xf32> to vector<4x256xf32>
    %489 = vector.broadcast %487 : vector<1x256xf32> to vector<4x256xf32>
    %490 = arith.mulf %488, %489 : vector<4x256xf32>
    %491 = arith.addf %485, %490 : vector<4x256xf32>
    %492 = vector.extract_strided_slice %468 {offsets = [0, 4], sizes = [4, 1], strides = [1, 1]} : vector<4x8xf32> to vector<4x1xf32>
    %493 = vector.extract_strided_slice %466 {offsets = [4, 0], sizes = [1, 256], strides = [1, 1]} : vector<8x256xf32> to vector<1x256xf32>
    %494 = vector.broadcast %492 : vector<4x1xf32> to vector<4x256xf32>
    %495 = vector.broadcast %493 : vector<1x256xf32> to vector<4x256xf32>
    %496 = arith.mulf %494, %495 : vector<4x256xf32>
    %497 = arith.addf %491, %496 : vector<4x256xf32>
    %498 = vector.extract_strided_slice %468 {offsets = [0, 5], sizes = [4, 1], strides = [1, 1]} : vector<4x8xf32> to vector<4x1xf32>
    %499 = vector.extract_strided_slice %466 {offsets = [5, 0], sizes = [1, 256], strides = [1, 1]} : vector<8x256xf32> to vector<1x256xf32>
    %500 = vector.broadcast %498 : vector<4x1xf32> to vector<4x256xf32>
    %501 = vector.broadcast %499 : vector<1x256xf32> to vector<4x256xf32>
    %502 = arith.mulf %500, %501 : vector<4x256xf32>
    %503 = arith.addf %497, %502 : vector<4x256xf32>
    %504 = vector.extract_strided_slice %468 {offsets = [0, 6], sizes = [4, 1], strides = [1, 1]} : vector<4x8xf32> to vector<4x1xf32>
    %505 = vector.extract_strided_slice %466 {offsets = [6, 0], sizes = [1, 256], strides = [1, 1]} : vector<8x256xf32> to vector<1x256xf32>
    %506 = vector.broadcast %504 : vector<4x1xf32> to vector<4x256xf32>
    %507 = vector.broadcast %505 : vector<1x256xf32> to vector<4x256xf32>
    %508 = arith.mulf %506, %507 : vector<4x256xf32>
    %509 = arith.addf %503, %508 : vector<4x256xf32>
    %510 = vector.extract_strided_slice %468 {offsets = [0, 7], sizes = [4, 1], strides = [1, 1]} : vector<4x8xf32> to vector<4x1xf32>
    %511 = vector.extract_strided_slice %466 {offsets = [7, 0], sizes = [1, 256], strides = [1, 1]} : vector<8x256xf32> to vector<1x256xf32>
    %512 = vector.broadcast %510 : vector<4x1xf32> to vector<4x256xf32>
    %513 = vector.broadcast %511 : vector<1x256xf32> to vector<4x256xf32>
    %514 = arith.mulf %512, %513 : vector<4x256xf32>
    %515 = arith.addf %509, %514 : vector<4x256xf32>
    %516 = arith.addf %459, %515 : vector<4x256xf32>
    %c0_49 = arith.constant 0 : index
    %c0_50 = arith.constant 0 : index
    %517 = vector.load %arg3[%c0_49, %c0_50] : memref<4x1xf32, #tpu.memory_space<vmem>>, vector<4x1xf32>
    %518 = vector.broadcast %517 : vector<4x1xf32> to vector<4x256xf32>
    %519 = arith.addf %516, %518 : vector<4x256xf32>
    %cst_51 = arith.constant 0.000000e+00 : f32
    %520 = vector.broadcast %cst_51 : f32 to vector<4x256xf32>
    %521 = arith.cmpf oge, %519, %520 : vector<4x256xf32>
    %522 = vector.broadcast %0 : f32 to vector<4x256xf32>
    %523 = arith.mulf %522, %519 : vector<4x256xf32>
    %524 = arith.select %521, %519, %523 : vector<4x256xi1>, vector<4x256xf32>
    %cst_52 = arith.constant 0.000000e+00 : f32
    %525 = vector.broadcast %cst_52 : f32 to vector<4x512xf32>
    %c0_53 = arith.constant 0 : index
    %c0_54 = arith.constant 0 : index
    %526 = vector.load %arg13[%c0_53, %c0_54] : memref<4x512xf32, #tpu.memory_space<vmem>>, vector<4x512xf32>
    tpu.vector_store %arg13[%c0_53, %c0_54], %525 {strides = array<i32>} : memref<4x512xf32, #tpu.memory_space<vmem>>, vector<4x512xf32>,
    %c0_55 = arith.constant 0 : index
    %c128_56 = arith.constant 128 : index
    %527 = vector.load %arg13[%c0_55, %c128_56] : memref<4x512xf32, #tpu.memory_space<vmem>>, vector<4x256xf32>
    tpu.vector_store %arg13[%c0_55, %c128_56], %524 {strides = array<i32>} : memref<4x512xf32, #tpu.memory_space<vmem>>, vector<4x256xf32>,
    %c0_57 = arith.constant 0 : index
    %c111_58 = arith.constant 111 : index
    %528 = vector.load %arg13[%c0_57, %c111_58] : memref<4x512xf32, #tpu.memory_space<vmem>>, vector<4x256xf32>
    %c1_i32_59 = arith.constant 1 : i32
    %529 = vector.broadcast %c1_i32_59 : i32 to vector<1x256xi32>
    %530 = arith.cmpi sge, %17, %529 : vector<1x256xi32>
    %cst_60 = arith.constant 0.000000e+00 : f32
    %531 = vector.shape_cast %530 : vector<1x256xi1> to vector<1x256xi1>
    %532 = vector.broadcast %531 : vector<1x256xi1> to vector<4x256xi1>
    %533 = vector.broadcast %cst_60 : f32 to vector<4x256xf32>
    %534 = arith.select %532, %528, %533 : vector<4x256xi1>, vector<4x256xf32>
    %c0_61 = arith.constant 0 : index
    %c0_62 = arith.constant 0 : index
    %c0_63 = arith.constant 0 : index
    %535 = vector.load %arg4[%c0_61, %c0_62, %c0_63] : memref<9x4x4xf32, #tpu.memory_space<vmem>>, vector<1x4x4xf32>
    %536 = vector.shape_cast %535 : vector<1x4x4xf32> to vector<4x4xf32>
    %537 = vector.extract_strided_slice %536 {offsets = [0, 0], sizes = [4, 1], strides = [1, 1]} : vector<4x4xf32> to vector<4x1xf32>
    %538 = vector.extract_strided_slice %534 {offsets = [0, 0], sizes = [1, 256], strides = [1, 1]} : vector<4x256xf32> to vector<1x256xf32>
    %539 = vector.broadcast %537 : vector<4x1xf32> to vector<4x256xf32>
    %540 = vector.broadcast %538 : vector<1x256xf32> to vector<4x256xf32>
    %541 = arith.mulf %539, %540 : vector<4x256xf32>
    %542 = vector.extract_strided_slice %536 {offsets = [0, 1], sizes = [4, 1], strides = [1, 1]} : vector<4x4xf32> to vector<4x1xf32>
    %543 = vector.extract_strided_slice %534 {offsets = [1, 0], sizes = [1, 256], strides = [1, 1]} : vector<4x256xf32> to vector<1x256xf32>
    %544 = vector.broadcast %542 : vector<4x1xf32> to vector<4x256xf32>
    %545 = vector.broadcast %543 : vector<1x256xf32> to vector<4x256xf32>
    %546 = arith.mulf %544, %545 : vector<4x256xf32>
    %547 = arith.addf %541, %546 : vector<4x256xf32>
    %548 = vector.extract_strided_slice %536 {offsets = [0, 2], sizes = [4, 1], strides = [1, 1]} : vector<4x4xf32> to vector<4x1xf32>
    %549 = vector.extract_strided_slice %534 {offsets = [2, 0], sizes = [1, 256], strides = [1, 1]} : vector<4x256xf32> to vector<1x256xf32>
    %550 = vector.broadcast %548 : vector<4x1xf32> to vector<4x256xf32>
    %551 = vector.broadcast %549 : vector<1x256xf32> to vector<4x256xf32>
    %552 = arith.mulf %550, %551 : vector<4x256xf32>
    %553 = arith.addf %547, %552 : vector<4x256xf32>
    %554 = vector.extract_strided_slice %536 {offsets = [0, 3], sizes = [4, 1], strides = [1, 1]} : vector<4x4xf32> to vector<4x1xf32>
    %555 = vector.extract_strided_slice %534 {offsets = [3, 0], sizes = [1, 256], strides = [1, 1]} : vector<4x256xf32> to vector<1x256xf32>
    %556 = vector.broadcast %554 : vector<4x1xf32> to vector<4x256xf32>
    %557 = vector.broadcast %555 : vector<1x256xf32> to vector<4x256xf32>
    %558 = arith.mulf %556, %557 : vector<4x256xf32>
    %559 = arith.addf %553, %558 : vector<4x256xf32>
    %c0_64 = arith.constant 0 : index
    %c112_65 = arith.constant 112 : index
    %560 = vector.load %arg13[%c0_64, %c112_65] : memref<4x512xf32, #tpu.memory_space<vmem>>, vector<4x256xf32>
    %c1_66 = arith.constant 1 : index
    %c0_67 = arith.constant 0 : index
    %c0_68 = arith.constant 0 : index
    %561 = vector.load %arg4[%c1_66, %c0_67, %c0_68] : memref<9x4x4xf32, #tpu.memory_space<vmem>>, vector<1x4x4xf32>
    %562 = vector.shape_cast %561 : vector<1x4x4xf32> to vector<4x4xf32>
    %563 = vector.extract_strided_slice %562 {offsets = [0, 0], sizes = [4, 1], strides = [1, 1]} : vector<4x4xf32> to vector<4x1xf32>
    %564 = vector.extract_strided_slice %560 {offsets = [0, 0], sizes = [1, 256], strides = [1, 1]} : vector<4x256xf32> to vector<1x256xf32>
    %565 = vector.broadcast %563 : vector<4x1xf32> to vector<4x256xf32>
    %566 = vector.broadcast %564 : vector<1x256xf32> to vector<4x256xf32>
    %567 = arith.mulf %565, %566 : vector<4x256xf32>
    %568 = vector.extract_strided_slice %562 {offsets = [0, 1], sizes = [4, 1], strides = [1, 1]} : vector<4x4xf32> to vector<4x1xf32>
    %569 = vector.extract_strided_slice %560 {offsets = [1, 0], sizes = [1, 256], strides = [1, 1]} : vector<4x256xf32> to vector<1x256xf32>
    %570 = vector.broadcast %568 : vector<4x1xf32> to vector<4x256xf32>
    %571 = vector.broadcast %569 : vector<1x256xf32> to vector<4x256xf32>
    %572 = arith.mulf %570, %571 : vector<4x256xf32>
    %573 = arith.addf %567, %572 : vector<4x256xf32>
    %574 = vector.extract_strided_slice %562 {offsets = [0, 2], sizes = [4, 1], strides = [1, 1]} : vector<4x4xf32> to vector<4x1xf32>
    %575 = vector.extract_strided_slice %560 {offsets = [2, 0], sizes = [1, 256], strides = [1, 1]} : vector<4x256xf32> to vector<1x256xf32>
    %576 = vector.broadcast %574 : vector<4x1xf32> to vector<4x256xf32>
    %577 = vector.broadcast %575 : vector<1x256xf32> to vector<4x256xf32>
    %578 = arith.mulf %576, %577 : vector<4x256xf32>
    %579 = arith.addf %573, %578 : vector<4x256xf32>
    %580 = vector.extract_strided_slice %562 {offsets = [0, 3], sizes = [4, 1], strides = [1, 1]} : vector<4x4xf32> to vector<4x1xf32>
    %581 = vector.extract_strided_slice %560 {offsets = [3, 0], sizes = [1, 256], strides = [1, 1]} : vector<4x256xf32> to vector<1x256xf32>
    %582 = vector.broadcast %580 : vector<4x1xf32> to vector<4x256xf32>
    %583 = vector.broadcast %581 : vector<1x256xf32> to vector<4x256xf32>
    %584 = arith.mulf %582, %583 : vector<4x256xf32>
    %585 = arith.addf %579, %584 : vector<4x256xf32>
    %586 = arith.addf %559, %585 : vector<4x256xf32>
    %c0_69 = arith.constant 0 : index
    %c113_70 = arith.constant 113 : index
    %587 = vector.load %arg13[%c0_69, %c113_70] : memref<4x512xf32, #tpu.memory_space<vmem>>, vector<4x256xf32>
    %c14_i32_71 = arith.constant 14 : i32
    %588 = vector.broadcast %c14_i32_71 : i32 to vector<1x256xi32>
    %589 = arith.cmpi sle, %17, %588 : vector<1x256xi32>
    %cst_72 = arith.constant 0.000000e+00 : f32
    %590 = vector.shape_cast %589 : vector<1x256xi1> to vector<1x256xi1>
    %591 = vector.broadcast %590 : vector<1x256xi1> to vector<4x256xi1>
    %592 = vector.broadcast %cst_72 : f32 to vector<4x256xf32>
    %593 = arith.select %591, %587, %592 : vector<4x256xi1>, vector<4x256xf32>
    %c2_73 = arith.constant 2 : index
    %c0_74 = arith.constant 0 : index
    %c0_75 = arith.constant 0 : index
    %594 = vector.load %arg4[%c2_73, %c0_74, %c0_75] : memref<9x4x4xf32, #tpu.memory_space<vmem>>, vector<1x4x4xf32>
    %595 = vector.shape_cast %594 : vector<1x4x4xf32> to vector<4x4xf32>
    %596 = vector.extract_strided_slice %595 {offsets = [0, 0], sizes = [4, 1], strides = [1, 1]} : vector<4x4xf32> to vector<4x1xf32>
    %597 = vector.extract_strided_slice %593 {offsets = [0, 0], sizes = [1, 256], strides = [1, 1]} : vector<4x256xf32> to vector<1x256xf32>
    %598 = vector.broadcast %596 : vector<4x1xf32> to vector<4x256xf32>
    %599 = vector.broadcast %597 : vector<1x256xf32> to vector<4x256xf32>
    %600 = arith.mulf %598, %599 : vector<4x256xf32>
    %601 = vector.extract_strided_slice %595 {offsets = [0, 1], sizes = [4, 1], strides = [1, 1]} : vector<4x4xf32> to vector<4x1xf32>
    %602 = vector.extract_strided_slice %593 {offsets = [1, 0], sizes = [1, 256], strides = [1, 1]} : vector<4x256xf32> to vector<1x256xf32>
    %603 = vector.broadcast %601 : vector<4x1xf32> to vector<4x256xf32>
    %604 = vector.broadcast %602 : vector<1x256xf32> to vector<4x256xf32>
    %605 = arith.mulf %603, %604 : vector<4x256xf32>
    %606 = arith.addf %600, %605 : vector<4x256xf32>
    %607 = vector.extract_strided_slice %595 {offsets = [0, 2], sizes = [4, 1], strides = [1, 1]} : vector<4x4xf32> to vector<4x1xf32>
    %608 = vector.extract_strided_slice %593 {offsets = [2, 0], sizes = [1, 256], strides = [1, 1]} : vector<4x256xf32> to vector<1x256xf32>
    %609 = vector.broadcast %607 : vector<4x1xf32> to vector<4x256xf32>
    %610 = vector.broadcast %608 : vector<1x256xf32> to vector<4x256xf32>
    %611 = arith.mulf %609, %610 : vector<4x256xf32>
    %612 = arith.addf %606, %611 : vector<4x256xf32>
    %613 = vector.extract_strided_slice %595 {offsets = [0, 3], sizes = [4, 1], strides = [1, 1]} : vector<4x4xf32> to vector<4x1xf32>
    %614 = vector.extract_strided_slice %593 {offsets = [3, 0], sizes = [1, 256], strides = [1, 1]} : vector<4x256xf32> to vector<1x256xf32>
    %615 = vector.broadcast %613 : vector<4x1xf32> to vector<4x256xf32>
    %616 = vector.broadcast %614 : vector<1x256xf32> to vector<4x256xf32>
    %617 = arith.mulf %615, %616 : vector<4x256xf32>
    %618 = arith.addf %612, %617 : vector<4x256xf32>
    %619 = arith.addf %586, %618 : vector<4x256xf32>
    %c0_76 = arith.constant 0 : index
    %c127_77 = arith.constant 127 : index
    %620 = vector.load %arg13[%c0_76, %c127_77] : memref<4x512xf32, #tpu.memory_space<vmem>>, vector<4x256xf32>
    %c1_i32_78 = arith.constant 1 : i32
    %621 = vector.broadcast %c1_i32_78 : i32 to vector<1x256xi32>
    %622 = arith.cmpi sge, %17, %621 : vector<1x256xi32>
    %cst_79 = arith.constant 0.000000e+00 : f32
    %623 = vector.shape_cast %622 : vector<1x256xi1> to vector<1x256xi1>
    %624 = vector.broadcast %623 : vector<1x256xi1> to vector<4x256xi1>
    %625 = vector.broadcast %cst_79 : f32 to vector<4x256xf32>
    %626 = arith.select %624, %620, %625 : vector<4x256xi1>, vector<4x256xf32>
    %c3_80 = arith.constant 3 : index
    %c0_81 = arith.constant 0 : index
    %c0_82 = arith.constant 0 : index
    %627 = vector.load %arg4[%c3_80, %c0_81, %c0_82] : memref<9x4x4xf32, #tpu.memory_space<vmem>>, vector<1x4x4xf32>
    %628 = vector.shape_cast %627 : vector<1x4x4xf32> to vector<4x4xf32>
    %629 = vector.extract_strided_slice %628 {offsets = [0, 0], sizes = [4, 1], strides = [1, 1]} : vector<4x4xf32> to vector<4x1xf32>
    %630 = vector.extract_strided_slice %626 {offsets = [0, 0], sizes = [1, 256], strides = [1, 1]} : vector<4x256xf32> to vector<1x256xf32>
    %631 = vector.broadcast %629 : vector<4x1xf32> to vector<4x256xf32>
    %632 = vector.broadcast %630 : vector<1x256xf32> to vector<4x256xf32>
    %633 = arith.mulf %631, %632 : vector<4x256xf32>
    %634 = vector.extract_strided_slice %628 {offsets = [0, 1], sizes = [4, 1], strides = [1, 1]} : vector<4x4xf32> to vector<4x1xf32>
    %635 = vector.extract_strided_slice %626 {offsets = [1, 0], sizes = [1, 256], strides = [1, 1]} : vector<4x256xf32> to vector<1x256xf32>
    %636 = vector.broadcast %634 : vector<4x1xf32> to vector<4x256xf32>
    %637 = vector.broadcast %635 : vector<1x256xf32> to vector<4x256xf32>
    %638 = arith.mulf %636, %637 : vector<4x256xf32>
    %639 = arith.addf %633, %638 : vector<4x256xf32>
    %640 = vector.extract_strided_slice %628 {offsets = [0, 2], sizes = [4, 1], strides = [1, 1]} : vector<4x4xf32> to vector<4x1xf32>
    %641 = vector.extract_strided_slice %626 {offsets = [2, 0], sizes = [1, 256], strides = [1, 1]} : vector<4x256xf32> to vector<1x256xf32>
    %642 = vector.broadcast %640 : vector<4x1xf32> to vector<4x256xf32>
    %643 = vector.broadcast %641 : vector<1x256xf32> to vector<4x256xf32>
    %644 = arith.mulf %642, %643 : vector<4x256xf32>
    %645 = arith.addf %639, %644 : vector<4x256xf32>
    %646 = vector.extract_strided_slice %628 {offsets = [0, 3], sizes = [4, 1], strides = [1, 1]} : vector<4x4xf32> to vector<4x1xf32>
    %647 = vector.extract_strided_slice %626 {offsets = [3, 0], sizes = [1, 256], strides = [1, 1]} : vector<4x256xf32> to vector<1x256xf32>
    %648 = vector.broadcast %646 : vector<4x1xf32> to vector<4x256xf32>
    %649 = vector.broadcast %647 : vector<1x256xf32> to vector<4x256xf32>
    %650 = arith.mulf %648, %649 : vector<4x256xf32>
    %651 = arith.addf %645, %650 : vector<4x256xf32>
    %652 = arith.addf %619, %651 : vector<4x256xf32>
    %c0_83 = arith.constant 0 : index
    %c128_84 = arith.constant 128 : index
    %653 = vector.load %arg13[%c0_83, %c128_84] : memref<4x512xf32, #tpu.memory_space<vmem>>, vector<4x256xf32>
    %c4_85 = arith.constant 4 : index
    %c0_86 = arith.constant 0 : index
    %c0_87 = arith.constant 0 : index
    %654 = vector.load %arg4[%c4_85, %c0_86, %c0_87] : memref<9x4x4xf32, #tpu.memory_space<vmem>>, vector<1x4x4xf32>
    %655 = vector.shape_cast %654 : vector<1x4x4xf32> to vector<4x4xf32>
    %656 = vector.extract_strided_slice %655 {offsets = [0, 0], sizes = [4, 1], strides = [1, 1]} : vector<4x4xf32> to vector<4x1xf32>
    %657 = vector.extract_strided_slice %653 {offsets = [0, 0], sizes = [1, 256], strides = [1, 1]} : vector<4x256xf32> to vector<1x256xf32>
    %658 = vector.broadcast %656 : vector<4x1xf32> to vector<4x256xf32>
    %659 = vector.broadcast %657 : vector<1x256xf32> to vector<4x256xf32>
    %660 = arith.mulf %658, %659 : vector<4x256xf32>
    %661 = vector.extract_strided_slice %655 {offsets = [0, 1], sizes = [4, 1], strides = [1, 1]} : vector<4x4xf32> to vector<4x1xf32>
    %662 = vector.extract_strided_slice %653 {offsets = [1, 0], sizes = [1, 256], strides = [1, 1]} : vector<4x256xf32> to vector<1x256xf32>
    %663 = vector.broadcast %661 : vector<4x1xf32> to vector<4x256xf32>
    %664 = vector.broadcast %662 : vector<1x256xf32> to vector<4x256xf32>
    %665 = arith.mulf %663, %664 : vector<4x256xf32>
    %666 = arith.addf %660, %665 : vector<4x256xf32>
    %667 = vector.extract_strided_slice %655 {offsets = [0, 2], sizes = [4, 1], strides = [1, 1]} : vector<4x4xf32> to vector<4x1xf32>
    %668 = vector.extract_strided_slice %653 {offsets = [2, 0], sizes = [1, 256], strides = [1, 1]} : vector<4x256xf32> to vector<1x256xf32>
    %669 = vector.broadcast %667 : vector<4x1xf32> to vector<4x256xf32>
    %670 = vector.broadcast %668 : vector<1x256xf32> to vector<4x256xf32>
    %671 = arith.mulf %669, %670 : vector<4x256xf32>
    %672 = arith.addf %666, %671 : vector<4x256xf32>
    %673 = vector.extract_strided_slice %655 {offsets = [0, 3], sizes = [4, 1], strides = [1, 1]} : vector<4x4xf32> to vector<4x1xf32>
    %674 = vector.extract_strided_slice %653 {offsets = [3, 0], sizes = [1, 256], strides = [1, 1]} : vector<4x256xf32> to vector<1x256xf32>
    %675 = vector.broadcast %673 : vector<4x1xf32> to vector<4x256xf32>
    %676 = vector.broadcast %674 : vector<1x256xf32> to vector<4x256xf32>
    %677 = arith.mulf %675, %676 : vector<4x256xf32>
    %678 = arith.addf %672, %677 : vector<4x256xf32>
    %679 = arith.addf %652, %678 : vector<4x256xf32>
    %c0_88 = arith.constant 0 : index
    %c129_89 = arith.constant 129 : index
    %680 = vector.load %arg13[%c0_88, %c129_89] : memref<4x512xf32, #tpu.memory_space<vmem>>, vector<4x256xf32>
    %c14_i32_90 = arith.constant 14 : i32
    %681 = vector.broadcast %c14_i32_90 : i32 to vector<1x256xi32>
    %682 = arith.cmpi sle, %17, %681 : vector<1x256xi32>
    %cst_91 = arith.constant 0.000000e+00 : f32
    %683 = vector.shape_cast %682 : vector<1x256xi1> to vector<1x256xi1>
    %684 = vector.broadcast %683 : vector<1x256xi1> to vector<4x256xi1>
    %685 = vector.broadcast %cst_91 : f32 to vector<4x256xf32>
    %686 = arith.select %684, %680, %685 : vector<4x256xi1>, vector<4x256xf32>
    %c5_92 = arith.constant 5 : index
    %c0_93 = arith.constant 0 : index
    %c0_94 = arith.constant 0 : index
    %687 = vector.load %arg4[%c5_92, %c0_93, %c0_94] : memref<9x4x4xf32, #tpu.memory_space<vmem>>, vector<1x4x4xf32>
    %688 = vector.shape_cast %687 : vector<1x4x4xf32> to vector<4x4xf32>
    %689 = vector.extract_strided_slice %688 {offsets = [0, 0], sizes = [4, 1], strides = [1, 1]} : vector<4x4xf32> to vector<4x1xf32>
    %690 = vector.extract_strided_slice %686 {offsets = [0, 0], sizes = [1, 256], strides = [1, 1]} : vector<4x256xf32> to vector<1x256xf32>
    %691 = vector.broadcast %689 : vector<4x1xf32> to vector<4x256xf32>
    %692 = vector.broadcast %690 : vector<1x256xf32> to vector<4x256xf32>
    %693 = arith.mulf %691, %692 : vector<4x256xf32>
    %694 = vector.extract_strided_slice %688 {offsets = [0, 1], sizes = [4, 1], strides = [1, 1]} : vector<4x4xf32> to vector<4x1xf32>
    %695 = vector.extract_strided_slice %686 {offsets = [1, 0], sizes = [1, 256], strides = [1, 1]} : vector<4x256xf32> to vector<1x256xf32>
    %696 = vector.broadcast %694 : vector<4x1xf32> to vector<4x256xf32>
    %697 = vector.broadcast %695 : vector<1x256xf32> to vector<4x256xf32>
    %698 = arith.mulf %696, %697 : vector<4x256xf32>
    %699 = arith.addf %693, %698 : vector<4x256xf32>
    %700 = vector.extract_strided_slice %688 {offsets = [0, 2], sizes = [4, 1], strides = [1, 1]} : vector<4x4xf32> to vector<4x1xf32>
    %701 = vector.extract_strided_slice %686 {offsets = [2, 0], sizes = [1, 256], strides = [1, 1]} : vector<4x256xf32> to vector<1x256xf32>
    %702 = vector.broadcast %700 : vector<4x1xf32> to vector<4x256xf32>
    %703 = vector.broadcast %701 : vector<1x256xf32> to vector<4x256xf32>
    %704 = arith.mulf %702, %703 : vector<4x256xf32>
    %705 = arith.addf %699, %704 : vector<4x256xf32>
    %706 = vector.extract_strided_slice %688 {offsets = [0, 3], sizes = [4, 1], strides = [1, 1]} : vector<4x4xf32> to vector<4x1xf32>
    %707 = vector.extract_strided_slice %686 {offsets = [3, 0], sizes = [1, 256], strides = [1, 1]} : vector<4x256xf32> to vector<1x256xf32>
    %708 = vector.broadcast %706 : vector<4x1xf32> to vector<4x256xf32>
    %709 = vector.broadcast %707 : vector<1x256xf32> to vector<4x256xf32>
    %710 = arith.mulf %708, %709 : vector<4x256xf32>
    %711 = arith.addf %705, %710 : vector<4x256xf32>
    %712 = arith.addf %679, %711 : vector<4x256xf32>
    %c0_95 = arith.constant 0 : index
    %c143_96 = arith.constant 143 : index
    %713 = vector.load %arg13[%c0_95, %c143_96] : memref<4x512xf32, #tpu.memory_space<vmem>>, vector<4x256xf32>
    %c1_i32_97 = arith.constant 1 : i32
    %714 = vector.broadcast %c1_i32_97 : i32 to vector<1x256xi32>
    %715 = arith.cmpi sge, %17, %714 : vector<1x256xi32>
    %cst_98 = arith.constant 0.000000e+00 : f32
    %716 = vector.shape_cast %715 : vector<1x256xi1> to vector<1x256xi1>
    %717 = vector.broadcast %716 : vector<1x256xi1> to vector<4x256xi1>
    %718 = vector.broadcast %cst_98 : f32 to vector<4x256xf32>
    %719 = arith.select %717, %713, %718 : vector<4x256xi1>, vector<4x256xf32>
    %c6_99 = arith.constant 6 : index
    %c0_100 = arith.constant 0 : index
    %c0_101 = arith.constant 0 : index
    %720 = vector.load %arg4[%c6_99, %c0_100, %c0_101] : memref<9x4x4xf32, #tpu.memory_space<vmem>>, vector<1x4x4xf32>
    %721 = vector.shape_cast %720 : vector<1x4x4xf32> to vector<4x4xf32>
    %722 = vector.extract_strided_slice %721 {offsets = [0, 0], sizes = [4, 1], strides = [1, 1]} : vector<4x4xf32> to vector<4x1xf32>
    %723 = vector.extract_strided_slice %719 {offsets = [0, 0], sizes = [1, 256], strides = [1, 1]} : vector<4x256xf32> to vector<1x256xf32>
    %724 = vector.broadcast %722 : vector<4x1xf32> to vector<4x256xf32>
    %725 = vector.broadcast %723 : vector<1x256xf32> to vector<4x256xf32>
    %726 = arith.mulf %724, %725 : vector<4x256xf32>
    %727 = vector.extract_strided_slice %721 {offsets = [0, 1], sizes = [4, 1], strides = [1, 1]} : vector<4x4xf32> to vector<4x1xf32>
    %728 = vector.extract_strided_slice %719 {offsets = [1, 0], sizes = [1, 256], strides = [1, 1]} : vector<4x256xf32> to vector<1x256xf32>
    %729 = vector.broadcast %727 : vector<4x1xf32> to vector<4x256xf32>
    %730 = vector.broadcast %728 : vector<1x256xf32> to vector<4x256xf32>
    %731 = arith.mulf %729, %730 : vector<4x256xf32>
    %732 = arith.addf %726, %731 : vector<4x256xf32>
    %733 = vector.extract_strided_slice %721 {offsets = [0, 2], sizes = [4, 1], strides = [1, 1]} : vector<4x4xf32> to vector<4x1xf32>
    %734 = vector.extract_strided_slice %719 {offsets = [2, 0], sizes = [1, 256], strides = [1, 1]} : vector<4x256xf32> to vector<1x256xf32>
    %735 = vector.broadcast %733 : vector<4x1xf32> to vector<4x256xf32>
    %736 = vector.broadcast %734 : vector<1x256xf32> to vector<4x256xf32>
    %737 = arith.mulf %735, %736 : vector<4x256xf32>
    %738 = arith.addf %732, %737 : vector<4x256xf32>
    %739 = vector.extract_strided_slice %721 {offsets = [0, 3], sizes = [4, 1], strides = [1, 1]} : vector<4x4xf32> to vector<4x1xf32>
    %740 = vector.extract_strided_slice %719 {offsets = [3, 0], sizes = [1, 256], strides = [1, 1]} : vector<4x256xf32> to vector<1x256xf32>
    %741 = vector.broadcast %739 : vector<4x1xf32> to vector<4x256xf32>
    %742 = vector.broadcast %740 : vector<1x256xf32> to vector<4x256xf32>
    %743 = arith.mulf %741, %742 : vector<4x256xf32>
    %744 = arith.addf %738, %743 : vector<4x256xf32>
    %745 = arith.addf %712, %744 : vector<4x256xf32>
    %c0_102 = arith.constant 0 : index
    %c144_103 = arith.constant 144 : index
    %746 = vector.load %arg13[%c0_102, %c144_103] : memref<4x512xf32, #tpu.memory_space<vmem>>, vector<4x256xf32>
    %c7_104 = arith.constant 7 : index
    %c0_105 = arith.constant 0 : index
    %c0_106 = arith.constant 0 : index
    %747 = vector.load %arg4[%c7_104, %c0_105, %c0_106] : memref<9x4x4xf32, #tpu.memory_space<vmem>>, vector<1x4x4xf32>
    %748 = vector.shape_cast %747 : vector<1x4x4xf32> to vector<4x4xf32>
    %749 = vector.extract_strided_slice %748 {offsets = [0, 0], sizes = [4, 1], strides = [1, 1]} : vector<4x4xf32> to vector<4x1xf32>
    %750 = vector.extract_strided_slice %746 {offsets = [0, 0], sizes = [1, 256], strides = [1, 1]} : vector<4x256xf32> to vector<1x256xf32>
    %751 = vector.broadcast %749 : vector<4x1xf32> to vector<4x256xf32>
    %752 = vector.broadcast %750 : vector<1x256xf32> to vector<4x256xf32>
    %753 = arith.mulf %751, %752 : vector<4x256xf32>
    %754 = vector.extract_strided_slice %748 {offsets = [0, 1], sizes = [4, 1], strides = [1, 1]} : vector<4x4xf32> to vector<4x1xf32>
    %755 = vector.extract_strided_slice %746 {offsets = [1, 0], sizes = [1, 256], strides = [1, 1]} : vector<4x256xf32> to vector<1x256xf32>
    %756 = vector.broadcast %754 : vector<4x1xf32> to vector<4x256xf32>
    %757 = vector.broadcast %755 : vector<1x256xf32> to vector<4x256xf32>
    %758 = arith.mulf %756, %757 : vector<4x256xf32>
    %759 = arith.addf %753, %758 : vector<4x256xf32>
    %760 = vector.extract_strided_slice %748 {offsets = [0, 2], sizes = [4, 1], strides = [1, 1]} : vector<4x4xf32> to vector<4x1xf32>
    %761 = vector.extract_strided_slice %746 {offsets = [2, 0], sizes = [1, 256], strides = [1, 1]} : vector<4x256xf32> to vector<1x256xf32>
    %762 = vector.broadcast %760 : vector<4x1xf32> to vector<4x256xf32>
    %763 = vector.broadcast %761 : vector<1x256xf32> to vector<4x256xf32>
    %764 = arith.mulf %762, %763 : vector<4x256xf32>
    %765 = arith.addf %759, %764 : vector<4x256xf32>
    %766 = vector.extract_strided_slice %748 {offsets = [0, 3], sizes = [4, 1], strides = [1, 1]} : vector<4x4xf32> to vector<4x1xf32>
    %767 = vector.extract_strided_slice %746 {offsets = [3, 0], sizes = [1, 256], strides = [1, 1]} : vector<4x256xf32> to vector<1x256xf32>
    %768 = vector.broadcast %766 : vector<4x1xf32> to vector<4x256xf32>
    %769 = vector.broadcast %767 : vector<1x256xf32> to vector<4x256xf32>
    %770 = arith.mulf %768, %769 : vector<4x256xf32>
    %771 = arith.addf %765, %770 : vector<4x256xf32>
    %772 = arith.addf %745, %771 : vector<4x256xf32>
    %c0_107 = arith.constant 0 : index
    %c145_108 = arith.constant 145 : index
    %773 = vector.load %arg13[%c0_107, %c145_108] : memref<4x512xf32, #tpu.memory_space<vmem>>, vector<4x256xf32>
    %c14_i32_109 = arith.constant 14 : i32
    %774 = vector.broadcast %c14_i32_109 : i32 to vector<1x256xi32>
    %775 = arith.cmpi sle, %17, %774 : vector<1x256xi32>
    %cst_110 = arith.constant 0.000000e+00 : f32
    %776 = vector.shape_cast %775 : vector<1x256xi1> to vector<1x256xi1>
    %777 = vector.broadcast %776 : vector<1x256xi1> to vector<4x256xi1>
    %778 = vector.broadcast %cst_110 : f32 to vector<4x256xf32>
    %779 = arith.select %777, %773, %778 : vector<4x256xi1>, vector<4x256xf32>
    %c8_111 = arith.constant 8 : index
    %c0_112 = arith.constant 0 : index
    %c0_113 = arith.constant 0 : index
    %780 = vector.load %arg4[%c8_111, %c0_112, %c0_113] : memref<9x4x4xf32, #tpu.memory_space<vmem>>, vector<1x4x4xf32>
    %781 = vector.shape_cast %780 : vector<1x4x4xf32> to vector<4x4xf32>
    %782 = vector.extract_strided_slice %781 {offsets = [0, 0], sizes = [4, 1], strides = [1, 1]} : vector<4x4xf32> to vector<4x1xf32>
    %783 = vector.extract_strided_slice %779 {offsets = [0, 0], sizes = [1, 256], strides = [1, 1]} : vector<4x256xf32> to vector<1x256xf32>
    %784 = vector.broadcast %782 : vector<4x1xf32> to vector<4x256xf32>
    %785 = vector.broadcast %783 : vector<1x256xf32> to vector<4x256xf32>
    %786 = arith.mulf %784, %785 : vector<4x256xf32>
    %787 = vector.extract_strided_slice %781 {offsets = [0, 1], sizes = [4, 1], strides = [1, 1]} : vector<4x4xf32> to vector<4x1xf32>
    %788 = vector.extract_strided_slice %779 {offsets = [1, 0], sizes = [1, 256], strides = [1, 1]} : vector<4x256xf32> to vector<1x256xf32>
    %789 = vector.broadcast %787 : vector<4x1xf32> to vector<4x256xf32>
    %790 = vector.broadcast %788 : vector<1x256xf32> to vector<4x256xf32>
    %791 = arith.mulf %789, %790 : vector<4x256xf32>
    %792 = arith.addf %786, %791 : vector<4x256xf32>
    %793 = vector.extract_strided_slice %781 {offsets = [0, 2], sizes = [4, 1], strides = [1, 1]} : vector<4x4xf32> to vector<4x1xf32>
    %794 = vector.extract_strided_slice %779 {offsets = [2, 0], sizes = [1, 256], strides = [1, 1]} : vector<4x256xf32> to vector<1x256xf32>
    %795 = vector.broadcast %793 : vector<4x1xf32> to vector<4x256xf32>
    %796 = vector.broadcast %794 : vector<1x256xf32> to vector<4x256xf32>
    %797 = arith.mulf %795, %796 : vector<4x256xf32>
    %798 = arith.addf %792, %797 : vector<4x256xf32>
    %799 = vector.extract_strided_slice %781 {offsets = [0, 3], sizes = [4, 1], strides = [1, 1]} : vector<4x4xf32> to vector<4x1xf32>
    %800 = vector.extract_strided_slice %779 {offsets = [3, 0], sizes = [1, 256], strides = [1, 1]} : vector<4x256xf32> to vector<1x256xf32>
    %801 = vector.broadcast %799 : vector<4x1xf32> to vector<4x256xf32>
    %802 = vector.broadcast %800 : vector<1x256xf32> to vector<4x256xf32>
    %803 = arith.mulf %801, %802 : vector<4x256xf32>
    %804 = arith.addf %798, %803 : vector<4x256xf32>
    %805 = arith.addf %772, %804 : vector<4x256xf32>
    %c0_114 = arith.constant 0 : index
    %c0_115 = arith.constant 0 : index
    %806 = vector.load %arg5[%c0_114, %c0_115] : memref<4x1xf32, #tpu.memory_space<vmem>>, vector<4x1xf32>
    %807 = vector.broadcast %806 : vector<4x1xf32> to vector<4x256xf32>
    %808 = arith.addf %805, %807 : vector<4x256xf32>
    %c0_116 = arith.constant 0 : index
    %c0_117 = arith.constant 0 : index
    %809 = vector.load %arg6[%c0_116, %c0_117] : memref<4x8xf32, #tpu.memory_space<vmem>>, vector<4x8xf32>
    %810 = vector.extract_strided_slice %809 {offsets = [0, 0], sizes = [4, 1], strides = [1, 1]} : vector<4x8xf32> to vector<4x1xf32>
    %811 = vector.extract_strided_slice %19 {offsets = [0, 0], sizes = [1, 256], strides = [1, 1]} : vector<8x256xf32> to vector<1x256xf32>
    %812 = vector.broadcast %810 : vector<4x1xf32> to vector<4x256xf32>
    %813 = vector.broadcast %811 : vector<1x256xf32> to vector<4x256xf32>
    %814 = arith.mulf %812, %813 : vector<4x256xf32>
    %815 = vector.extract_strided_slice %809 {offsets = [0, 1], sizes = [4, 1], strides = [1, 1]} : vector<4x8xf32> to vector<4x1xf32>
    %816 = vector.extract_strided_slice %19 {offsets = [1, 0], sizes = [1, 256], strides = [1, 1]} : vector<8x256xf32> to vector<1x256xf32>
    %817 = vector.broadcast %815 : vector<4x1xf32> to vector<4x256xf32>
    %818 = vector.broadcast %816 : vector<1x256xf32> to vector<4x256xf32>
    %819 = arith.mulf %817, %818 : vector<4x256xf32>
    %820 = arith.addf %814, %819 : vector<4x256xf32>
    %821 = vector.extract_strided_slice %809 {offsets = [0, 2], sizes = [4, 1], strides = [1, 1]} : vector<4x8xf32> to vector<4x1xf32>
    %822 = vector.extract_strided_slice %19 {offsets = [2, 0], sizes = [1, 256], strides = [1, 1]} : vector<8x256xf32> to vector<1x256xf32>
    %823 = vector.broadcast %821 : vector<4x1xf32> to vector<4x256xf32>
    %824 = vector.broadcast %822 : vector<1x256xf32> to vector<4x256xf32>
    %825 = arith.mulf %823, %824 : vector<4x256xf32>
    %826 = arith.addf %820, %825 : vector<4x256xf32>
    %827 = vector.extract_strided_slice %809 {offsets = [0, 3], sizes = [4, 1], strides = [1, 1]} : vector<4x8xf32> to vector<4x1xf32>
    %828 = vector.extract_strided_slice %19 {offsets = [3, 0], sizes = [1, 256], strides = [1, 1]} : vector<8x256xf32> to vector<1x256xf32>
    %829 = vector.broadcast %827 : vector<4x1xf32> to vector<4x256xf32>
    %830 = vector.broadcast %828 : vector<1x256xf32> to vector<4x256xf32>
    %831 = arith.mulf %829, %830 : vector<4x256xf32>
    %832 = arith.addf %826, %831 : vector<4x256xf32>
    %833 = vector.extract_strided_slice %809 {offsets = [0, 4], sizes = [4, 1], strides = [1, 1]} : vector<4x8xf32> to vector<4x1xf32>
    %834 = vector.extract_strided_slice %19 {offsets = [4, 0], sizes = [1, 256], strides = [1, 1]} : vector<8x256xf32> to vector<1x256xf32>
    %835 = vector.broadcast %833 : vector<4x1xf32> to vector<4x256xf32>
    %836 = vector.broadcast %834 : vector<1x256xf32> to vector<4x256xf32>
    %837 = arith.mulf %835, %836 : vector<4x256xf32>
    %838 = arith.addf %832, %837 : vector<4x256xf32>
    %839 = vector.extract_strided_slice %809 {offsets = [0, 5], sizes = [4, 1], strides = [1, 1]} : vector<4x8xf32> to vector<4x1xf32>
    %840 = vector.extract_strided_slice %19 {offsets = [5, 0], sizes = [1, 256], strides = [1, 1]} : vector<8x256xf32> to vector<1x256xf32>
    %841 = vector.broadcast %839 : vector<4x1xf32> to vector<4x256xf32>
    %842 = vector.broadcast %840 : vector<1x256xf32> to vector<4x256xf32>
    %843 = arith.mulf %841, %842 : vector<4x256xf32>
    %844 = arith.addf %838, %843 : vector<4x256xf32>
    %845 = vector.extract_strided_slice %809 {offsets = [0, 6], sizes = [4, 1], strides = [1, 1]} : vector<4x8xf32> to vector<4x1xf32>
    %846 = vector.extract_strided_slice %19 {offsets = [6, 0], sizes = [1, 256], strides = [1, 1]} : vector<8x256xf32> to vector<1x256xf32>
    %847 = vector.broadcast %845 : vector<4x1xf32> to vector<4x256xf32>
    %848 = vector.broadcast %846 : vector<1x256xf32> to vector<4x256xf32>
    %849 = arith.mulf %847, %848 : vector<4x256xf32>
    %850 = arith.addf %844, %849 : vector<4x256xf32>
    %851 = vector.extract_strided_slice %809 {offsets = [0, 7], sizes = [4, 1], strides = [1, 1]} : vector<4x8xf32> to vector<4x1xf32>
    %852 = vector.extract_strided_slice %19 {offsets = [7, 0], sizes = [1, 256], strides = [1, 1]} : vector<8x256xf32> to vector<1x256xf32>
    %853 = vector.broadcast %851 : vector<4x1xf32> to vector<4x256xf32>
    %854 = vector.broadcast %852 : vector<1x256xf32> to vector<4x256xf32>
    %855 = arith.mulf %853, %854 : vector<4x256xf32>
    %856 = arith.addf %850, %855 : vector<4x256xf32>
    %c0_118 = arith.constant 0 : index
    %c0_119 = arith.constant 0 : index
    %857 = vector.load %arg7[%c0_118, %c0_119] : memref<4x1xf32, #tpu.memory_space<vmem>>, vector<4x1xf32>
    %858 = vector.broadcast %857 : vector<4x1xf32> to vector<4x256xf32>
    %859 = arith.addf %856, %858 : vector<4x256xf32>
    %c0_120 = arith.constant 0 : index
    %c0_121 = arith.constant 0 : index
    %860 = vector.load %arg8[%c0_120, %c0_121] : memref<4x1xf32, #tpu.memory_space<vmem>>, vector<4x1xf32>
    %861 = arith.addf %808, %859 : vector<4x256xf32>
    %862 = vector.broadcast %860 : vector<4x1xf32> to vector<4x256xf32>
    %863 = arith.mulf %862, %861 : vector<4x256xf32>
    %c0_122 = arith.constant 0 : index
    %c0_123 = arith.constant 0 : index
    %864 = vector.load %arg9[%c0_122, %c0_123] : memref<4x1xf32, #tpu.memory_space<vmem>>, vector<4x1xf32>
    %865 = vector.broadcast %864 : vector<4x1xf32> to vector<4x256xf32>
    %866 = arith.addf %863, %865 : vector<4x256xf32>
    %cst_124 = arith.constant 0.000000e+00 : f32
    %867 = vector.broadcast %cst_124 : f32 to vector<4x256xf32>
    %868 = arith.cmpf oge, %866, %867 : vector<4x256xf32>
    %869 = vector.broadcast %0 : f32 to vector<4x256xf32>
    %870 = arith.mulf %869, %866 : vector<4x256xf32>
    %871 = arith.select %868, %866, %870 : vector<4x256xi1>, vector<4x256xf32>
    %c0_125 = arith.constant 0 : index
    %c0_126 = arith.constant 0 : index
    %c0_127 = arith.constant 0 : index
    %872 = vector.load %arg11[%c0_125, %c0_126, %c0_127] : memref<1x4x256xf32, #tpu.memory_space<vmem>>, vector<1x4x256xf32>
    %873 = vector.shape_cast %872 : vector<1x4x256xf32> to vector<4x256xf32>
    %874 = vector.shape_cast %871 : vector<4x256xf32> to vector<1x4x256xf32>
    tpu.vector_store %arg11[%c0_125, %c0_126, %c0_127], %874 {strides = array<i32>} : memref<1x4x256xf32, #tpu.memory_space<vmem>>, vector<1x4x256xf32>,
    return
  }
  func.func @transform_0(%arg0: i32) -> (i32, i32, i32) {
    %c0_i32 = arith.constant 0 : i32
    %c0_i32_0 = arith.constant 0 : i32
    %c0_i32_1 = arith.constant 0 : i32
    return %arg0, %c0_i32, %c0_i32_0 : i32, i32, i32
  }
  func.func @transform_1(%arg0: i32) -> (i32, i32, i32) {
    %c0_i32 = arith.constant 0 : i32
    %c0_i32_0 = arith.constant 0 : i32
    %c0_i32_1 = arith.constant 0 : i32
    %c0_i32_2 = arith.constant 0 : i32
    return %c0_i32, %c0_i32_0, %c0_i32_1 : i32, i32, i32
  }
  func.func @transform_2(%arg0: i32) -> (i32, i32) {
    %c0_i32 = arith.constant 0 : i32
    %c0_i32_0 = arith.constant 0 : i32
    %c0_i32_1 = arith.constant 0 : i32
    return %c0_i32, %c0_i32_0 : i32, i32
  }
  func.func @transform_3(%arg0: i32) -> (i32, i32, i32) {
    %c0_i32 = arith.constant 0 : i32
    %c0_i32_0 = arith.constant 0 : i32
    %c0_i32_1 = arith.constant 0 : i32
    %c0_i32_2 = arith.constant 0 : i32
    return %c0_i32, %c0_i32_0, %c0_i32_1 : i32, i32, i32
  }
  func.func @transform_4(%arg0: i32) -> (i32, i32) {
    %c0_i32 = arith.constant 0 : i32
    %c0_i32_0 = arith.constant 0 : i32
    %c0_i32_1 = arith.constant 0 : i32
    return %c0_i32, %c0_i32_0 : i32, i32
  }
  func.func @transform_5(%arg0: i32) -> (i32, i32) {
    %c0_i32 = arith.constant 0 : i32
    %c0_i32_0 = arith.constant 0 : i32
    %c0_i32_1 = arith.constant 0 : i32
    return %c0_i32, %c0_i32_0 : i32, i32
  }
  func.func @transform_6(%arg0: i32) -> (i32, i32) {
    %c0_i32 = arith.constant 0 : i32
    %c0_i32_0 = arith.constant 0 : i32
    %c0_i32_1 = arith.constant 0 : i32
    return %c0_i32, %c0_i32_0 : i32, i32
  }
  func.func @transform_7(%arg0: i32) -> (i32, i32) {
    %c0_i32 = arith.constant 0 : i32
    %c0_i32_0 = arith.constant 0 : i32
    %c0_i32_1 = arith.constant 0 : i32
    return %c0_i32, %c0_i32_0 : i32, i32
  }
  func.func @transform_8(%arg0: i32) -> (i32, i32) {
    %c0_i32 = arith.constant 0 : i32
    %c0_i32_0 = arith.constant 0 : i32
    %c0_i32_1 = arith.constant 0 : i32
    return %c0_i32, %c0_i32_0 : i32, i32
  }
  func.func @transform_9(%arg0: i32) -> i32 {
    %c0_i32 = arith.constant 0 : i32
    %c0_i32_0 = arith.constant 0 : i32
    return %c0_i32 : i32
  }
  func.func @transform_10(%arg0: i32) -> (i32, i32, i32) {
    %c0_i32 = arith.constant 0 : i32
    %c0_i32_0 = arith.constant 0 : i32
    %c0_i32_1 = arith.constant 0 : i32
    return %arg0, %c0_i32, %c0_i32_0 : i32, i32, i32
  }
}

</mosaic_0001>

<llo_original>
// kernel: decoder_block_forward.1
$region0: #{decoder_block_forward.1}
  #allocation0 [shape = 'u32[]', space=smem, size = 0x4, offset = 0x4, fixed_abs, tag = 'smem constant byte address 0x4 - core index']
  #allocation1 [shape = 'u32[144,128]{1,0:T(1,128)}', space=vmem, size = 0x12000, scoped, tag = 'internal scratch']
  #allocation2 [shape = 'f32[8,512]{1,0:T(8,128)}', space=vmem, size = 0x4000, scoped, tag = 'scratch operand']
  #allocation3 [shape = 'f32[4,512]{1,0:T(4,128)}', space=vmem, size = 0x2000, scoped, tag = 'scratch operand']
  #allocation4 [shape = 'f32[1]{0:T(128)S(6)}', space=smem, size = 0x200, scoped, tag = 'scoped memory for decoder_block_forward.1']
  %s0 = inlined_call_operand.vmem [shape: f32[2,8,256], index: 0, kind: input, shape index: {}]
  %s1 = inlined_call_operand.vmem [shape: f32[9,4,8], index: 1, kind: input, shape index: {}]
  %s2 = inlined_call_operand.vmem [shape: f32[4,1], index: 2, kind: input, shape index: {}]
  %s3 = inlined_call_operand.vmem [shape: f32[9,4,4], index: 3, kind: input, shape index: {}]
  %s4 = inlined_call_operand.vmem [shape: f32[4,1], index: 4, kind: input, shape index: {}]
  %s5 = inlined_call_operand.vmem [shape: f32[4,8], index: 5, kind: input, shape index: {}]
  %s6 = inlined_call_operand.vmem [shape: f32[4,1], index: 6, kind: input, shape index: {}]
  %s7 = inlined_call_operand.vmem [shape: f32[4,1], index: 7, kind: input, shape index: {}]
  %s8 = inlined_call_operand.vmem [shape: f32[4,1], index: 8, kind: input, shape index: {}]
  %s9 = inlined_call_operand.<no memory space> [shape: f32[1], index: 9, kind: input, shape index: {}]
  %s10 = inlined_call_operand.vmem [shape: f32[2,4,256], index: 10, kind: output, shape index: {}]
  %s11 = sld [smem:[#allocation0]]
  $region73: #{decoder_block_forward.1} parent=0
    _
  %s13 = ssub.s32 1, %s11
  %s14 = scalar_select 0, %s13, %s11
  %15 = sst [smem:[#allocation4]] %s9
  loop: start=0, step=1, limit=4
  $region2: #{decoder_block_forward.1} parent=0 // loop_pre_header
    _
  $region3: #{decoder_block_forward.1} parent=0 // loop_header
    %s17 = sphi 0, %s21
    %p18 = scmp.ge.s32.totalorder %s17, 4
    %s27 = sphi 0, %s29
    %s30 = sphi 0, %s27
    %s31 = sphi 0, %s30
    %s47 = sphi 0, %s31
    %s51 = sphi 0, %s51
    %s53 = sphi 0, %s51
    %s54 = sphi 0, %s53
    %s68 = sphi 0, %s54
    %s72 = sphi 0, %s72
    %s74 = sphi 0, %s72
    %s75 = sphi 0, %s74
    %s89 = sphi 0, %s75
    %s93 = sphi 0, %s93
    %s95 = sphi 0, %s93
    %s96 = sphi 0, %s95
    %s110 = sphi 0, %s96
    %s114 = sphi 0, %s114
    %s116 = sphi 0, %s114
    %s117 = sphi 0, %s116
    %s131 = sphi 0, %s117
    %s135 = sphi 0, %s135
    %s137 = sphi 0, %s135
    %s138 = sphi 0, %s137
    %s152 = sphi 0, %s138
    %s156 = sphi 0, %s156
    %s158 = sphi 0, %s156
    %s159 = sphi 0, %s158
    %s173 = sphi 0, %s159
    %s177 = sphi 0, %s177
    %s179 = sphi 0, %s177
    %s180 = sphi 0, %s179
    %s194 = sphi 0, %s180
    %s198 = sphi 0, %s198
    %s200 = sphi 0, %s198
    %s201 = sphi 0, %s200
    %s215 = sphi 0, %s201
    %s219 = sphi 0, %s219
    %s221 = sphi 0, %s219
    %s222 = sphi 0, %s221
    %s236 = sphi 0, %s222
    %s242 = sphi 0, %s244
    %s245 = sphi 0, %s242
    %s246 = sphi 0, %s245
    %s262 = sphi 0, %s246
  $region4: #{decoder_block_forward.1} parent=0 // loop_header_branch
    %20 = sbr.rel (%p18) target = $region8
  $region5: #{decoder_block_forward.1} parent=0 // loop_body
    %s22 = ssub.s32 %s17, 1
    %s23 = ssub.s32 %s17, 2
    %s24 = sadd.s32 %s17, 1
    %s25 = ssub.s32 %s17, %s24
    %p26 = scmp.eq.s32.totalorder %s25, 0
    %s28 = sadd.s32 %s27, 1
    %s29 = scalar_select %p26, %s27, %s28
    %p32 = pneg %p26
    %p33 = scmp.eq.s32.totalorder %s17, 1
    %p34 = por %p32, %p33
    %p35 = scmp.ne.s32.totalorder %s27, %s30
    %p36 = scmp.eq.s32.totalorder %s17, 0
    %p37 = por %p35, %p36
    %p38 = scmp.ne.s32.totalorder %s27, %s30
    %p39 = scmp.eq.s32.totalorder %s22, 1
    %p40 = por %p38, %p39
    %p41 = scmp.ne.s32.totalorder %s30, %s31
    %p42 = scmp.eq.s32.totalorder %s22, 0
    %p43 = por %p41, %p42
    %p44 = scmp.ne.s32.totalorder %s30, %s31
    %p45 = scmp.eq.s32.totalorder %s23, 1
    %p46 = por %p44, %p45
    %p48 = scmp.ne.s32.totalorder %s31, %s47
    %p49 = scmp.eq.s32.totalorder %s23, 0
    %p50 = por %p48, %p49
    %s52 = sadd.s32 %s51, 1
    %p55 = scmp.eq.s32.totalorder %s17, 1
    %p56 = scmp.ne.s32.totalorder %s51, %s53
    %p57 = scmp.eq.s32.totalorder %s17, 0
    %p58 = por %p56, %p57
    %p59 = scmp.ne.s32.totalorder %s51, %s53
    %p60 = scmp.eq.s32.totalorder %s22, 1
    %p61 = por %p59, %p60
    %p62 = scmp.ne.s32.totalorder %s53, %s54
    %p63 = scmp.eq.s32.totalorder %s22, 0
    %p64 = por %p62, %p63
    %p65 = scmp.ne.s32.totalorder %s53, %s54
    %p66 = scmp.eq.s32.totalorder %s23, 1
    %p67 = por %p65, %p66
    %p69 = scmp.ne.s32.totalorder %s54, %s68
    %p70 = scmp.eq.s32.totalorder %s23, 0
    %p71 = por %p69, %p70
    %s73 = sadd.s32 %s72, 1
    %p76 = scmp.eq.s32.totalorder %s17, 1
    %p77 = scmp.ne.s32.totalorder %s72, %s74
    %p78 = scmp.eq.s32.totalorder %s17, 0
    %p79 = por %p77, %p78
    %p80 = scmp.ne.s32.totalorder %s72, %s74
    %p81 = scmp.eq.s32.totalorder %s22, 1
    %p82 = por %p80, %p81
    %p83 = scmp.ne.s32.totalorder %s74, %s75
    %p84 = scmp.eq.s32.totalorder %s22, 0
    %p85 = por %p83, %p84
    %p86 = scmp.ne.s32.totalorder %s74, %s75
    %p87 = scmp.eq.s32.totalorder %s23, 1
    %p88 = por %p86, %p87
    %p90 = scmp.ne.s32.totalorder %s75, %s89
    %p91 = scmp.eq.s32.totalorder %s23, 0
    %p92 = por %p90, %p91
    %s94 = sadd.s32 %s93, 1
    %p97 = scmp.eq.s32.totalorder %s17, 1
    %p98 = scmp.ne.s32.totalorder %s93, %s95
    %p99 = scmp.eq.s32.totalorder %s17, 0
    %p100 = por %p98, %p99
    %p101 = scmp.ne.s32.totalorder %s93, %s95
    %p102 = scmp.eq.s32.totalorder %s22, 1
    %p103 = por %p101, %p102
    %p104 = scmp.ne.s32.totalorder %s95, %s96
    %p105 = scmp.eq.s32.totalorder %s22, 0
    %p106 = por %p104, %p105
    %p107 = scmp.ne.s32.totalorder %s95, %s96
    %p108 = scmp.eq.s32.totalorder %s23, 1
    %p109 = por %p107, %p108
    %p111 = scmp.ne.s32.totalorder %s96, %s110
    %p112 = scmp.eq.s32.totalorder %s23, 0
    %p113 = por %p111, %p112
    %s115 = sadd.s32 %s114, 1
    %p118 = scmp.eq.s32.totalorder %s17, 1
    %p119 = scmp.ne.s32.totalorder %s114, %s116
    %p120 = scmp.eq.s32.totalorder %s17, 0
    %p121 = por %p119, %p120
    %p122 = scmp.ne.s32.totalorder %s114, %s116
    %p123 = scmp.eq.s32.totalorder %s22, 1
    %p124 = por %p122, %p123
    %p125 = scmp.ne.s32.totalorder %s116, %s117
    %p126 = scmp.eq.s32.totalorder %s22, 0
    %p127 = por %p125, %p126
    %p128 = scmp.ne.s32.totalorder %s116, %s117
    %p129 = scmp.eq.s32.totalorder %s23, 1
    %p130 = por %p128, %p129
    %p132 = scmp.ne.s32.totalorder %s117, %s131
    %p133 = scmp.eq.s32.totalorder %s23, 0
    %p134 = por %p132, %p133
    %s136 = sadd.s32 %s135, 1
    %p139 = scmp.eq.s32.totalorder %s17, 1
    %p140 = scmp.ne.s32.totalorder %s135, %s137
    %p141 = scmp.eq.s32.totalorder %s17, 0
    %p142 = por %p140, %p141
    %p143 = scmp.ne.s32.totalorder %s135, %s137
    %p144 = scmp.eq.s32.totalorder %s22, 1
    %p145 = por %p143, %p144
    %p146 = scmp.ne.s32.totalorder %s137, %s138
    %p147 = scmp.eq.s32.totalorder %s22, 0
    %p148 = por %p146, %p147
    %p149 = scmp.ne.s32.totalorder %s137, %s138
    %p150 = scmp.eq.s32.totalorder %s23, 1
    %p151 = por %p149, %p150
    %p153 = scmp.ne.s32.totalorder %s138, %s152
    %p154 = scmp.eq.s32.totalorder %s23, 0
    %p155 = por %p153, %p154
    %s157 = sadd.s32 %s156, 1
    %p160 = scmp.eq.s32.totalorder %s17, 1
    %p161 = scmp.ne.s32.totalorder %s156, %s158
    %p162 = scmp.eq.s32.totalorder %s17, 0
    %p163 = por %p161, %p162
    %p164 = scmp.ne.s32.totalorder %s156, %s158
    %p165 = scmp.eq.s32.totalorder %s22, 1
    %p166 = por %p164, %p165
    %p167 = scmp.ne.s32.totalorder %s158, %s159
    %p168 = scmp.eq.s32.totalorder %s22, 0
    %p169 = por %p167, %p168
    %p170 = scmp.ne.s32.totalorder %s158, %s159
    %p171 = scmp.eq.s32.totalorder %s23, 1
    %p172 = por %p170, %p171
    %p174 = scmp.ne.s32.totalorder %s159, %s173
    %p175 = scmp.eq.s32.totalorder %s23, 0
    %p176 = por %p174, %p175
    %s178 = sadd.s32 %s177, 1
    %p181 = scmp.eq.s32.totalorder %s17, 1
    %p182 = scmp.ne.s32.totalorder %s177, %s179
    %p183 = scmp.eq.s32.totalorder %s17, 0
    %p184 = por %p182, %p183
    %p185 = scmp.ne.s32.totalorder %s177, %s179
    %p186 = scmp.eq.s32.totalorder %s22, 1
    %p187 = por %p185, %p186
    %p188 = scmp.ne.s32.totalorder %s179, %s180
    %p189 = scmp.eq.s32.totalorder %s22, 0
    %p190 = por %p188, %p189
    %p191 = scmp.ne.s32.totalorder %s179, %s180
    %p192 = scmp.eq.s32.totalorder %s23, 1
    %p193 = por %p191, %p192
    %p195 = scmp.ne.s32.totalorder %s180, %s194
    %p196 = scmp.eq.s32.totalorder %s23, 0
    %p197 = por %p195, %p196
    %s199 = sadd.s32 %s198, 1
    %p202 = scmp.eq.s32.totalorder %s17, 1
    %p203 = scmp.ne.s32.totalorder %s198, %s200
    %p204 = scmp.eq.s32.totalorder %s17, 0
    %p205 = por %p203, %p204
    %p206 = scmp.ne.s32.totalorder %s198, %s200
    %p207 = scmp.eq.s32.totalorder %s22, 1
    %p208 = por %p206, %p207
    %p209 = scmp.ne.s32.totalorder %s200, %s201
    %p210 = scmp.eq.s32.totalorder %s22, 0
    %p211 = por %p209, %p210
    %p212 = scmp.ne.s32.totalorder %s200, %s201
    %p213 = scmp.eq.s32.totalorder %s23, 1
    %p214 = por %p212, %p213
    %p216 = scmp.ne.s32.totalorder %s201, %s215
    %p217 = scmp.eq.s32.totalorder %s23, 0
    %p218 = por %p216, %p217
    %s220 = sadd.s32 %s219, 1
    %p223 = scmp.eq.s32.totalorder %s17, 1
    %p224 = scmp.ne.s32.totalorder %s219, %s221
    %p225 = scmp.eq.s32.totalorder %s17, 0
    %p226 = por %p224, %p225
    %p227 = scmp.ne.s32.totalorder %s219, %s221
    %p228 = scmp.eq.s32.totalorder %s22, 1
    %p229 = por %p227, %p228
    %p230 = scmp.ne.s32.totalorder %s221, %s222
    %p231 = scmp.eq.s32.totalorder %s22, 0
    %p232 = por %p230, %p231
    %p233 = scmp.ne.s32.totalorder %s221, %s222
    %p234 = scmp.eq.s32.totalorder %s23, 1
    %p235 = por %p233, %p234
    %p237 = scmp.ne.s32.totalorder %s222, %s236
    %p238 = scmp.eq.s32.totalorder %s23, 0
    %p239 = por %p237, %p238
    %s240 = ssub.s32 %s17, %s24
    %p241 = scmp.eq.s32.totalorder %s240, 0
    %s243 = sadd.s32 %s242, 1
    %s244 = scalar_select %p241, %s242, %s243
    %p247 = pneg %p241
    %p248 = scmp.eq.s32.totalorder %s17, 1
    %p249 = por %p247, %p248
    %p250 = scmp.ne.s32.totalorder %s242, %s245
    %p251 = scmp.eq.s32.totalorder %s17, 0
    %p252 = por %p250, %p251
    %p253 = scmp.ne.s32.totalorder %s242, %s245
    %p254 = scmp.eq.s32.totalorder %s22, 1
    %p255 = por %p253, %p254
    %p256 = scmp.ne.s32.totalorder %s245, %s246
    %p257 = scmp.eq.s32.totalorder %s22, 0
    %p258 = por %p256, %p257
    %p259 = scmp.ne.s32.totalorder %s245, %s246
    %p260 = scmp.eq.s32.totalorder %s23, 1
    %p261 = por %p259, %p260
    %p263 = scmp.ne.s32.totalorder %s246, %s262
    %p264 = scmp.eq.s32.totalorder %s23, 0
    %p265 = por %p263, %p264
    %p266 = scmp.le.s32.totalorder 1, %s17
    %p267 = scmp.lt.s32.totalorder %s17, 3
    %p268 = pnand %p266, %p267
    %p269 = pneg %p268
    // Predicated region
    $region9: #{decoder_block_forward.1} parent=5 // pred_check
      _
    $region10: #{decoder_block_forward.1} parent=5 // pred_check_branch
      %271 = sbr.rel (%p268) target = $region12
    $region11: #{decoder_block_forward.1} parent=5 // pred_region
      %s272 = ssub.s32 %s17, 1
      // Predicated region
      $region13: #{decoder_block_forward.1} parent=11 // pred_check
        %p273 = pneg %p64
      $region14: #{decoder_block_forward.1} parent=11 // pred_check_branch
        %275 = sbr.rel (%p273) target = $region16
      $region15: #{decoder_block_forward.1} parent=11 // pred_region
        _
      $region16: #{decoder_block_forward.1} parent=11 // pred_fallthru
        _
      // Predicated region
      $region17: #{decoder_block_forward.1} parent=11 // pred_check
        %p276 = pneg %p85
      $region18: #{decoder_block_forward.1} parent=11 // pred_check_branch
        %278 = sbr.rel (%p276) target = $region20
      $region19: #{decoder_block_forward.1} parent=11 // pred_region
        _
      $region20: #{decoder_block_forward.1} parent=11 // pred_fallthru
        _
      // Predicated region
      $region21: #{decoder_block_forward.1} parent=11 // pred_check
        %p279 = pneg %p106
      $region22: #{decoder_block_forward.1} parent=11 // pred_check_branch
        %281 = sbr.rel (%p279) target = $region24
      $region23: #{decoder_block_forward.1} parent=11 // pred_region
        _
      $region24: #{decoder_block_forward.1} parent=11 // pred_fallthru
        _
      // Predicated region
      $region25: #{decoder_block_forward.1} parent=11 // pred_check
        %p282 = pneg %p127
      $region26: #{decoder_block_forward.1} parent=11 // pred_check_branch
        %284 = sbr.rel (%p282) target = $region28
      $region27: #{decoder_block_forward.1} parent=11 // pred_region
        _
      $region28: #{decoder_block_forward.1} parent=11 // pred_fallthru
        _
      // Predicated region
      $region29: #{decoder_block_forward.1} parent=11 // pred_check
        %p285 = pneg %p148
      $region30: #{decoder_block_forward.1} parent=11 // pred_check_branch
        %287 = sbr.rel (%p285) target = $region32
      $region31: #{decoder_block_forward.1} parent=11 // pred_region
        _
      $region32: #{decoder_block_forward.1} parent=11 // pred_fallthru
        _
      // Predicated region
      $region33: #{decoder_block_forward.1} parent=11 // pred_check
        %p288 = pneg %p169
      $region34: #{decoder_block_forward.1} parent=11 // pred_check_branch
        %290 = sbr.rel (%p288) target = $region36
      $region35: #{decoder_block_forward.1} parent=11 // pred_region
        _
      $region36: #{decoder_block_forward.1} parent=11 // pred_fallthru
        _
      // Predicated region
      $region37: #{decoder_block_forward.1} parent=11 // pred_check
        %p291 = pneg %p190
      $region38: #{decoder_block_forward.1} parent=11 // pred_check_branch
        %293 = sbr.rel (%p291) target = $region40
      $region39: #{decoder_block_forward.1} parent=11 // pred_region
        _
      $region40: #{decoder_block_forward.1} parent=11 // pred_fallthru
        _
      // Predicated region
      $region41: #{decoder_block_forward.1} parent=11 // pred_check
        %p294 = pneg %p211
      $region42: #{decoder_block_forward.1} parent=11 // pred_check_branch
        %296 = sbr.rel (%p294) target = $region44
      $region43: #{decoder_block_forward.1} parent=11 // pred_region
        _
      $region44: #{decoder_block_forward.1} parent=11 // pred_fallthru
        _
      // Predicated region
      $region45: #{decoder_block_forward.1} parent=11 // pred_check
        %p297 = pneg %p232
      $region46: #{decoder_block_forward.1} parent=11 // pred_check_branch
        %299 = sbr.rel (%p297) target = $region48
      $region47: #{decoder_block_forward.1} parent=11 // pred_region
        _
      $region48: #{decoder_block_forward.1} parent=11 // pred_fallthru
        _
    $region12: #{decoder_block_forward.1} parent=5 // pred_fallthru
      _
    %p300 = scmp.lt.s32.totalorder %s17, 2
    // Predicated region
    $region49: #{decoder_block_forward.1} parent=5 // pred_check
      %p301 = pneg %p300
    $region50: #{decoder_block_forward.1} parent=5 // pred_check_branch
      %303 = sbr.rel (%p301) target = $region52
    $region51: #{decoder_block_forward.1} parent=5 // pred_region
      // Predicated region
      $region53: #{decoder_block_forward.1} parent=51 // pred_check
        %p304 = pneg %p37
      $region54: #{decoder_block_forward.1} parent=51 // pred_check_branch
        %306 = sbr.rel (%p304) target = $region56
      $region55: #{decoder_block_forward.1} parent=51 // pred_region
        %p307 = scmp.lt.s32.totalorder %s17, 1
        %s308 = scalar_select %p307, %s17, 1
        %s309 = smul.addr %s308, 2
        %s310 = smul.addr %s309, 8
        %s311 = scalar_lea.vmem %s0, %s310
      $region56: #{decoder_block_forward.1} parent=51 // pred_fallthru
        _
    $region52: #{decoder_block_forward.1} parent=5 // pred_fallthru
      _
    %p312 = scmp.le.s32.totalorder 1, %s17
    %p313 = scmp.lt.s32.totalorder %s17, 3
    %p314 = pnand %p312, %p313
    %p315 = pneg %p314
    // Predicated region
    $region57: #{decoder_block_forward.1} parent=5 // pred_check
      _
    $region58: #{decoder_block_forward.1} parent=5 // pred_check_branch
      %317 = sbr.rel (%p314) target = $region60
    $region59: #{decoder_block_forward.1} parent=5 // pred_region
      %s318 = ssub.s32 %s17, 1
      %p319 = scmp.lt.s32.totalorder %s22, 1
      %s320 = scalar_select %p319, %s22, 1
      %s321 = smul.addr %s320, 2
      %s322 = smul.addr %s321, 8
      %s323 = scalar_lea.vmem %s0, %s322
      %p324 = pneg %p43
      %p325 = pneg %p40
      %p326 = pneg %p64
      %p327 = pneg %p61
      %p328 = pneg %p85
      %p329 = pneg %p82
      %p330 = pneg %p106
      %p331 = pneg %p103
      %p332 = pneg %p127
      %p333 = pneg %p124
      %p334 = pneg %p148
      %p335 = pneg %p145
      %p336 = pneg %p169
      %p337 = pneg %p166
      %p338 = pneg %p190
      %p339 = pneg %p187
      %p340 = pneg %p211
      %p341 = pneg %p208
      %p342 = pneg %p232
      %p343 = pneg %p229
      %p344 = pneg %p258
      %p345 = pneg %p255
      %p346 = scmp.lt.s32.totalorder %s22, 1
      %s347 = scalar_select %p346, %s22, 1
      %s348 = smul.addr %s347, 2
      %s349 = smul.addr %s348, 4
      %s350 = scalar_lea.vmem %s10, %s349
      %p351 = scmp.lt.s32.totalorder %s22, 1
      %s352 = scalar_select %p351, %s22, 1
      %s353 = smul.addr %s352, 2
      %s354 = smul.addr %s353, 8
      %s355 = scalar_lea.vmem %s0, %s354
      %p356 = scmp.lt.s32.totalorder %s22, 1
      %s357 = scalar_select %p356, %s22, 1
      %s358 = smul.addr %s357, 2
      %s359 = smul.addr %s358, 4
      %s360 = scalar_lea.vmem %s10, %s359
      %s361 = sld [smem:[#allocation4]]
      %v362 = vlaneseq
      %v363 = vand.u32 %v362, 127
      %v364 = vadd.s32 %v363, 128
      %vm365 = vcmp.lt.s32.totalorder %v363, 0
      %v366 = vsub.s32 0, %v363
      %v367 = vsel %vm365, %v366, %v363
      %v368 = vshrl.u32 %v367, 4
      %v369 = vand.u32 %v367, 15
      %v370 = vsub.s32 0, %v369
      %v371 = vsel %vm365, %v370, %v369
      %vm372 = vcmp.lt.s32.totalorder %v364, 0
      %v373 = vsub.s32 0, %v364
      %v374 = vsel %vm372, %v373, %v364
      %v375 = vshrl.u32 %v374, 4
      %v376 = vand.u32 %v374, 15
      %v377 = vsub.s32 0, %v376
      %v378 = vsel %vm372, %v377, %v376
      %vm379 = vcmp.ne.s32.totalorder %v371, 0
      %vm380 = vcmp.ne.s32.totalorder %v378, 0
      %vm381 = vcmp.lt.s32.totalorder %v371, 0
      %vm382 = vcmp.lt.s32.totalorder %v378, 0
      %vm383 = vmand %vm381, %vm379
      %vm384 = vmand %vm382, %vm380
      %v385 = vadd.s32 %v371, 16
      %v386 = vadd.s32 %v378, 16
      %v387 = vsel %vm383, %v385, %v371
      %v388 = vsel %vm384, %v386, %v378
      %v389 = vld [vmem:[%s355] sm:$0xff]
      %v390 = vld [vmem:[%s355 + $0x8] sm:$0xff]
      %391 = vst [vmem:[#allocation2] sm:$0xff] 0.0
      %392 = vst [vmem:[#allocation2 + $0x8] sm:$0xff] 0.0
      %393 = vst [vmem:[#allocation2 + $0x10] sm:$0xff] 0.0
      %394 = vst [vmem:[#allocation2 + $0x18] sm:$0xff] 0.0
      %395 = vst [vmem:[#allocation2 + $0x8] sm:$0xff] %v389
      %396 = vst [vmem:[#allocation2 + $0x10] sm:$0xff] %v390
      %v397 = vld [vmem:[#allocation2] sm:$0xff]
      %v398 = vld [vmem:[#allocation2 + $0x8] sm:$0xff]
      %v399 = vld [vmem:[#allocation2 + $0x10] sm:$0xff]
      %vm400 = vcmp.ge.s32.totalorder %v387, 1
      %vm401 = vcmp.ge.s32.totalorder %v388, 1
      %v402 = vsel %vm400, 1, 0
      %v403 = vsel %vm401, 1, 0
      %vm404 = vcmp.eq.s32.totalorder %v402, 1
      %vm405 = vcmp.eq.s32.totalorder %v403, 1
      %409 = vrot.lane.b32.xlu0 %v397, 17
      %v410 = vpop.permute.xlu0 %409
      %411 = vrot.lane.b32.xlu0 %v398, 17
      %v412 = vpop.permute.xlu0 %411
      %413 = vrot.lane.b32.xlu0 %v399, 17
      %v414 = vpop.permute.xlu0 %413
      %vm415 = vcmask 138240
      %v416 = vsel %vm415, %v410, %v412
      %v417 = vsel %vm415, %v412, %v414
      %v420 = vsel %vm404, %v416, 0.0
      %v421 = vsel %vm405, %v417, 0.0
      %v422 = vld [vmem:[%s1] sm:$0xf]
      %424 = vset.pattern.permute.xlu0 0
      %425 = vperm.xlu0 %424, %v422
      %v426 = vpop.permute.xlu0 %425
      %v428 = vlaneseq
      %v429 = vshrl.u32 %v428, 7
      %v430 = vsub.s32 0, %v429
      %v431 = vrot.slane %v420, %v430
      %v432 = vlaneseq
      %v433 = vshrl.u32 %v432, 7
      %v434 = vsub.s32 0, %v433
      %v435 = vrot.slane %v421, %v434
      %v436 = vmul.f32 %v426, %v431
      %v437 = vmul.f32 %v426, %v435
      %438 = vset.pattern.permute.xlu0 1
      %439 = vperm.xlu0 %438, %v422
      %v440 = vpop.permute.xlu0 %439
      %v442 = vlaneseq
      %v443 = vshrl.u32 %v442, 7
      %v444 = vsub.s32 1, %v443
      %v445 = vrot.slane %v420, %v444
      %v446 = vlaneseq
      %v447 = vshrl.u32 %v446, 7
      %v448 = vsub.s32 1, %v447
      %v449 = vrot.slane %v421, %v448
      %v450 = vmul.f32 %v440, %v445
      %v451 = vmul.f32 %v440, %v449
      %v452 = vadd.f32 %v436, %v450
      %v453 = vadd.f32 %v437, %v451
      %454 = vset.pattern.permute.xlu0 2
      %455 = vperm.xlu0 %454, %v422
      %v456 = vpop.permute.xlu0 %455
      %v458 = vlaneseq
      %v459 = vshrl.u32 %v458, 7
      %v460 = vsub.s32 2, %v459
      %v461 = vrot.slane %v420, %v460
      %v462 = vlaneseq
      %v463 = vshrl.u32 %v462, 7
      %v464 = vsub.s32 2, %v463
      %v465 = vrot.slane %v421, %v464
      %v466 = vmul.f32 %v456, %v461
      %v467 = vmul.f32 %v456, %v465
      %v468 = vadd.f32 %v452, %v466
      %v469 = vadd.f32 %v453, %v467
      %470 = vset.pattern.permute.xlu0 3
      %471 = vperm.xlu0 %470, %v422
      %v472 = vpop.permute.xlu0 %471
      %v474 = vlaneseq
      %v475 = vshrl.u32 %v474, 7
      %v476 = vsub.s32 3, %v475
      %v477 = vrot.slane %v420, %v476
      %v478 = vlaneseq
      %v479 = vshrl.u32 %v478, 7
      %v480 = vsub.s32 3, %v479
      %v481 = vrot.slane %v421, %v480
      %v482 = vmul.f32 %v472, %v477
      %v483 = vmul.f32 %v472, %v481
      %v484 = vadd.f32 %v468, %v482
      %v485 = vadd.f32 %v469, %v483
      %486 = vset.pattern.permute.xlu0 4
      %487 = vperm.xlu0 %486, %v422
      %v488 = vpop.permute.xlu0 %487
      %v490 = vlaneseq
      %v491 = vshrl.u32 %v490, 7
      %v492 = vsub.s32 4, %v491
      %v493 = vrot.slane %v420, %v492
      %v494 = vlaneseq
      %v495 = vshrl.u32 %v494, 7
      %v496 = vsub.s32 4, %v495
      %v497 = vrot.slane %v421, %v496
      %v498 = vmul.f32 %v488, %v493
      %v499 = vmul.f32 %v488, %v497
      %v500 = vadd.f32 %v484, %v498
      %v501 = vadd.f32 %v485, %v499
      %502 = vset.pattern.permute.xlu0 5
      %503 = vperm.xlu0 %502, %v422
      %v504 = vpop.permute.xlu0 %503
      %v506 = vlaneseq
      %v507 = vshrl.u32 %v506, 7
      %v508 = vsub.s32 5, %v507
      %v509 = vrot.slane %v420, %v508
      %v510 = vlaneseq
      %v511 = vshrl.u32 %v510, 7
      %v512 = vsub.s32 5, %v511
      %v513 = vrot.slane %v421, %v512
      %v514 = vmul.f32 %v504, %v509
      %v515 = vmul.f32 %v504, %v513
      %v516 = vadd.f32 %v500, %v514
      %v517 = vadd.f32 %v501, %v515
      %518 = vset.pattern.permute.xlu0 6
      %519 = vperm.xlu0 %518, %v422
      %v520 = vpop.permute.xlu0 %519
      %v522 = vlaneseq
      %v523 = vshrl.u32 %v522, 7
      %v524 = vsub.s32 6, %v523
      %v525 = vrot.slane %v420, %v524
      %v526 = vlaneseq
      %v527 = vshrl.u32 %v526, 7
      %v528 = vsub.s32 6, %v527
      %v529 = vrot.slane %v421, %v528
      %v530 = vmul.f32 %v520, %v525
      %v531 = vmul.f32 %v520, %v529
      %v532 = vadd.f32 %v516, %v530
      %v533 = vadd.f32 %v517, %v531
      %534 = vset.pattern.permute.xlu0 7
      %535 = vperm.xlu0 %534, %v422
      %v536 = vpop.permute.xlu0 %535
      %v538 = vlaneseq
      %v539 = vshrl.u32 %v538, 7
      %v540 = vsub.s32 7, %v539
      %v541 = vrot.slane %v420, %v540
      %v542 = vlaneseq
      %v543 = vshrl.u32 %v542, 7
      %v544 = vsub.s32 7, %v543
      %v545 = vrot.slane %v421, %v544
      %v546 = vmul.f32 %v536, %v541
      %v547 = vmul.f32 %v536, %v545
      %v548 = vadd.f32 %v532, %v546
      %v549 = vadd.f32 %v533, %v547
      %s550 = scalar_lea.vmem %s1, 4
      %v551 = vld [vmem:[%s550] sm:$0xf]
      %553 = vset.pattern.permute.xlu0 0
      %554 = vperm.xlu0 %553, %v551
      %v555 = vpop.permute.xlu0 %554
      %v557 = vlaneseq
      %v558 = vshrl.u32 %v557, 7
      %v559 = vsub.s32 0, %v558
      %v560 = vrot.slane %v397, %v559
      %v561 = vlaneseq
      %v562 = vshrl.u32 %v561, 7
      %v563 = vsub.s32 0, %v562
      %v564 = vrot.slane %v398, %v563
      %v565 = vlaneseq
      %v566 = vshrl.u32 %v565, 7
      %v567 = vsub.s32 0, %v566
      %v568 = vrot.slane %v399, %v567
      %v569 = vmul.f32 %v555, %v560
      %v570 = vmul.f32 %v555, %v564
      %v571 = vmul.f32 %v555, %v568
      %572 = vset.pattern.permute.xlu0 1
      %573 = vperm.xlu0 %572, %v551
      %v574 = vpop.permute.xlu0 %573
      %v576 = vlaneseq
      %v577 = vshrl.u32 %v576, 7
      %v578 = vsub.s32 1, %v577
      %v579 = vrot.slane %v397, %v578
      %v580 = vlaneseq
      %v581 = vshrl.u32 %v580, 7
      %v582 = vsub.s32 1, %v581
      %v583 = vrot.slane %v398, %v582
      %v584 = vlaneseq
      %v585 = vshrl.u32 %v584, 7
      %v586 = vsub.s32 1, %v585
      %v587 = vrot.slane %v399, %v586
      %v588 = vmul.f32 %v574, %v579
      %v589 = vmul.f32 %v574, %v583
      %v590 = vmul.f32 %v574, %v587
      %v591 = vadd.f32 %v569, %v588
      %v592 = vadd.f32 %v570, %v589
      %v593 = vadd.f32 %v571, %v590
      %594 = vset.pattern.permute.xlu0 2
      %595 = vperm.xlu0 %594, %v551
      %v596 = vpop.permute.xlu0 %595
      %v598 = vlaneseq
      %v599 = vshrl.u32 %v598, 7
      %v600 = vsub.s32 2, %v599
      %v601 = vrot.slane %v397, %v600
      %v602 = vlaneseq
      %v603 = vshrl.u32 %v602, 7
      %v604 = vsub.s32 2, %v603
      %v605 = vrot.slane %v398, %v604
      %v606 = vlaneseq
      %v607 = vshrl.u32 %v606, 7
      %v608 = vsub.s32 2, %v607
      %v609 = vrot.slane %v399, %v608
      %v610 = vmul.f32 %v596, %v601
      %v611 = vmul.f32 %v596, %v605
      %v612 = vmul.f32 %v596, %v609
      %v613 = vadd.f32 %v591, %v610
      %v614 = vadd.f32 %v592, %v611
      %v615 = vadd.f32 %v593, %v612
      %616 = vset.pattern.permute.xlu0 3
      %617 = vperm.xlu0 %616, %v551
      %v618 = vpop.permute.xlu0 %617
      %v620 = vlaneseq
      %v621 = vshrl.u32 %v620, 7
      %v622 = vsub.s32 3, %v621
      %v623 = vrot.slane %v397, %v622
      %v624 = vlaneseq
      %v625 = vshrl.u32 %v624, 7
      %v626 = vsub.s32 3, %v625
      %v627 = vrot.slane %v398, %v626
      %v628 = vlaneseq
      %v629 = vshrl.u32 %v628, 7
      %v630 = vsub.s32 3, %v629
      %v631 = vrot.slane %v399, %v630
      %v632 = vmul.f32 %v618, %v623
      %v633 = vmul.f32 %v618, %v627
      %v634 = vmul.f32 %v618, %v631
      %v635 = vadd.f32 %v613, %v632
      %v636 = vadd.f32 %v614, %v633
      %v637 = vadd.f32 %v615, %v634
      %638 = vset.pattern.permute.xlu0 4
      %639 = vperm.xlu0 %638, %v551
      %v640 = vpop.permute.xlu0 %639
      %v642 = vlaneseq
      %v643 = vshrl.u32 %v642, 7
      %v644 = vsub.s32 4, %v643
      %v645 = vrot.slane %v397, %v644
      %v646 = vlaneseq
      %v647 = vshrl.u32 %v646, 7
      %v648 = vsub.s32 4, %v647
      %v649 = vrot.slane %v398, %v648
      %v650 = vlaneseq
      %v651 = vshrl.u32 %v650, 7
      %v652 = vsub.s32 4, %v651
      %v653 = vrot.slane %v399, %v652
      %v654 = vmul.f32 %v640, %v645
      %v655 = vmul.f32 %v640, %v649
      %v656 = vmul.f32 %v640, %v653
      %v657 = vadd.f32 %v635, %v654
      %v658 = vadd.f32 %v636, %v655
      %v659 = vadd.f32 %v637, %v656
      %660 = vset.pattern.permute.xlu0 5
      %661 = vperm.xlu0 %660, %v551
      %v662 = vpop.permute.xlu0 %661
      %v664 = vlaneseq
      %v665 = vshrl.u32 %v664, 7
      %v666 = vsub.s32 5, %v665
      %v667 = vrot.slane %v397, %v666
      %v668 = vlaneseq
      %v669 = vshrl.u32 %v668, 7
      %v670 = vsub.s32 5, %v669
      %v671 = vrot.slane %v398, %v670
      %v672 = vlaneseq
      %v673 = vshrl.u32 %v672, 7
      %v674 = vsub.s32 5, %v673
      %v675 = vrot.slane %v399, %v674
      %v676 = vmul.f32 %v662, %v667
      %v677 = vmul.f32 %v662, %v671
      %v678 = vmul.f32 %v662, %v675
      %v679 = vadd.f32 %v657, %v676
      %v680 = vadd.f32 %v658, %v677
      %v681 = vadd.f32 %v659, %v678
      %682 = vset.pattern.permute.xlu0 6
      %683 = vperm.xlu0 %682, %v551
      %v684 = vpop.permute.xlu0 %683
      %v686 = vlaneseq
      %v687 = vshrl.u32 %v686, 7
      %v688 = vsub.s32 6, %v687
      %v689 = vrot.slane %v397, %v688
      %v690 = vlaneseq
      %v691 = vshrl.u32 %v690, 7
      %v692 = vsub.s32 6, %v691
      %v693 = vrot.slane %v398, %v692
      %v694 = vlaneseq
      %v695 = vshrl.u32 %v694, 7
      %v696 = vsub.s32 6, %v695
      %v697 = vrot.slane %v399, %v696
      %v698 = vmul.f32 %v684, %v689
      %v699 = vmul.f32 %v684, %v693
      %v700 = vmul.f32 %v684, %v697
      %v701 = vadd.f32 %v679, %v698
      %v702 = vadd.f32 %v680, %v699
      %v703 = vadd.f32 %v681, %v700
      %704 = vset.pattern.permute.xlu0 7
      %705 = vperm.xlu0 %704, %v551
      %v706 = vpop.permute.xlu0 %705
      %v708 = vlaneseq
      %v709 = vshrl.u32 %v708, 7
      %v710 = vsub.s32 7, %v709
      %v711 = vrot.slane %v397, %v710
      %v712 = vlaneseq
      %v713 = vshrl.u32 %v712, 7
      %v714 = vsub.s32 7, %v713
      %v715 = vrot.slane %v398, %v714
      %v716 = vlaneseq
      %v717 = vshrl.u32 %v716, 7
      %v718 = vsub.s32 7, %v717
      %v719 = vrot.slane %v399, %v718
      %v720 = vmul.f32 %v706, %v711
      %v721 = vmul.f32 %v706, %v715
      %v722 = vmul.f32 %v706, %v719
      %v723 = vadd.f32 %v701, %v720
      %v724 = vadd.f32 %v702, %v721
      %v725 = vadd.f32 %v703, %v722
      %729 = vrot.lane.b32.xlu0 %v723, 16
      %v730 = vpop.permute.xlu0 %729
      %731 = vrot.lane.b32.xlu0 %v724, 16
      %v732 = vpop.permute.xlu0 %731
      %733 = vrot.lane.b32.xlu0 %v725, 16
      %v734 = vpop.permute.xlu0 %733
      %vm735 = vcmask 130048
      %v736 = vsel %vm735, %v730, %v732
      %v737 = vsel %vm735, %v732, %v734
      %v740 = vadd.f32 %v548, %v736
      %v741 = vadd.f32 %v549, %v737
      %vm742 = vcmp.le.s32.totalorder %v387, 14
      %vm743 = vcmp.le.s32.totalorder %v388, 14
      %v744 = vsel %vm742, 1, 0
      %v745 = vsel %vm743, 1, 0
      %vm746 = vcmp.eq.s32.totalorder %v744, 1
      %vm747 = vcmp.eq.s32.totalorder %v745, 1
      %748 = vrot.lane.b32.xlu0 %v397, 15
      %v749 = vpop.permute.xlu0 %748
      %750 = vrot.lane.b32.xlu0 %v398, 15
      %v751 = vpop.permute.xlu0 %750
      %752 = vrot.lane.b32.xlu0 %v399, 15
      %v753 = vpop.permute.xlu0 %752
      %vm754 = vcmask 121856
      %v755 = vsel %vm754, %v749, %v751
      %v756 = vsel %vm754, %v751, %v753
      %v759 = vsel %vm746, %v755, 0.0
      %v760 = vsel %vm747, %v756, 0.0
      %s761 = scalar_lea.vmem %s1, 8
      %v762 = vld [vmem:[%s761] sm:$0xf]
      %764 = vset.pattern.permute.xlu0 0
      %765 = vperm.xlu0 %764, %v762
      %v766 = vpop.permute.xlu0 %765
      %v768 = vlaneseq
      %v769 = vshrl.u32 %v768, 7
      %v770 = vsub.s32 0, %v769
      %v771 = vrot.slane %v759, %v770
      %v772 = vlaneseq
      %v773 = vshrl.u32 %v772, 7
      %v774 = vsub.s32 0, %v773
      %v775 = vrot.slane %v760, %v774
      %v776 = vmul.f32 %v766, %v771
      %v777 = vmul.f32 %v766, %v775
      %778 = vset.pattern.permute.xlu0 1
      %779 = vperm.xlu0 %778, %v762
      %v780 = vpop.permute.xlu0 %779
      %v782 = vlaneseq
      %v783 = vshrl.u32 %v782, 7
      %v784 = vsub.s32 1, %v783
      %v785 = vrot.slane %v759, %v784
      %v786 = vlaneseq
      %v787 = vshrl.u32 %v786, 7
      %v788 = vsub.s32 1, %v787
      %v789 = vrot.slane %v760, %v788
      %v790 = vmul.f32 %v780, %v785
      %v791 = vmul.f32 %v780, %v789
      %v792 = vadd.f32 %v776, %v790
      %v793 = vadd.f32 %v777, %v791
      %794 = vset.pattern.permute.xlu0 2
      %795 = vperm.xlu0 %794, %v762
      %v796 = vpop.permute.xlu0 %795
      %v798 = vlaneseq
      %v799 = vshrl.u32 %v798, 7
      %v800 = vsub.s32 2, %v799
      %v801 = vrot.slane %v759, %v800
      %v802 = vlaneseq
      %v803 = vshrl.u32 %v802, 7
      %v804 = vsub.s32 2, %v803
      %v805 = vrot.slane %v760, %v804
      %v806 = vmul.f32 %v796, %v801
      %v807 = vmul.f32 %v796, %v805
      %v808 = vadd.f32 %v792, %v806
      %v809 = vadd.f32 %v793, %v807
      %810 = vset.pattern.permute.xlu0 3
      %811 = vperm.xlu0 %810, %v762
      %v812 = vpop.permute.xlu0 %811
      %v814 = vlaneseq
      %v815 = vshrl.u32 %v814, 7
      %v816 = vsub.s32 3, %v815
      %v817 = vrot.slane %v759, %v816
      %v818 = vlaneseq
      %v819 = vshrl.u32 %v818, 7
      %v820 = vsub.s32 3, %v819
      %v821 = vrot.slane %v760, %v820
      %v822 = vmul.f32 %v812, %v817
      %v823 = vmul.f32 %v812, %v821
      %v824 = vadd.f32 %v808, %v822
      %v825 = vadd.f32 %v809, %v823
      %826 = vset.pattern.permute.xlu0 4
      %827 = vperm.xlu0 %826, %v762
      %v828 = vpop.permute.xlu0 %827
      %v830 = vlaneseq
      %v831 = vshrl.u32 %v830, 7
      %v832 = vsub.s32 4, %v831
      %v833 = vrot.slane %v759, %v832
      %v834 = vlaneseq
      %v835 = vshrl.u32 %v834, 7
      %v836 = vsub.s32 4, %v835
      %v837 = vrot.slane %v760, %v836
      %v838 = vmul.f32 %v828, %v833
      %v839 = vmul.f32 %v828, %v837
      %v840 = vadd.f32 %v824, %v838
      %v841 = vadd.f32 %v825, %v839
      %842 = vset.pattern.permute.xlu0 5
      %843 = vperm.xlu0 %842, %v762
      %v844 = vpop.permute.xlu0 %843
      %v846 = vlaneseq
      %v847 = vshrl.u32 %v846, 7
      %v848 = vsub.s32 5, %v847
      %v849 = vrot.slane %v759, %v848
      %v850 = vlaneseq
      %v851 = vshrl.u32 %v850, 7
      %v852 = vsub.s32 5, %v851
      %v853 = vrot.slane %v760, %v852
      %v854 = vmul.f32 %v844, %v849
      %v855 = vmul.f32 %v844, %v853
      %v856 = vadd.f32 %v840, %v854
      %v857 = vadd.f32 %v841, %v855
      %858 = vset.pattern.permute.xlu0 6
      %859 = vperm.xlu0 %858, %v762
      %v860 = vpop.permute.xlu0 %859
      %v862 = vlaneseq
      %v863 = vshrl.u32 %v862, 7
      %v864 = vsub.s32 6, %v863
      %v865 = vrot.slane %v759, %v864
      %v866 = vlaneseq
      %v867 = vshrl.u32 %v866, 7
      %v868 = vsub.s32 6, %v867
      %v869 = vrot.slane %v760, %v868
      %v870 = vmul.f32 %v860, %v865
      %v871 = vmul.f32 %v860, %v869
      %v872 = vadd.f32 %v856, %v870
      %v873 = vadd.f32 %v857, %v871
      %874 = vset.pattern.permute.xlu0 7
      %875 = vperm.xlu0 %874, %v762
      %v876 = vpop.permute.xlu0 %875
      %v878 = vlaneseq
      %v879 = vshrl.u32 %v878, 7
      %v880 = vsub.s32 7, %v879
      %v881 = vrot.slane %v759, %v880
      %v882 = vlaneseq
      %v883 = vshrl.u32 %v882, 7
      %v884 = vsub.s32 7, %v883
      %v885 = vrot.slane %v760, %v884
      %v886 = vmul.f32 %v876, %v881
      %v887 = vmul.f32 %v876, %v885
      %v888 = vadd.f32 %v872, %v886
      %v889 = vadd.f32 %v873, %v887
      %v890 = vadd.f32 %v740, %v888
      %v891 = vadd.f32 %v741, %v889
      %892 = vrot.lane.b32.xlu0 %v397, 1
      %v893 = vpop.permute.xlu0 %892
      %894 = vrot.lane.b32.xlu0 %v398, 1
      %v895 = vpop.permute.xlu0 %894
      %896 = vrot.lane.b32.xlu0 %v399, 1
      %v897 = vpop.permute.xlu0 %896
      %vm898 = vcmask 7168
      %v899 = vsel %vm898, %v893, %v895
      %v900 = vsel %vm898, %v895, %v897
      %v903 = vsel %vm404, %v899, 0.0
      %v904 = vsel %vm405, %v900, 0.0
      %s905 = scalar_lea.vmem %s1, 12
      %v906 = vld [vmem:[%s905] sm:$0xf]
      %908 = vset.pattern.permute.xlu0 0
      %909 = vperm.xlu0 %908, %v906
      %v910 = vpop.permute.xlu0 %909
      %v912 = vlaneseq
      %v913 = vshrl.u32 %v912, 7
      %v914 = vsub.s32 0, %v913
      %v915 = vrot.slane %v903, %v914
      %v916 = vlaneseq
      %v917 = vshrl.u32 %v916, 7
      %v918 = vsub.s32 0, %v917
      %v919 = vrot.slane %v904, %v918
      %v920 = vmul.f32 %v910, %v915
      %v921 = vmul.f32 %v910, %v919
      %922 = vset.pattern.permute.xlu0 1
      %923 = vperm.xlu0 %922, %v906
      %v924 = vpop.permute.xlu0 %923
      %v926 = vlaneseq
      %v927 = vshrl.u32 %v926, 7
      %v928 = vsub.s32 1, %v927
      %v929 = vrot.slane %v903, %v928
      %v930 = vlaneseq
      %v931 = vshrl.u32 %v930, 7
      %v932 = vsub.s32 1, %v931
      %v933 = vrot.slane %v904, %v932
      %v934 = vmul.f32 %v924, %v929
      %v935 = vmul.f32 %v924, %v933
      %v936 = vadd.f32 %v920, %v934
      %v937 = vadd.f32 %v921, %v935
      %938 = vset.pattern.permute.xlu0 2
      %939 = vperm.xlu0 %938, %v906
      %v940 = vpop.permute.xlu0 %939
      %v942 = vlaneseq
      %v943 = vshrl.u32 %v942, 7
      %v944 = vsub.s32 2, %v943
      %v945 = vrot.slane %v903, %v944
      %v946 = vlaneseq
      %v947 = vshrl.u32 %v946, 7
      %v948 = vsub.s32 2, %v947
      %v949 = vrot.slane %v904, %v948
      %v950 = vmul.f32 %v940, %v945
      %v951 = vmul.f32 %v940, %v949
      %v952 = vadd.f32 %v936, %v950
      %v953 = vadd.f32 %v937, %v951
      %954 = vset.pattern.permute.xlu0 3
      %955 = vperm.xlu0 %954, %v906
      %v956 = vpop.permute.xlu0 %955
      %v958 = vlaneseq
      %v959 = vshrl.u32 %v958, 7
      %v960 = vsub.s32 3, %v959
      %v961 = vrot.slane %v903, %v960
      %v962 = vlaneseq
      %v963 = vshrl.u32 %v962, 7
      %v964 = vsub.s32 3, %v963
      %v965 = vrot.slane %v904, %v964
      %v966 = vmul.f32 %v956, %v961
      %v967 = vmul.f32 %v956, %v965
      %v968 = vadd.f32 %v952, %v966
      %v969 = vadd.f32 %v953, %v967
      %970 = vset.pattern.permute.xlu0 4
      %971 = vperm.xlu0 %970, %v906
      %v972 = vpop.permute.xlu0 %971
      %v974 = vlaneseq
      %v975 = vshrl.u32 %v974, 7
      %v976 = vsub.s32 4, %v975
      %v977 = vrot.slane %v903, %v976
      %v978 = vlaneseq
      %v979 = vshrl.u32 %v978, 7
      %v980 = vsub.s32 4, %v979
      %v981 = vrot.slane %v904, %v980
      %v982 = vmul.f32 %v972, %v977
      %v983 = vmul.f32 %v972, %v981
      %v984 = vadd.f32 %v968, %v982
      %v985 = vadd.f32 %v969, %v983
      %986 = vset.pattern.permute.xlu0 5
      %987 = vperm.xlu0 %986, %v906
      %v988 = vpop.permute.xlu0 %987
      %v990 = vlaneseq
      %v991 = vshrl.u32 %v990, 7
      %v992 = vsub.s32 5, %v991
      %v993 = vrot.slane %v903, %v992
      %v994 = vlaneseq
      %v995 = vshrl.u32 %v994, 7
      %v996 = vsub.s32 5, %v995
      %v997 = vrot.slane %v904, %v996
      %v998 = vmul.f32 %v988, %v993
      %v999 = vmul.f32 %v988, %v997
      %v1000 = vadd.f32 %v984, %v998
      %v1001 = vadd.f32 %v985, %v999
      %1002 = vset.pattern.permute.xlu0 6
      %1003 = vperm.xlu0 %1002, %v906
      %v1004 = vpop.permute.xlu0 %1003
      %v1006 = vlaneseq
      %v1007 = vshrl.u32 %v1006, 7
      %v1008 = vsub.s32 6, %v1007
      %v1009 = vrot.slane %v903, %v1008
      %v1010 = vlaneseq
      %v1011 = vshrl.u32 %v1010, 7
      %v1012 = vsub.s32 6, %v1011
      %v1013 = vrot.slane %v904, %v1012
      %v1014 = vmul.f32 %v1004, %v1009
      %v1015 = vmul.f32 %v1004, %v1013
      %v1016 = vadd.f32 %v1000, %v1014
      %v1017 = vadd.f32 %v1001, %v1015
      %1018 = vset.pattern.permute.xlu0 7
      %1019 = vperm.xlu0 %1018, %v906
      %v1020 = vpop.permute.xlu0 %1019
      %v1022 = vlaneseq
      %v1023 = vshrl.u32 %v1022, 7
      %v1024 = vsub.s32 7, %v1023
      %v1025 = vrot.slane %v903, %v1024
      %v1026 = vlaneseq
      %v1027 = vshrl.u32 %v1026, 7
      %v1028 = vsub.s32 7, %v1027
      %v1029 = vrot.slane %v904, %v1028
      %v1030 = vmul.f32 %v1020, %v1025
      %v1031 = vmul.f32 %v1020, %v1029
      %v1032 = vadd.f32 %v1016, %v1030
      %v1033 = vadd.f32 %v1017, %v1031
      %v1034 = vadd.f32 %v890, %v1032
      %v1035 = vadd.f32 %v891, %v1033
      %s1036 = scalar_lea.vmem %s1, 16
      %v1037 = vld [vmem:[%s1036] sm:$0xf]
      %1039 = vset.pattern.permute.xlu0 0
      %1040 = vperm.xlu0 %1039, %v1037
      %v1041 = vpop.permute.xlu0 %1040
      %v1043 = vmul.f32 %v1041, %v564
      %v1044 = vmul.f32 %v1041, %v568
      %1045 = vset.pattern.permute.xlu0 1
      %1046 = vperm.xlu0 %1045, %v1037
      %v1047 = vpop.permute.xlu0 %1046
      %v1049 = vmul.f32 %v1047, %v583
      %v1050 = vmul.f32 %v1047, %v587
      %v1051 = vadd.f32 %v1043, %v1049
      %v1052 = vadd.f32 %v1044, %v1050
      %1053 = vset.pattern.permute.xlu0 2
      %1054 = vperm.xlu0 %1053, %v1037
      %v1055 = vpop.permute.xlu0 %1054
      %v1057 = vmul.f32 %v1055, %v605
      %v1058 = vmul.f32 %v1055, %v609
      %v1059 = vadd.f32 %v1051, %v1057
      %v1060 = vadd.f32 %v1052, %v1058
      %1061 = vset.pattern.permute.xlu0 3
      %1062 = vperm.xlu0 %1061, %v1037
      %v1063 = vpop.permute.xlu0 %1062
      %v1065 = vmul.f32 %v1063, %v627
      %v1066 = vmul.f32 %v1063, %v631
      %v1067 = vadd.f32 %v1059, %v1065
      %v1068 = vadd.f32 %v1060, %v1066
      %1069 = vset.pattern.permute.xlu0 4
      %1070 = vperm.xlu0 %1069, %v1037
      %v1071 = vpop.permute.xlu0 %1070
      %v1073 = vmul.f32 %v1071, %v649
      %v1074 = vmul.f32 %v1071, %v653
      %v1075 = vadd.f32 %v1067, %v1073
      %v1076 = vadd.f32 %v1068, %v1074
      %1077 = vset.pattern.permute.xlu0 5
      %1078 = vperm.xlu0 %1077, %v1037
      %v1079 = vpop.permute.xlu0 %1078
      %v1081 = vmul.f32 %v1079, %v671
      %v1082 = vmul.f32 %v1079, %v675
      %v1083 = vadd.f32 %v1075, %v1081
      %v1084 = vadd.f32 %v1076, %v1082
      %1085 = vset.pattern.permute.xlu0 6
      %1086 = vperm.xlu0 %1085, %v1037
      %v1087 = vpop.permute.xlu0 %1086
      %v1089 = vmul.f32 %v1087, %v693
      %v1090 = vmul.f32 %v1087, %v697
      %v1091 = vadd.f32 %v1083, %v1089
      %v1092 = vadd.f32 %v1084, %v1090
      %1093 = vset.pattern.permute.xlu0 7
      %1094 = vperm.xlu0 %1093, %v1037
      %v1095 = vpop.permute.xlu0 %1094
      %v1097 = vmul.f32 %v1095, %v715
      %v1098 = vmul.f32 %v1095, %v719
      %v1099 = vadd.f32 %v1091, %v1097
      %v1100 = vadd.f32 %v1092, %v1098
      %v1101 = vadd.f32 %v1034, %v1099
      %v1102 = vadd.f32 %v1035, %v1100
      %v1103 = vld [vmem:[#allocation2 + $0x8] sm:$0xff]
      %v1104 = vld [vmem:[#allocation2 + $0x10] sm:$0xff]
      %v1105 = vld [vmem:[#allocation2 + $0x18] sm:$0xff]
      %1109 = vrot.lane.b32.xlu0 %v1103, 127
      %v1110 = vpop.permute.xlu0 %1109
      %1111 = vrot.lane.b32.xlu0 %v1104, 127
      %v1112 = vpop.permute.xlu0 %1111
      %1113 = vrot.lane.b32.xlu0 %v1105, 127
      %v1114 = vpop.permute.xlu0 %1113
      %vm1115 = vcmask 1039360
      %v1116 = vsel %vm1115, %v1110, %v1112
      %v1117 = vsel %vm1115, %v1112, %v1114
      %v1120 = vsel %vm746, %v1116, 0.0
      %v1121 = vsel %vm747, %v1117, 0.0
      %s1122 = scalar_lea.vmem %s1, 20
      %v1123 = vld [vmem:[%s1122] sm:$0xf]
      %1125 = vset.pattern.permute.xlu0 0
      %1126 = vperm.xlu0 %1125, %v1123
      %v1127 = vpop.permute.xlu0 %1126
      %v1129 = vlaneseq
      %v1130 = vshrl.u32 %v1129, 7
      %v1131 = vsub.s32 0, %v1130
      %v1132 = vrot.slane %v1120, %v1131
      %v1133 = vlaneseq
      %v1134 = vshrl.u32 %v1133, 7
      %v1135 = vsub.s32 0, %v1134
      %v1136 = vrot.slane %v1121, %v1135
      %v1137 = vmul.f32 %v1127, %v1132
      %v1138 = vmul.f32 %v1127, %v1136
      %1139 = vset.pattern.permute.xlu0 1
      %1140 = vperm.xlu0 %1139, %v1123
      %v1141 = vpop.permute.xlu0 %1140
      %v1143 = vlaneseq
      %v1144 = vshrl.u32 %v1143, 7
      %v1145 = vsub.s32 1, %v1144
      %v1146 = vrot.slane %v1120, %v1145
      %v1147 = vlaneseq
      %v1148 = vshrl.u32 %v1147, 7
      %v1149 = vsub.s32 1, %v1148
      %v1150 = vrot.slane %v1121, %v1149
      %v1151 = vmul.f32 %v1141, %v1146
      %v1152 = vmul.f32 %v1141, %v1150
      %v1153 = vadd.f32 %v1137, %v1151
      %v1154 = vadd.f32 %v1138, %v1152
      %1155 = vset.pattern.permute.xlu0 2
      %1156 = vperm.xlu0 %1155, %v1123
      %v1157 = vpop.permute.xlu0 %1156
      %v1159 = vlaneseq
      %v1160 = vshrl.u32 %v1159, 7
      %v1161 = vsub.s32 2, %v1160
      %v1162 = vrot.slane %v1120, %v1161
      %v1163 = vlaneseq
      %v1164 = vshrl.u32 %v1163, 7
      %v1165 = vsub.s32 2, %v1164
      %v1166 = vrot.slane %v1121, %v1165
      %v1167 = vmul.f32 %v1157, %v1162
      %v1168 = vmul.f32 %v1157, %v1166
      %v1169 = vadd.f32 %v1153, %v1167
      %v1170 = vadd.f32 %v1154, %v1168
      %1171 = vset.pattern.permute.xlu0 3
      %1172 = vperm.xlu0 %1171, %v1123
      %v1173 = vpop.permute.xlu0 %1172
      %v1175 = vlaneseq
      %v1176 = vshrl.u32 %v1175, 7
      %v1177 = vsub.s32 3, %v1176
      %v1178 = vrot.slane %v1120, %v1177
      %v1179 = vlaneseq
      %v1180 = vshrl.u32 %v1179, 7
      %v1181 = vsub.s32 3, %v1180
      %v1182 = vrot.slane %v1121, %v1181
      %v1183 = vmul.f32 %v1173, %v1178
      %v1184 = vmul.f32 %v1173, %v1182
      %v1185 = vadd.f32 %v1169, %v1183
      %v1186 = vadd.f32 %v1170, %v1184
      %1187 = vset.pattern.permute.xlu0 4
      %1188 = vperm.xlu0 %1187, %v1123
      %v1189 = vpop.permute.xlu0 %1188
      %v1191 = vlaneseq
      %v1192 = vshrl.u32 %v1191, 7
      %v1193 = vsub.s32 4, %v1192
      %v1194 = vrot.slane %v1120, %v1193
      %v1195 = vlaneseq
      %v1196 = vshrl.u32 %v1195, 7
      %v1197 = vsub.s32 4, %v1196
      %v1198 = vrot.slane %v1121, %v1197
      %v1199 = vmul.f32 %v1189, %v1194
      %v1200 = vmul.f32 %v1189, %v1198
      %v1201 = vadd.f32 %v1185, %v1199
      %v1202 = vadd.f32 %v1186, %v1200
      %1203 = vset.pattern.permute.xlu0 5
      %1204 = vperm.xlu0 %1203, %v1123
      %v1205 = vpop.permute.xlu0 %1204
      %v1207 = vlaneseq
      %v1208 = vshrl.u32 %v1207, 7
      %v1209 = vsub.s32 5, %v1208
      %v1210 = vrot.slane %v1120, %v1209
      %v1211 = vlaneseq
      %v1212 = vshrl.u32 %v1211, 7
      %v1213 = vsub.s32 5, %v1212
      %v1214 = vrot.slane %v1121, %v1213
      %v1215 = vmul.f32 %v1205, %v1210
      %v1216 = vmul.f32 %v1205, %v1214
      %v1217 = vadd.f32 %v1201, %v1215
      %v1218 = vadd.f32 %v1202, %v1216
      %1219 = vset.pattern.permute.xlu0 6
      %1220 = vperm.xlu0 %1219, %v1123
      %v1221 = vpop.permute.xlu0 %1220
      %v1223 = vlaneseq
      %v1224 = vshrl.u32 %v1223, 7
      %v1225 = vsub.s32 6, %v1224
      %v1226 = vrot.slane %v1120, %v1225
      %v1227 = vlaneseq
      %v1228 = vshrl.u32 %v1227, 7
      %v1229 = vsub.s32 6, %v1228
      %v1230 = vrot.slane %v1121, %v1229
      %v1231 = vmul.f32 %v1221, %v1226
      %v1232 = vmul.f32 %v1221, %v1230
      %v1233 = vadd.f32 %v1217, %v1231
      %v1234 = vadd.f32 %v1218, %v1232
      %1235 = vset.pattern.permute.xlu0 7
      %1236 = vperm.xlu0 %1235, %v1123
      %v1237 = vpop.permute.xlu0 %1236
      %v1239 = vlaneseq
      %v1240 = vshrl.u32 %v1239, 7
      %v1241 = vsub.s32 7, %v1240
      %v1242 = vrot.slane %v1120, %v1241
      %v1243 = vlaneseq
      %v1244 = vshrl.u32 %v1243, 7
      %v1245 = vsub.s32 7, %v1244
      %v1246 = vrot.slane %v1121, %v1245
      %v1247 = vmul.f32 %v1237, %v1242
      %v1248 = vmul.f32 %v1237, %v1246
      %v1249 = vadd.f32 %v1233, %v1247
      %v1250 = vadd.f32 %v1234, %v1248
      %v1251 = vadd.f32 %v1101, %v1249
      %v1252 = vadd.f32 %v1102, %v1250
      %1253 = vrot.lane.b32.xlu0 %v1103, 113
      %v1254 = vpop.permute.xlu0 %1253
      %1255 = vrot.lane.b32.xlu0 %v1104, 113
      %v1256 = vpop.permute.xlu0 %1255
      %1257 = vrot.lane.b32.xlu0 %v1105, 113
      %v1258 = vpop.permute.xlu0 %1257
      %vm1259 = vcmask 924672
      %v1260 = vsel %vm1259, %v1254, %v1256
      %v1261 = vsel %vm1259, %v1256, %v1258
      %v1264 = vsel %vm404, %v1260, 0.0
      %v1265 = vsel %vm405, %v1261, 0.0
      %s1266 = scalar_lea.vmem %s1, 24
      %v1267 = vld [vmem:[%s1266] sm:$0xf]
      %1269 = vset.pattern.permute.xlu0 0
      %1270 = vperm.xlu0 %1269, %v1267
      %v1271 = vpop.permute.xlu0 %1270
      %v1273 = vlaneseq
      %v1274 = vshrl.u32 %v1273, 7
      %v1275 = vsub.s32 0, %v1274
      %v1276 = vrot.slane %v1264, %v1275
      %v1277 = vlaneseq
      %v1278 = vshrl.u32 %v1277, 7
      %v1279 = vsub.s32 0, %v1278
      %v1280 = vrot.slane %v1265, %v1279
      %v1281 = vmul.f32 %v1271, %v1276
      %v1282 = vmul.f32 %v1271, %v1280
      %1283 = vset.pattern.permute.xlu0 1
      %1284 = vperm.xlu0 %1283, %v1267
      %v1285 = vpop.permute.xlu0 %1284
      %v1287 = vlaneseq
      %v1288 = vshrl.u32 %v1287, 7
      %v1289 = vsub.s32 1, %v1288
      %v1290 = vrot.slane %v1264, %v1289
      %v1291 = vlaneseq
      %v1292 = vshrl.u32 %v1291, 7
      %v1293 = vsub.s32 1, %v1292
      %v1294 = vrot.slane %v1265, %v1293
      %v1295 = vmul.f32 %v1285, %v1290
      %v1296 = vmul.f32 %v1285, %v1294
      %v1297 = vadd.f32 %v1281, %v1295
      %v1298 = vadd.f32 %v1282, %v1296
      %1299 = vset.pattern.permute.xlu0 2
      %1300 = vperm.xlu0 %1299, %v1267
      %v1301 = vpop.permute.xlu0 %1300
      %v1303 = vlaneseq
      %v1304 = vshrl.u32 %v1303, 7
      %v1305 = vsub.s32 2, %v1304
      %v1306 = vrot.slane %v1264, %v1305
      %v1307 = vlaneseq
      %v1308 = vshrl.u32 %v1307, 7
      %v1309 = vsub.s32 2, %v1308
      %v1310 = vrot.slane %v1265, %v1309
      %v1311 = vmul.f32 %v1301, %v1306
      %v1312 = vmul.f32 %v1301, %v1310
      %v1313 = vadd.f32 %v1297, %v1311
      %v1314 = vadd.f32 %v1298, %v1312
      %1315 = vset.pattern.permute.xlu0 3
      %1316 = vperm.xlu0 %1315, %v1267
      %v1317 = vpop.permute.xlu0 %1316
      %v1319 = vlaneseq
      %v1320 = vshrl.u32 %v1319, 7
      %v1321 = vsub.s32 3, %v1320
      %v1322 = vrot.slane %v1264, %v1321
      %v1323 = vlaneseq
      %v1324 = vshrl.u32 %v1323, 7
      %v1325 = vsub.s32 3, %v1324
      %v1326 = vrot.slane %v1265, %v1325
      %v1327 = vmul.f32 %v1317, %v1322
      %v1328 = vmul.f32 %v1317, %v1326
      %v1329 = vadd.f32 %v1313, %v1327
      %v1330 = vadd.f32 %v1314, %v1328
      %1331 = vset.pattern.permute.xlu0 4
      %1332 = vperm.xlu0 %1331, %v1267
      %v1333 = vpop.permute.xlu0 %1332
      %v1335 = vlaneseq
      %v1336 = vshrl.u32 %v1335, 7
      %v1337 = vsub.s32 4, %v1336
      %v1338 = vrot.slane %v1264, %v1337
      %v1339 = vlaneseq
      %v1340 = vshrl.u32 %v1339, 7
      %v1341 = vsub.s32 4, %v1340
      %v1342 = vrot.slane %v1265, %v1341
      %v1343 = vmul.f32 %v1333, %v1338
      %v1344 = vmul.f32 %v1333, %v1342
      %v1345 = vadd.f32 %v1329, %v1343
      %v1346 = vadd.f32 %v1330, %v1344
      %1347 = vset.pattern.permute.xlu0 5
      %1348 = vperm.xlu0 %1347, %v1267
      %v1349 = vpop.permute.xlu0 %1348
      %v1351 = vlaneseq
      %v1352 = vshrl.u32 %v1351, 7
      %v1353 = vsub.s32 5, %v1352
      %v1354 = vrot.slane %v1264, %v1353
      %v1355 = vlaneseq
      %v1356 = vshrl.u32 %v1355, 7
      %v1357 = vsub.s32 5, %v1356
      %v1358 = vrot.slane %v1265, %v1357
      %v1359 = vmul.f32 %v1349, %v1354
      %v1360 = vmul.f32 %v1349, %v1358
      %v1361 = vadd.f32 %v1345, %v1359
      %v1362 = vadd.f32 %v1346, %v1360
      %1363 = vset.pattern.permute.xlu0 6
      %1364 = vperm.xlu0 %1363, %v1267
      %v1365 = vpop.permute.xlu0 %1364
      %v1367 = vlaneseq
      %v1368 = vshrl.u32 %v1367, 7
      %v1369 = vsub.s32 6, %v1368
      %v1370 = vrot.slane %v1264, %v1369
      %v1371 = vlaneseq
      %v1372 = vshrl.u32 %v1371, 7
      %v1373 = vsub.s32 6, %v1372
      %v1374 = vrot.slane %v1265, %v1373
      %v1375 = vmul.f32 %v1365, %v1370
      %v1376 = vmul.f32 %v1365, %v1374
      %v1377 = vadd.f32 %v1361, %v1375
      %v1378 = vadd.f32 %v1362, %v1376
      %1379 = vset.pattern.permute.xlu0 7
      %1380 = vperm.xlu0 %1379, %v1267
      %v1381 = vpop.permute.xlu0 %1380
      %v1383 = vlaneseq
      %v1384 = vshrl.u32 %v1383, 7
      %v1385 = vsub.s32 7, %v1384
      %v1386 = vrot.slane %v1264, %v1385
      %v1387 = vlaneseq
      %v1388 = vshrl.u32 %v1387, 7
      %v1389 = vsub.s32 7, %v1388
      %v1390 = vrot.slane %v1265, %v1389
      %v1391 = vmul.f32 %v1381, %v1386
      %v1392 = vmul.f32 %v1381, %v1390
      %v1393 = vadd.f32 %v1377, %v1391
      %v1394 = vadd.f32 %v1378, %v1392
      %v1395 = vadd.f32 %v1251, %v1393
      %v1396 = vadd.f32 %v1252, %v1394
      %s1397 = scalar_lea.vmem %s1, 28
      %v1398 = vld [vmem:[%s1397] sm:$0xf]
      %1400 = vset.pattern.permute.xlu0 0
      %1401 = vperm.xlu0 %1400, %v1398
      %v1402 = vpop.permute.xlu0 %1401
      %v1404 = vlaneseq
      %v1405 = vshrl.u32 %v1404, 7
      %v1406 = vsub.s32 0, %v1405
      %v1407 = vrot.slane %v1103, %v1406
      %v1408 = vlaneseq
      %v1409 = vshrl.u32 %v1408, 7
      %v1410 = vsub.s32 0, %v1409
      %v1411 = vrot.slane %v1104, %v1410
      %v1412 = vlaneseq
      %v1413 = vshrl.u32 %v1412, 7
      %v1414 = vsub.s32 0, %v1413
      %v1415 = vrot.slane %v1105, %v1414
      %v1416 = vmul.f32 %v1402, %v1407
      %v1417 = vmul.f32 %v1402, %v1411
      %v1418 = vmul.f32 %v1402, %v1415
      %1419 = vset.pattern.permute.xlu0 1
      %1420 = vperm.xlu0 %1419, %v1398
      %v1421 = vpop.permute.xlu0 %1420
      %v1423 = vlaneseq
      %v1424 = vshrl.u32 %v1423, 7
      %v1425 = vsub.s32 1, %v1424
      %v1426 = vrot.slane %v1103, %v1425
      %v1427 = vlaneseq
      %v1428 = vshrl.u32 %v1427, 7
      %v1429 = vsub.s32 1, %v1428
      %v1430 = vrot.slane %v1104, %v1429
      %v1431 = vlaneseq
      %v1432 = vshrl.u32 %v1431, 7
      %v1433 = vsub.s32 1, %v1432
      %v1434 = vrot.slane %v1105, %v1433
      %v1435 = vmul.f32 %v1421, %v1426
      %v1436 = vmul.f32 %v1421, %v1430
      %v1437 = vmul.f32 %v1421, %v1434
      %v1438 = vadd.f32 %v1416, %v1435
      %v1439 = vadd.f32 %v1417, %v1436
      %v1440 = vadd.f32 %v1418, %v1437
      %1441 = vset.pattern.permute.xlu0 2
      %1442 = vperm.xlu0 %1441, %v1398
      %v1443 = vpop.permute.xlu0 %1442
      %v1445 = vlaneseq
      %v1446 = vshrl.u32 %v1445, 7
      %v1447 = vsub.s32 2, %v1446
      %v1448 = vrot.slane %v1103, %v1447
      %v1449 = vlaneseq
      %v1450 = vshrl.u32 %v1449, 7
      %v1451 = vsub.s32 2, %v1450
      %v1452 = vrot.slane %v1104, %v1451
      %v1453 = vlaneseq
      %v1454 = vshrl.u32 %v1453, 7
      %v1455 = vsub.s32 2, %v1454
      %v1456 = vrot.slane %v1105, %v1455
      %v1457 = vmul.f32 %v1443, %v1448
      %v1458 = vmul.f32 %v1443, %v1452
      %v1459 = vmul.f32 %v1443, %v1456
      %v1460 = vadd.f32 %v1438, %v1457
      %v1461 = vadd.f32 %v1439, %v1458
      %v1462 = vadd.f32 %v1440, %v1459
      %1463 = vset.pattern.permute.xlu0 3
      %1464 = vperm.xlu0 %1463, %v1398
      %v1465 = vpop.permute.xlu0 %1464
      %v1467 = vlaneseq
      %v1468 = vshrl.u32 %v1467, 7
      %v1469 = vsub.s32 3, %v1468
      %v1470 = vrot.slane %v1103, %v1469
      %v1471 = vlaneseq
      %v1472 = vshrl.u32 %v1471, 7
      %v1473 = vsub.s32 3, %v1472
      %v1474 = vrot.slane %v1104, %v1473
      %v1475 = vlaneseq
      %v1476 = vshrl.u32 %v1475, 7
      %v1477 = vsub.s32 3, %v1476
      %v1478 = vrot.slane %v1105, %v1477
      %v1479 = vmul.f32 %v1465, %v1470
      %v1480 = vmul.f32 %v1465, %v1474
      %v1481 = vmul.f32 %v1465, %v1478
      %v1482 = vadd.f32 %v1460, %v1479
      %v1483 = vadd.f32 %v1461, %v1480
      %v1484 = vadd.f32 %v1462, %v1481
      %1485 = vset.pattern.permute.xlu0 4
      %1486 = vperm.xlu0 %1485, %v1398
      %v1487 = vpop.permute.xlu0 %1486
      %v1489 = vlaneseq
      %v1490 = vshrl.u32 %v1489, 7
      %v1491 = vsub.s32 4, %v1490
      %v1492 = vrot.slane %v1103, %v1491
      %v1493 = vlaneseq
      %v1494 = vshrl.u32 %v1493, 7
      %v1495 = vsub.s32 4, %v1494
      %v1496 = vrot.slane %v1104, %v1495
      %v1497 = vlaneseq
      %v1498 = vshrl.u32 %v1497, 7
      %v1499 = vsub.s32 4, %v1498
      %v1500 = vrot.slane %v1105, %v1499
      %v1501 = vmul.f32 %v1487, %v1492
      %v1502 = vmul.f32 %v1487, %v1496
      %v1503 = vmul.f32 %v1487, %v1500
      %v1504 = vadd.f32 %v1482, %v1501
      %v1505 = vadd.f32 %v1483, %v1502
      %v1506 = vadd.f32 %v1484, %v1503
      %1507 = vset.pattern.permute.xlu0 5
      %1508 = vperm.xlu0 %1507, %v1398
      %v1509 = vpop.permute.xlu0 %1508
      %v1511 = vlaneseq
      %v1512 = vshrl.u32 %v1511, 7
      %v1513 = vsub.s32 5, %v1512
      %v1514 = vrot.slane %v1103, %v1513
      %v1515 = vlaneseq
      %v1516 = vshrl.u32 %v1515, 7
      %v1517 = vsub.s32 5, %v1516
      %v1518 = vrot.slane %v1104, %v1517
      %v1519 = vlaneseq
      %v1520 = vshrl.u32 %v1519, 7
      %v1521 = vsub.s32 5, %v1520
      %v1522 = vrot.slane %v1105, %v1521
      %v1523 = vmul.f32 %v1509, %v1514
      %v1524 = vmul.f32 %v1509, %v1518
      %v1525 = vmul.f32 %v1509, %v1522
      %v1526 = vadd.f32 %v1504, %v1523
      %v1527 = vadd.f32 %v1505, %v1524
      %v1528 = vadd.f32 %v1506, %v1525
      %1529 = vset.pattern.permute.xlu0 6
      %1530 = vperm.xlu0 %1529, %v1398
      %v1531 = vpop.permute.xlu0 %1530
      %v1533 = vlaneseq
      %v1534 = vshrl.u32 %v1533, 7
      %v1535 = vsub.s32 6, %v1534
      %v1536 = vrot.slane %v1103, %v1535
      %v1537 = vlaneseq
      %v1538 = vshrl.u32 %v1537, 7
      %v1539 = vsub.s32 6, %v1538
      %v1540 = vrot.slane %v1104, %v1539
      %v1541 = vlaneseq
      %v1542 = vshrl.u32 %v1541, 7
      %v1543 = vsub.s32 6, %v1542
      %v1544 = vrot.slane %v1105, %v1543
      %v1545 = vmul.f32 %v1531, %v1536
      %v1546 = vmul.f32 %v1531, %v1540
      %v1547 = vmul.f32 %v1531, %v1544
      %v1548 = vadd.f32 %v1526, %v1545
      %v1549 = vadd.f32 %v1527, %v1546
      %v1550 = vadd.f32 %v1528, %v1547
      %1551 = vset.pattern.permute.xlu0 7
      %1552 = vperm.xlu0 %1551, %v1398
      %v1553 = vpop.permute.xlu0 %1552
      %v1555 = vlaneseq
      %v1556 = vshrl.u32 %v1555, 7
      %v1557 = vsub.s32 7, %v1556
      %v1558 = vrot.slane %v1103, %v1557
      %v1559 = vlaneseq
      %v1560 = vshrl.u32 %v1559, 7
      %v1561 = vsub.s32 7, %v1560
      %v1562 = vrot.slane %v1104, %v1561
      %v1563 = vlaneseq
      %v1564 = vshrl.u32 %v1563, 7
      %v1565 = vsub.s32 7, %v1564
      %v1566 = vrot.slane %v1105, %v1565
      %v1567 = vmul.f32 %v1553, %v1558
      %v1568 = vmul.f32 %v1553, %v1562
      %v1569 = vmul.f32 %v1553, %v1566
      %v1570 = vadd.f32 %v1548, %v1567
      %v1571 = vadd.f32 %v1549, %v1568
      %v1572 = vadd.f32 %v1550, %v1569
      %1576 = vrot.lane.b32.xlu0 %v1570, 112
      %v1577 = vpop.permute.xlu0 %1576
      %1578 = vrot.lane.b32.xlu0 %v1571, 112
      %v1579 = vpop.permute.xlu0 %1578
      %1580 = vrot.lane.b32.xlu0 %v1572, 112
      %v1581 = vpop.permute.xlu0 %1580
      %vm1582 = vcmask 916480
      %v1583 = vsel %vm1582, %v1577, %v1579
      %v1584 = vsel %vm1582, %v1579, %v1581
      %v1587 = vadd.f32 %v1395, %v1583
      %v1588 = vadd.f32 %v1396, %v1584
      %1589 = vrot.lane.b32.xlu0 %v1103, 111
      %v1590 = vpop.permute.xlu0 %1589
      %1591 = vrot.lane.b32.xlu0 %v1104, 111
      %v1592 = vpop.permute.xlu0 %1591
      %1593 = vrot.lane.b32.xlu0 %v1105, 111
      %v1594 = vpop.permute.xlu0 %1593
      %vm1595 = vcmask 908288
      %v1596 = vsel %vm1595, %v1590, %v1592
      %v1597 = vsel %vm1595, %v1592, %v1594
      %v1600 = vsel %vm746, %v1596, 0.0
      %v1601 = vsel %vm747, %v1597, 0.0
      %s1602 = scalar_lea.vmem %s1, 32
      %v1603 = vld [vmem:[%s1602] sm:$0xf]
      %1605 = vset.pattern.permute.xlu0 0
      %1606 = vperm.xlu0 %1605, %v1603
      %v1607 = vpop.permute.xlu0 %1606
      %v1609 = vlaneseq
      %v1610 = vshrl.u32 %v1609, 7
      %v1611 = vsub.s32 0, %v1610
      %v1612 = vrot.slane %v1600, %v1611
      %v1613 = vlaneseq
      %v1614 = vshrl.u32 %v1613, 7
      %v1615 = vsub.s32 0, %v1614
      %v1616 = vrot.slane %v1601, %v1615
      %v1617 = vmul.f32 %v1607, %v1612
      %v1618 = vmul.f32 %v1607, %v1616
      %1619 = vset.pattern.permute.xlu0 1
      %1620 = vperm.xlu0 %1619, %v1603
      %v1621 = vpop.permute.xlu0 %1620
      %v1623 = vlaneseq
      %v1624 = vshrl.u32 %v1623, 7
      %v1625 = vsub.s32 1, %v1624
      %v1626 = vrot.slane %v1600, %v1625
      %v1627 = vlaneseq
      %v1628 = vshrl.u32 %v1627, 7
      %v1629 = vsub.s32 1, %v1628
      %v1630 = vrot.slane %v1601, %v1629
      %v1631 = vmul.f32 %v1621, %v1626
      %v1632 = vmul.f32 %v1621, %v1630
      %v1633 = vadd.f32 %v1617, %v1631
      %v1634 = vadd.f32 %v1618, %v1632
      %1635 = vset.pattern.permute.xlu0 2
      %1636 = vperm.xlu0 %1635, %v1603
      %v1637 = vpop.permute.xlu0 %1636
      %v1639 = vlaneseq
      %v1640 = vshrl.u32 %v1639, 7
      %v1641 = vsub.s32 2, %v1640
      %v1642 = vrot.slane %v1600, %v1641
      %v1643 = vlaneseq
      %v1644 = vshrl.u32 %v1643, 7
      %v1645 = vsub.s32 2, %v1644
      %v1646 = vrot.slane %v1601, %v1645
      %v1647 = vmul.f32 %v1637, %v1642
      %v1648 = vmul.f32 %v1637, %v1646
      %v1649 = vadd.f32 %v1633, %v1647
      %v1650 = vadd.f32 %v1634, %v1648
      %1651 = vset.pattern.permute.xlu0 3
      %1652 = vperm.xlu0 %1651, %v1603
      %v1653 = vpop.permute.xlu0 %1652
      %v1655 = vlaneseq
      %v1656 = vshrl.u32 %v1655, 7
      %v1657 = vsub.s32 3, %v1656
      %v1658 = vrot.slane %v1600, %v1657
      %v1659 = vlaneseq
      %v1660 = vshrl.u32 %v1659, 7
      %v1661 = vsub.s32 3, %v1660
      %v1662 = vrot.slane %v1601, %v1661
      %v1663 = vmul.f32 %v1653, %v1658
      %v1664 = vmul.f32 %v1653, %v1662
      %v1665 = vadd.f32 %v1649, %v1663
      %v1666 = vadd.f32 %v1650, %v1664
      %1667 = vset.pattern.permute.xlu0 4
      %1668 = vperm.xlu0 %1667, %v1603
      %v1669 = vpop.permute.xlu0 %1668
      %v1671 = vlaneseq
      %v1672 = vshrl.u32 %v1671, 7
      %v1673 = vsub.s32 4, %v1672
      %v1674 = vrot.slane %v1600, %v1673
      %v1675 = vlaneseq
      %v1676 = vshrl.u32 %v1675, 7
      %v1677 = vsub.s32 4, %v1676
      %v1678 = vrot.slane %v1601, %v1677
      %v1679 = vmul.f32 %v1669, %v1674
      %v1680 = vmul.f32 %v1669, %v1678
      %v1681 = vadd.f32 %v1665, %v1679
      %v1682 = vadd.f32 %v1666, %v1680
      %1683 = vset.pattern.permute.xlu0 5
      %1684 = vperm.xlu0 %1683, %v1603
      %v1685 = vpop.permute.xlu0 %1684
      %v1687 = vlaneseq
      %v1688 = vshrl.u32 %v1687, 7
      %v1689 = vsub.s32 5, %v1688
      %v1690 = vrot.slane %v1600, %v1689
      %v1691 = vlaneseq
      %v1692 = vshrl.u32 %v1691, 7
      %v1693 = vsub.s32 5, %v1692
      %v1694 = vrot.slane %v1601, %v1693
      %v1695 = vmul.f32 %v1685, %v1690
      %v1696 = vmul.f32 %v1685, %v1694
      %v1697 = vadd.f32 %v1681, %v1695
      %v1698 = vadd.f32 %v1682, %v1696
      %1699 = vset.pattern.permute.xlu0 6
      %1700 = vperm.xlu0 %1699, %v1603
      %v1701 = vpop.permute.xlu0 %1700
      %v1703 = vlaneseq
      %v1704 = vshrl.u32 %v1703, 7
      %v1705 = vsub.s32 6, %v1704
      %v1706 = vrot.slane %v1600, %v1705
      %v1707 = vlaneseq
      %v1708 = vshrl.u32 %v1707, 7
      %v1709 = vsub.s32 6, %v1708
      %v1710 = vrot.slane %v1601, %v1709
      %v1711 = vmul.f32 %v1701, %v1706
      %v1712 = vmul.f32 %v1701, %v1710
      %v1713 = vadd.f32 %v1697, %v1711
      %v1714 = vadd.f32 %v1698, %v1712
      %1715 = vset.pattern.permute.xlu0 7
      %1716 = vperm.xlu0 %1715, %v1603
      %v1717 = vpop.permute.xlu0 %1716
      %v1719 = vlaneseq
      %v1720 = vshrl.u32 %v1719, 7
      %v1721 = vsub.s32 7, %v1720
      %v1722 = vrot.slane %v1600, %v1721
      %v1723 = vlaneseq
      %v1724 = vshrl.u32 %v1723, 7
      %v1725 = vsub.s32 7, %v1724
      %v1726 = vrot.slane %v1601, %v1725
      %v1727 = vmul.f32 %v1717, %v1722
      %v1728 = vmul.f32 %v1717, %v1726
      %v1729 = vadd.f32 %v1713, %v1727
      %v1730 = vadd.f32 %v1714, %v1728
      %v1731 = vadd.f32 %v1587, %v1729
      %v1732 = vadd.f32 %v1588, %v1730
      %v1733 = vld [vmem:[%s2] sm:$0xf]
      %1735 = vset.pattern.permute.xlu0 0
      %1736 = vperm.xlu0 %1735, %v1733
      %v1737 = vpop.permute.xlu0 %1736
      %v1739 = vadd.f32 %v1731, %v1737
      %v1740 = vadd.f32 %v1732, %v1737
      %vm1741 = vcmp.ge.f32.partialorder %v1739, 0.0
      %vm1742 = vcmp.ge.f32.partialorder %v1740, 0.0
      %v1743 = vstv %s361
      %v1744 = vmul.f32 %v1743, %v1739
      %v1745 = vmul.f32 %v1743, %v1740
      %v1746 = vsel %vm1741, %v1739, %v1744
      %v1747 = vsel %vm1742, %v1740, %v1745
      %1748 = vst [vmem:[#allocation3] sm:$0xff] 0.0
      %1749 = vst [vmem:[#allocation3 + $0x8] sm:$0xff] 0.0
      %v1752 = vcombine.low %v1746, %v1747
      %1754 = vst [vmem:[#allocation3 + $0x4] sm:$0xff] %v1752
      %v1755 = vld [vmem:[#allocation3] sm:$0xff]
      %v1756 = vld [vmem:[#allocation3 + $0x8] sm:$0xf]
      %v1759 = vcombine.high %v1755, %v1755
      %1760 = vrot.lane.b32.xlu0 %v1755, 17
      %v1761 = vpop.permute.xlu0 %1760
      %1762 = vrot.lane.b32.xlu0 %v1759, 17
      %v1763 = vpop.permute.xlu0 %1762
      %1764 = vrot.lane.b32.xlu0 %v1756, 17
      %v1765 = vpop.permute.xlu0 %1764
      %v1766 = vsel %vm415, %v1761, %v1763
      %v1767 = vsel %vm415, %v1763, %v1765
      %v1770 = vsel %vm404, %v1766, 0.0
      %v1771 = vsel %vm405, %v1767, 0.0
      %v1772 = vld [vmem:[%s3] sm:$0xf]
      %1774 = vset.pattern.permute.xlu0 0
      %1775 = vperm.xlu0 %1774, %v1772
      %v1776 = vpop.permute.xlu0 %1775
      %v1778 = vlaneseq
      %v1779 = vshrl.u32 %v1778, 7
      %v1780 = vsub.s32 0, %v1779
      %v1781 = vrot.slane %v1770, %v1780
      %v1782 = vlaneseq
      %v1783 = vshrl.u32 %v1782, 7
      %v1784 = vsub.s32 0, %v1783
      %v1785 = vrot.slane %v1771, %v1784
      %v1786 = vmul.f32 %v1776, %v1781
      %v1787 = vmul.f32 %v1776, %v1785
      %1788 = vset.pattern.permute.xlu0 1
      %1789 = vperm.xlu0 %1788, %v1772
      %v1790 = vpop.permute.xlu0 %1789
      %v1792 = vlaneseq
      %v1793 = vshrl.u32 %v1792, 7
      %v1794 = vsub.s32 1, %v1793
      %v1795 = vrot.slane %v1770, %v1794
      %v1796 = vlaneseq
      %v1797 = vshrl.u32 %v1796, 7
      %v1798 = vsub.s32 1, %v1797
      %v1799 = vrot.slane %v1771, %v1798
      %v1800 = vmul.f32 %v1790, %v1795
      %v1801 = vmul.f32 %v1790, %v1799
      %v1802 = vadd.f32 %v1786, %v1800
      %v1803 = vadd.f32 %v1787, %v1801
      %1804 = vset.pattern.permute.xlu0 2
      %1805 = vperm.xlu0 %1804, %v1772
      %v1806 = vpop.permute.xlu0 %1805
      %v1808 = vlaneseq
      %v1809 = vshrl.u32 %v1808, 7
      %v1810 = vsub.s32 2, %v1809
      %v1811 = vrot.slane %v1770, %v1810
      %v1812 = vlaneseq
      %v1813 = vshrl.u32 %v1812, 7
      %v1814 = vsub.s32 2, %v1813
      %v1815 = vrot.slane %v1771, %v1814
      %v1816 = vmul.f32 %v1806, %v1811
      %v1817 = vmul.f32 %v1806, %v1815
      %v1818 = vadd.f32 %v1802, %v1816
      %v1819 = vadd.f32 %v1803, %v1817
      %1820 = vset.pattern.permute.xlu0 3
      %1821 = vperm.xlu0 %1820, %v1772
      %v1822 = vpop.permute.xlu0 %1821
      %v1824 = vlaneseq
      %v1825 = vshrl.u32 %v1824, 7
      %v1826 = vsub.s32 3, %v1825
      %v1827 = vrot.slane %v1770, %v1826
      %v1828 = vlaneseq
      %v1829 = vshrl.u32 %v1828, 7
      %v1830 = vsub.s32 3, %v1829
      %v1831 = vrot.slane %v1771, %v1830
      %v1832 = vmul.f32 %v1822, %v1827
      %v1833 = vmul.f32 %v1822, %v1831
      %v1834 = vadd.f32 %v1818, %v1832
      %v1835 = vadd.f32 %v1819, %v1833
      %v1836 = vld [vmem:[#allocation3] sm:$0xff]
      %v1837 = vld [vmem:[#allocation3 + $0x8] sm:$0xf]
      %s1838 = scalar_lea.vmem %s3, 4
      %v1839 = vld [vmem:[%s1838] sm:$0xf]
      %1841 = vset.pattern.permute.xlu0 0
      %1842 = vperm.xlu0 %1841, %v1839
      %v1843 = vpop.permute.xlu0 %1842
      %v1847 = vlaneseq
      %v1848 = vshrl.u32 %v1847, 7
      %v1849 = vsub.s32 0, %v1848
      %v1850 = vrot.slane %v1836, %v1849
      %v1851 = vlaneseq
      %v1852 = vshrl.u32 %v1851, 7
      %v1853 = vsub.s32 4, %v1852
      %v1854 = vrot.slane %v1836, %v1853
      %v1855 = vlaneseq
      %v1856 = vshrl.u32 %v1855, 7
      %v1857 = vsub.s32 0, %v1856
      %v1858 = vrot.slane %v1837, %v1857
      %v1862 = vlaneseq
      %v1863 = vshrl.u32 %v1862, 7
      %v1864 = vsub.s32 0, %v1863
      %v1865 = vrot.slane %v1850, %v1864
      %v1866 = vlaneseq
      %v1867 = vshrl.u32 %v1866, 7
      %v1868 = vsub.s32 0, %v1867
      %v1869 = vrot.slane %v1854, %v1868
      %v1870 = vlaneseq
      %v1871 = vshrl.u32 %v1870, 7
      %v1872 = vsub.s32 0, %v1871
      %v1873 = vrot.slane %v1858, %v1872
      %v1874 = vmul.f32 %v1843, %v1865
      %v1875 = vmul.f32 %v1843, %v1869
      %v1876 = vmul.f32 %v1843, %v1873
      %1877 = vset.pattern.permute.xlu0 1
      %1878 = vperm.xlu0 %1877, %v1839
      %v1879 = vpop.permute.xlu0 %1878
      %v1881 = vlaneseq
      %v1882 = vshrl.u32 %v1881, 7
      %v1883 = vsub.s32 1, %v1882
      %v1884 = vrot.slane %v1836, %v1883
      %v1885 = vlaneseq
      %v1886 = vshrl.u32 %v1885, 7
      %v1887 = vsub.s32 5, %v1886
      %v1888 = vrot.slane %v1836, %v1887
      %v1889 = vlaneseq
      %v1890 = vshrl.u32 %v1889, 7
      %v1891 = vsub.s32 1, %v1890
      %v1892 = vrot.slane %v1837, %v1891
      %v1896 = vlaneseq
      %v1897 = vshrl.u32 %v1896, 7
      %v1898 = vsub.s32 1, %v1897
      %v1899 = vrot.slane %v1884, %v1898
      %v1900 = vlaneseq
      %v1901 = vshrl.u32 %v1900, 7
      %v1902 = vsub.s32 1, %v1901
      %v1903 = vrot.slane %v1888, %v1902
      %v1904 = vlaneseq
      %v1905 = vshrl.u32 %v1904, 7
      %v1906 = vsub.s32 1, %v1905
      %v1907 = vrot.slane %v1892, %v1906
      %v1908 = vmul.f32 %v1879, %v1899
      %v1909 = vmul.f32 %v1879, %v1903
      %v1910 = vmul.f32 %v1879, %v1907
      %v1911 = vadd.f32 %v1874, %v1908
      %v1912 = vadd.f32 %v1875, %v1909
      %v1913 = vadd.f32 %v1876, %v1910
      %1914 = vset.pattern.permute.xlu0 2
      %1915 = vperm.xlu0 %1914, %v1839
      %v1916 = vpop.permute.xlu0 %1915
      %v1918 = vlaneseq
      %v1919 = vshrl.u32 %v1918, 7
      %v1920 = vsub.s32 2, %v1919
      %v1921 = vrot.slane %v1836, %v1920
      %v1922 = vlaneseq
      %v1923 = vshrl.u32 %v1922, 7
      %v1924 = vsub.s32 6, %v1923
      %v1925 = vrot.slane %v1836, %v1924
      %v1926 = vlaneseq
      %v1927 = vshrl.u32 %v1926, 7
      %v1928 = vsub.s32 2, %v1927
      %v1929 = vrot.slane %v1837, %v1928
      %v1933 = vlaneseq
      %v1934 = vshrl.u32 %v1933, 7
      %v1935 = vsub.s32 2, %v1934
      %v1936 = vrot.slane %v1921, %v1935
      %v1937 = vlaneseq
      %v1938 = vshrl.u32 %v1937, 7
      %v1939 = vsub.s32 2, %v1938
      %v1940 = vrot.slane %v1925, %v1939
      %v1941 = vlaneseq
      %v1942 = vshrl.u32 %v1941, 7
      %v1943 = vsub.s32 2, %v1942
      %v1944 = vrot.slane %v1929, %v1943
      %v1945 = vmul.f32 %v1916, %v1936
      %v1946 = vmul.f32 %v1916, %v1940
      %v1947 = vmul.f32 %v1916, %v1944
      %v1948 = vadd.f32 %v1911, %v1945
      %v1949 = vadd.f32 %v1912, %v1946
      %v1950 = vadd.f32 %v1913, %v1947
      %1951 = vset.pattern.permute.xlu0 3
      %1952 = vperm.xlu0 %1951, %v1839
      %v1953 = vpop.permute.xlu0 %1952
      %v1955 = vlaneseq
      %v1956 = vshrl.u32 %v1955, 7
      %v1957 = vsub.s32 3, %v1956
      %v1958 = vrot.slane %v1836, %v1957
      %v1959 = vlaneseq
      %v1960 = vshrl.u32 %v1959, 7
      %v1961 = vsub.s32 7, %v1960
      %v1962 = vrot.slane %v1836, %v1961
      %v1963 = vlaneseq
      %v1964 = vshrl.u32 %v1963, 7
      %v1965 = vsub.s32 3, %v1964
      %v1966 = vrot.slane %v1837, %v1965
      %v1970 = vlaneseq
      %v1971 = vshrl.u32 %v1970, 7
      %v1972 = vsub.s32 3, %v1971
      %v1973 = vrot.slane %v1958, %v1972
      %v1974 = vlaneseq
      %v1975 = vshrl.u32 %v1974, 7
      %v1976 = vsub.s32 3, %v1975
      %v1977 = vrot.slane %v1962, %v1976
      %v1978 = vlaneseq
      %v1979 = vshrl.u32 %v1978, 7
      %v1980 = vsub.s32 3, %v1979
      %v1981 = vrot.slane %v1966, %v1980
      %v1982 = vmul.f32 %v1953, %v1973
      %v1983 = vmul.f32 %v1953, %v1977
      %v1984 = vmul.f32 %v1953, %v1981
      %v1985 = vadd.f32 %v1948, %v1982
      %v1986 = vadd.f32 %v1949, %v1983
      %v1987 = vadd.f32 %v1950, %v1984
      %1991 = vrot.lane.b32.xlu0 %v1985, 16
      %v1992 = vpop.permute.xlu0 %1991
      %1993 = vrot.lane.b32.xlu0 %v1986, 16
      %v1994 = vpop.permute.xlu0 %1993
      %1995 = vrot.lane.b32.xlu0 %v1987, 16
      %v1996 = vpop.permute.xlu0 %1995
      %v1997 = vsel %vm735, %v1992, %v1994
      %v1998 = vsel %vm735, %v1994, %v1996
      %v2001 = vadd.f32 %v1834, %v1997
      %v2002 = vadd.f32 %v1835, %v1998
      %v2003 = vcombine.high %v1836, %v1836
      %2004 = vrot.lane.b32.xlu0 %v1836, 15
      %v2005 = vpop.permute.xlu0 %2004
      %2006 = vrot.lane.b32.xlu0 %v2003, 15
      %v2007 = vpop.permute.xlu0 %2006
      %2008 = vrot.lane.b32.xlu0 %v1837, 15
      %v2009 = vpop.permute.xlu0 %2008
      %v2010 = vsel %vm754, %v2005, %v2007
      %v2011 = vsel %vm754, %v2007, %v2009
      %v2014 = vsel %vm746, %v2010, 0.0
      %v2015 = vsel %vm747, %v2011, 0.0
      %s2016 = scalar_lea.vmem %s3, 8
      %v2017 = vld [vmem:[%s2016] sm:$0xf]
      %2019 = vset.pattern.permute.xlu0 0
      %2020 = vperm.xlu0 %2019, %v2017
      %v2021 = vpop.permute.xlu0 %2020
      %v2023 = vlaneseq
      %v2024 = vshrl.u32 %v2023, 7
      %v2025 = vsub.s32 0, %v2024
      %v2026 = vrot.slane %v2014, %v2025
      %v2027 = vlaneseq
      %v2028 = vshrl.u32 %v2027, 7
      %v2029 = vsub.s32 0, %v2028
      %v2030 = vrot.slane %v2015, %v2029
      %v2031 = vmul.f32 %v2021, %v2026
      %v2032 = vmul.f32 %v2021, %v2030
      %2033 = vset.pattern.permute.xlu0 1
      %2034 = vperm.xlu0 %2033, %v2017
      %v2035 = vpop.permute.xlu0 %2034
      %v2037 = vlaneseq
      %v2038 = vshrl.u32 %v2037, 7
      %v2039 = vsub.s32 1, %v2038
      %v2040 = vrot.slane %v2014, %v2039
      %v2041 = vlaneseq
      %v2042 = vshrl.u32 %v2041, 7
      %v2043 = vsub.s32 1, %v2042
      %v2044 = vrot.slane %v2015, %v2043
      %v2045 = vmul.f32 %v2035, %v2040
      %v2046 = vmul.f32 %v2035, %v2044
      %v2047 = vadd.f32 %v2031, %v2045
      %v2048 = vadd.f32 %v2032, %v2046
      %2049 = vset.pattern.permute.xlu0 2
      %2050 = vperm.xlu0 %2049, %v2017
      %v2051 = vpop.permute.xlu0 %2050
      %v2053 = vlaneseq
      %v2054 = vshrl.u32 %v2053, 7
      %v2055 = vsub.s32 2, %v2054
      %v2056 = vrot.slane %v2014, %v2055
      %v2057 = vlaneseq
      %v2058 = vshrl.u32 %v2057, 7
      %v2059 = vsub.s32 2, %v2058
      %v2060 = vrot.slane %v2015, %v2059
      %v2061 = vmul.f32 %v2051, %v2056
      %v2062 = vmul.f32 %v2051, %v2060
      %v2063 = vadd.f32 %v2047, %v2061
      %v2064 = vadd.f32 %v2048, %v2062
      %2065 = vset.pattern.permute.xlu0 3
      %2066 = vperm.xlu0 %2065, %v2017
      %v2067 = vpop.permute.xlu0 %2066
      %v2069 = vlaneseq
      %v2070 = vshrl.u32 %v2069, 7
      %v2071 = vsub.s32 3, %v2070
      %v2072 = vrot.slane %v2014, %v2071
      %v2073 = vlaneseq
      %v2074 = vshrl.u32 %v2073, 7
      %v2075 = vsub.s32 3, %v2074
      %v2076 = vrot.slane %v2015, %v2075
      %v2077 = vmul.f32 %v2067, %v2072
      %v2078 = vmul.f32 %v2067, %v2076
      %v2079 = vadd.f32 %v2063, %v2077
      %v2080 = vadd.f32 %v2064, %v2078
      %v2081 = vadd.f32 %v2001, %v2079
      %v2082 = vadd.f32 %v2002, %v2080
      %v2083 = vld [vmem:[#allocation3] sm:$0xff]
      %v2084 = vld [vmem:[#allocation3 + $0x8] sm:$0xf]
      %v2087 = vcombine.high %v2083, %v2083
      %2088 = vrot.lane.b32.xlu0 %v2083, 1
      %v2089 = vpop.permute.xlu0 %2088
      %2090 = vrot.lane.b32.xlu0 %v2087, 1
      %v2091 = vpop.permute.xlu0 %2090
      %2092 = vrot.lane.b32.xlu0 %v2084, 1
      %v2093 = vpop.permute.xlu0 %2092
      %v2094 = vsel %vm898, %v2089, %v2091
      %v2095 = vsel %vm898, %v2091, %v2093
      %v2098 = vsel %vm404, %v2094, 0.0
      %v2099 = vsel %vm405, %v2095, 0.0
      %s2100 = scalar_lea.vmem %s3, 12
      %v2101 = vld [vmem:[%s2100] sm:$0xf]
      %2103 = vset.pattern.permute.xlu0 0
      %2104 = vperm.xlu0 %2103, %v2101
      %v2105 = vpop.permute.xlu0 %2104
      %v2107 = vlaneseq
      %v2108 = vshrl.u32 %v2107, 7
      %v2109 = vsub.s32 0, %v2108
      %v2110 = vrot.slane %v2098, %v2109
      %v2111 = vlaneseq
      %v2112 = vshrl.u32 %v2111, 7
      %v2113 = vsub.s32 0, %v2112
      %v2114 = vrot.slane %v2099, %v2113
      %v2115 = vmul.f32 %v2105, %v2110
      %v2116 = vmul.f32 %v2105, %v2114
      %2117 = vset.pattern.permute.xlu0 1
      %2118 = vperm.xlu0 %2117, %v2101
      %v2119 = vpop.permute.xlu0 %2118
      %v2121 = vlaneseq
      %v2122 = vshrl.u32 %v2121, 7
      %v2123 = vsub.s32 1, %v2122
      %v2124 = vrot.slane %v2098, %v2123
      %v2125 = vlaneseq
      %v2126 = vshrl.u32 %v2125, 7
      %v2127 = vsub.s32 1, %v2126
      %v2128 = vrot.slane %v2099, %v2127
      %v2129 = vmul.f32 %v2119, %v2124
      %v2130 = vmul.f32 %v2119, %v2128
      %v2131 = vadd.f32 %v2115, %v2129
      %v2132 = vadd.f32 %v2116, %v2130
      %2133 = vset.pattern.permute.xlu0 2
      %2134 = vperm.xlu0 %2133, %v2101
      %v2135 = vpop.permute.xlu0 %2134
      %v2137 = vlaneseq
      %v2138 = vshrl.u32 %v2137, 7
      %v2139 = vsub.s32 2, %v2138
      %v2140 = vrot.slane %v2098, %v2139
      %v2141 = vlaneseq
      %v2142 = vshrl.u32 %v2141, 7
      %v2143 = vsub.s32 2, %v2142
      %v2144 = vrot.slane %v2099, %v2143
      %v2145 = vmul.f32 %v2135, %v2140
      %v2146 = vmul.f32 %v2135, %v2144
      %v2147 = vadd.f32 %v2131, %v2145
      %v2148 = vadd.f32 %v2132, %v2146
      %2149 = vset.pattern.permute.xlu0 3
      %2150 = vperm.xlu0 %2149, %v2101
      %v2151 = vpop.permute.xlu0 %2150
      %v2153 = vlaneseq
      %v2154 = vshrl.u32 %v2153, 7
      %v2155 = vsub.s32 3, %v2154
      %v2156 = vrot.slane %v2098, %v2155
      %v2157 = vlaneseq
      %v2158 = vshrl.u32 %v2157, 7
      %v2159 = vsub.s32 3, %v2158
      %v2160 = vrot.slane %v2099, %v2159
      %v2161 = vmul.f32 %v2151, %v2156
      %v2162 = vmul.f32 %v2151, %v2160
      %v2163 = vadd.f32 %v2147, %v2161
      %v2164 = vadd.f32 %v2148, %v2162
      %v2165 = vadd.f32 %v2081, %v2163
      %v2166 = vadd.f32 %v2082, %v2164
      %v2167 = vld [vmem:[#allocation3 + $0x4] sm:$0xff]
      %s2168 = scalar_lea.vmem %s3, 16
      %v2169 = vld [vmem:[%s2168] sm:$0xf]
      %2171 = vset.pattern.permute.xlu0 0
      %2172 = vperm.xlu0 %2171, %v2169
      %v2173 = vpop.permute.xlu0 %2172
      %v2176 = vlaneseq
      %v2177 = vshrl.u32 %v2176, 7
      %v2178 = vsub.s32 0, %v2177
      %v2179 = vrot.slane %v2167, %v2178
      %v2180 = vlaneseq
      %v2181 = vshrl.u32 %v2180, 7
      %v2182 = vsub.s32 4, %v2181
      %v2183 = vrot.slane %v2167, %v2182
      %v2186 = vlaneseq
      %v2187 = vshrl.u32 %v2186, 7
      %v2188 = vsub.s32 0, %v2187
      %v2189 = vrot.slane %v2179, %v2188
      %v2190 = vlaneseq
      %v2191 = vshrl.u32 %v2190, 7
      %v2192 = vsub.s32 0, %v2191
      %v2193 = vrot.slane %v2183, %v2192
      %v2194 = vmul.f32 %v2173, %v2189
      %v2195 = vmul.f32 %v2173, %v2193
      %2196 = vset.pattern.permute.xlu0 1
      %2197 = vperm.xlu0 %2196, %v2169
      %v2198 = vpop.permute.xlu0 %2197
      %v2200 = vlaneseq
      %v2201 = vshrl.u32 %v2200, 7
      %v2202 = vsub.s32 1, %v2201
      %v2203 = vrot.slane %v2167, %v2202
      %v2204 = vlaneseq
      %v2205 = vshrl.u32 %v2204, 7
      %v2206 = vsub.s32 5, %v2205
      %v2207 = vrot.slane %v2167, %v2206
      %v2210 = vlaneseq
      %v2211 = vshrl.u32 %v2210, 7
      %v2212 = vsub.s32 1, %v2211
      %v2213 = vrot.slane %v2203, %v2212
      %v2214 = vlaneseq
      %v2215 = vshrl.u32 %v2214, 7
      %v2216 = vsub.s32 1, %v2215
      %v2217 = vrot.slane %v2207, %v2216
      %v2218 = vmul.f32 %v2198, %v2213
      %v2219 = vmul.f32 %v2198, %v2217
      %v2220 = vadd.f32 %v2194, %v2218
      %v2221 = vadd.f32 %v2195, %v2219
      %2222 = vset.pattern.permute.xlu0 2
      %2223 = vperm.xlu0 %2222, %v2169
      %v2224 = vpop.permute.xlu0 %2223
      %v2226 = vlaneseq
      %v2227 = vshrl.u32 %v2226, 7
      %v2228 = vsub.s32 2, %v2227
      %v2229 = vrot.slane %v2167, %v2228
      %v2230 = vlaneseq
      %v2231 = vshrl.u32 %v2230, 7
      %v2232 = vsub.s32 6, %v2231
      %v2233 = vrot.slane %v2167, %v2232
      %v2236 = vlaneseq
      %v2237 = vshrl.u32 %v2236, 7
      %v2238 = vsub.s32 2, %v2237
      %v2239 = vrot.slane %v2229, %v2238
      %v2240 = vlaneseq
      %v2241 = vshrl.u32 %v2240, 7
      %v2242 = vsub.s32 2, %v2241
      %v2243 = vrot.slane %v2233, %v2242
      %v2244 = vmul.f32 %v2224, %v2239
      %v2245 = vmul.f32 %v2224, %v2243
      %v2246 = vadd.f32 %v2220, %v2244
      %v2247 = vadd.f32 %v2221, %v2245
      %2248 = vset.pattern.permute.xlu0 3
      %2249 = vperm.xlu0 %2248, %v2169
      %v2250 = vpop.permute.xlu0 %2249
      %v2252 = vlaneseq
      %v2253 = vshrl.u32 %v2252, 7
      %v2254 = vsub.s32 3, %v2253
      %v2255 = vrot.slane %v2167, %v2254
      %v2256 = vlaneseq
      %v2257 = vshrl.u32 %v2256, 7
      %v2258 = vsub.s32 7, %v2257
      %v2259 = vrot.slane %v2167, %v2258
      %v2262 = vlaneseq
      %v2263 = vshrl.u32 %v2262, 7
      %v2264 = vsub.s32 3, %v2263
      %v2265 = vrot.slane %v2255, %v2264
      %v2266 = vlaneseq
      %v2267 = vshrl.u32 %v2266, 7
      %v2268 = vsub.s32 3, %v2267
      %v2269 = vrot.slane %v2259, %v2268
      %v2270 = vmul.f32 %v2250, %v2265
      %v2271 = vmul.f32 %v2250, %v2269
      %v2272 = vadd.f32 %v2246, %v2270
      %v2273 = vadd.f32 %v2247, %v2271
      %v2274 = vadd.f32 %v2165, %v2272
      %v2275 = vadd.f32 %v2166, %v2273
      %v2276 = vld [vmem:[#allocation3 + $0x4] sm:$0xff]
      %v2277 = vld [vmem:[#allocation3 + $0xc] sm:$0xf]
      %v2280 = vcombine.high %v2276, %v2276
      %2281 = vrot.lane.b32.xlu0 %v2276, 127
      %v2282 = vpop.permute.xlu0 %2281
      %2283 = vrot.lane.b32.xlu0 %v2280, 127
      %v2284 = vpop.permute.xlu0 %2283
      %2285 = vrot.lane.b32.xlu0 %v2277, 127
      %v2286 = vpop.permute.xlu0 %2285
      %v2287 = vsel %vm1115, %v2282, %v2284
      %v2288 = vsel %vm1115, %v2284, %v2286
      %v2291 = vsel %vm746, %v2287, 0.0
      %v2292 = vsel %vm747, %v2288, 0.0
      %s2293 = scalar_lea.vmem %s3, 20
      %v2294 = vld [vmem:[%s2293] sm:$0xf]
      %2296 = vset.pattern.permute.xlu0 0
      %2297 = vperm.xlu0 %2296, %v2294
      %v2298 = vpop.permute.xlu0 %2297
      %v2300 = vlaneseq
      %v2301 = vshrl.u32 %v2300, 7
      %v2302 = vsub.s32 0, %v2301
      %v2303 = vrot.slane %v2291, %v2302
      %v2304 = vlaneseq
      %v2305 = vshrl.u32 %v2304, 7
      %v2306 = vsub.s32 0, %v2305
      %v2307 = vrot.slane %v2292, %v2306
      %v2308 = vmul.f32 %v2298, %v2303
      %v2309 = vmul.f32 %v2298, %v2307
      %2310 = vset.pattern.permute.xlu0 1
      %2311 = vperm.xlu0 %2310, %v2294
      %v2312 = vpop.permute.xlu0 %2311
      %v2314 = vlaneseq
      %v2315 = vshrl.u32 %v2314, 7
      %v2316 = vsub.s32 1, %v2315
      %v2317 = vrot.slane %v2291, %v2316
      %v2318 = vlaneseq
      %v2319 = vshrl.u32 %v2318, 7
      %v2320 = vsub.s32 1, %v2319
      %v2321 = vrot.slane %v2292, %v2320
      %v2322 = vmul.f32 %v2312, %v2317
      %v2323 = vmul.f32 %v2312, %v2321
      %v2324 = vadd.f32 %v2308, %v2322
      %v2325 = vadd.f32 %v2309, %v2323
      %2326 = vset.pattern.permute.xlu0 2
      %2327 = vperm.xlu0 %2326, %v2294
      %v2328 = vpop.permute.xlu0 %2327
      %v2330 = vlaneseq
      %v2331 = vshrl.u32 %v2330, 7
      %v2332 = vsub.s32 2, %v2331
      %v2333 = vrot.slane %v2291, %v2332
      %v2334 = vlaneseq
      %v2335 = vshrl.u32 %v2334, 7
      %v2336 = vsub.s32 2, %v2335
      %v2337 = vrot.slane %v2292, %v2336
      %v2338 = vmul.f32 %v2328, %v2333
      %v2339 = vmul.f32 %v2328, %v2337
      %v2340 = vadd.f32 %v2324, %v2338
      %v2341 = vadd.f32 %v2325, %v2339
      %2342 = vset.pattern.permute.xlu0 3
      %2343 = vperm.xlu0 %2342, %v2294
      %v2344 = vpop.permute.xlu0 %2343
      %v2346 = vlaneseq
      %v2347 = vshrl.u32 %v2346, 7
      %v2348 = vsub.s32 3, %v2347
      %v2349 = vrot.slane %v2291, %v2348
      %v2350 = vlaneseq
      %v2351 = vshrl.u32 %v2350, 7
      %v2352 = vsub.s32 3, %v2351
      %v2353 = vrot.slane %v2292, %v2352
      %v2354 = vmul.f32 %v2344, %v2349
      %v2355 = vmul.f32 %v2344, %v2353
      %v2356 = vadd.f32 %v2340, %v2354
      %v2357 = vadd.f32 %v2341, %v2355
      %v2358 = vadd.f32 %v2274, %v2356
      %v2359 = vadd.f32 %v2275, %v2357
      %v2360 = vld [vmem:[#allocation3 + $0x4] sm:$0xff]
      %v2361 = vld [vmem:[#allocation3 + $0xc] sm:$0xf]
      %v2364 = vcombine.high %v2360, %v2360
      %2365 = vrot.lane.b32.xlu0 %v2360, 113
      %v2366 = vpop.permute.xlu0 %2365
      %2367 = vrot.lane.b32.xlu0 %v2364, 113
      %v2368 = vpop.permute.xlu0 %2367
      %2369 = vrot.lane.b32.xlu0 %v2361, 113
      %v2370 = vpop.permute.xlu0 %2369
      %v2371 = vsel %vm1259, %v2366, %v2368
      %v2372 = vsel %vm1259, %v2368, %v2370
      %v2375 = vsel %vm404, %v2371, 0.0
      %v2376 = vsel %vm405, %v2372, 0.0
      %s2377 = scalar_lea.vmem %s3, 24
      %v2378 = vld [vmem:[%s2377] sm:$0xf]
      %2380 = vset.pattern.permute.xlu0 0
      %2381 = vperm.xlu0 %2380, %v2378
      %v2382 = vpop.permute.xlu0 %2381
      %v2384 = vlaneseq
      %v2385 = vshrl.u32 %v2384, 7
      %v2386 = vsub.s32 0, %v2385
      %v2387 = vrot.slane %v2375, %v2386
      %v2388 = vlaneseq
      %v2389 = vshrl.u32 %v2388, 7
      %v2390 = vsub.s32 0, %v2389
      %v2391 = vrot.slane %v2376, %v2390
      %v2392 = vmul.f32 %v2382, %v2387
      %v2393 = vmul.f32 %v2382, %v2391
      %2394 = vset.pattern.permute.xlu0 1
      %2395 = vperm.xlu0 %2394, %v2378
      %v2396 = vpop.permute.xlu0 %2395
      %v2398 = vlaneseq
      %v2399 = vshrl.u32 %v2398, 7
      %v2400 = vsub.s32 1, %v2399
      %v2401 = vrot.slane %v2375, %v2400
      %v2402 = vlaneseq
      %v2403 = vshrl.u32 %v2402, 7
      %v2404 = vsub.s32 1, %v2403
      %v2405 = vrot.slane %v2376, %v2404
      %v2406 = vmul.f32 %v2396, %v2401
      %v2407 = vmul.f32 %v2396, %v2405
      %v2408 = vadd.f32 %v2392, %v2406
      %v2409 = vadd.f32 %v2393, %v2407
      %2410 = vset.pattern.permute.xlu0 2
      %2411 = vperm.xlu0 %2410, %v2378
      %v2412 = vpop.permute.xlu0 %2411
      %v2414 = vlaneseq
      %v2415 = vshrl.u32 %v2414, 7
      %v2416 = vsub.s32 2, %v2415
      %v2417 = vrot.slane %v2375, %v2416
      %v2418 = vlaneseq
      %v2419 = vshrl.u32 %v2418, 7
      %v2420 = vsub.s32 2, %v2419
      %v2421 = vrot.slane %v2376, %v2420
      %v2422 = vmul.f32 %v2412, %v2417
      %v2423 = vmul.f32 %v2412, %v2421
      %v2424 = vadd.f32 %v2408, %v2422
      %v2425 = vadd.f32 %v2409, %v2423
      %2426 = vset.pattern.permute.xlu0 3
      %2427 = vperm.xlu0 %2426, %v2378
      %v2428 = vpop.permute.xlu0 %2427
      %v2430 = vlaneseq
      %v2431 = vshrl.u32 %v2430, 7
      %v2432 = vsub.s32 3, %v2431
      %v2433 = vrot.slane %v2375, %v2432
      %v2434 = vlaneseq
      %v2435 = vshrl.u32 %v2434, 7
      %v2436 = vsub.s32 3, %v2435
      %v2437 = vrot.slane %v2376, %v2436
      %v2438 = vmul.f32 %v2428, %v2433
      %v2439 = vmul.f32 %v2428, %v2437
      %v2440 = vadd.f32 %v2424, %v2438
      %v2441 = vadd.f32 %v2425, %v2439
      %v2442 = vadd.f32 %v2358, %v2440
      %v2443 = vadd.f32 %v2359, %v2441
      %v2444 = vld [vmem:[#allocation3 + $0x4] sm:$0xff]
      %v2445 = vld [vmem:[#allocation3 + $0xc] sm:$0xf]
      %s2446 = scalar_lea.vmem %s3, 28
      %v2447 = vld [vmem:[%s2446] sm:$0xf]
      %2449 = vset.pattern.permute.xlu0 0
      %2450 = vperm.xlu0 %2449, %v2447
      %v2451 = vpop.permute.xlu0 %2450
      %v2455 = vlaneseq
      %v2456 = vshrl.u32 %v2455, 7
      %v2457 = vsub.s32 0, %v2456
      %v2458 = vrot.slane %v2444, %v2457
      %v2459 = vlaneseq
      %v2460 = vshrl.u32 %v2459, 7
      %v2461 = vsub.s32 4, %v2460
      %v2462 = vrot.slane %v2444, %v2461
      %v2463 = vlaneseq
      %v2464 = vshrl.u32 %v2463, 7
      %v2465 = vsub.s32 0, %v2464
      %v2466 = vrot.slane %v2445, %v2465
      %v2470 = vlaneseq
      %v2471 = vshrl.u32 %v2470, 7
      %v2472 = vsub.s32 0, %v2471
      %v2473 = vrot.slane %v2458, %v2472
      %v2474 = vlaneseq
      %v2475 = vshrl.u32 %v2474, 7
      %v2476 = vsub.s32 0, %v2475
      %v2477 = vrot.slane %v2462, %v2476
      %v2478 = vlaneseq
      %v2479 = vshrl.u32 %v2478, 7
      %v2480 = vsub.s32 0, %v2479
      %v2481 = vrot.slane %v2466, %v2480
      %v2482 = vmul.f32 %v2451, %v2473
      %v2483 = vmul.f32 %v2451, %v2477
      %v2484 = vmul.f32 %v2451, %v2481
      %2485 = vset.pattern.permute.xlu0 1
      %2486 = vperm.xlu0 %2485, %v2447
      %v2487 = vpop.permute.xlu0 %2486
      %v2489 = vlaneseq
      %v2490 = vshrl.u32 %v2489, 7
      %v2491 = vsub.s32 1, %v2490
      %v2492 = vrot.slane %v2444, %v2491
      %v2493 = vlaneseq
      %v2494 = vshrl.u32 %v2493, 7
      %v2495 = vsub.s32 5, %v2494
      %v2496 = vrot.slane %v2444, %v2495
      %v2497 = vlaneseq
      %v2498 = vshrl.u32 %v2497, 7
      %v2499 = vsub.s32 1, %v2498
      %v2500 = vrot.slane %v2445, %v2499
      %v2504 = vlaneseq
      %v2505 = vshrl.u32 %v2504, 7
      %v2506 = vsub.s32 1, %v2505
      %v2507 = vrot.slane %v2492, %v2506
      %v2508 = vlaneseq
      %v2509 = vshrl.u32 %v2508, 7
      %v2510 = vsub.s32 1, %v2509
      %v2511 = vrot.slane %v2496, %v2510
      %v2512 = vlaneseq
      %v2513 = vshrl.u32 %v2512, 7
      %v2514 = vsub.s32 1, %v2513
      %v2515 = vrot.slane %v2500, %v2514
      %v2516 = vmul.f32 %v2487, %v2507
      %v2517 = vmul.f32 %v2487, %v2511
      %v2518 = vmul.f32 %v2487, %v2515
      %v2519 = vadd.f32 %v2482, %v2516
      %v2520 = vadd.f32 %v2483, %v2517
      %v2521 = vadd.f32 %v2484, %v2518
      %2522 = vset.pattern.permute.xlu0 2
      %2523 = vperm.xlu0 %2522, %v2447
      %v2524 = vpop.permute.xlu0 %2523
      %v2526 = vlaneseq
      %v2527 = vshrl.u32 %v2526, 7
      %v2528 = vsub.s32 2, %v2527
      %v2529 = vrot.slane %v2444, %v2528
      %v2530 = vlaneseq
      %v2531 = vshrl.u32 %v2530, 7
      %v2532 = vsub.s32 6, %v2531
      %v2533 = vrot.slane %v2444, %v2532
      %v2534 = vlaneseq
      %v2535 = vshrl.u32 %v2534, 7
      %v2536 = vsub.s32 2, %v2535
      %v2537 = vrot.slane %v2445, %v2536
      %v2541 = vlaneseq
      %v2542 = vshrl.u32 %v2541, 7
      %v2543 = vsub.s32 2, %v2542
      %v2544 = vrot.slane %v2529, %v2543
      %v2545 = vlaneseq
      %v2546 = vshrl.u32 %v2545, 7
      %v2547 = vsub.s32 2, %v2546
      %v2548 = vrot.slane %v2533, %v2547
      %v2549 = vlaneseq
      %v2550 = vshrl.u32 %v2549, 7
      %v2551 = vsub.s32 2, %v2550
      %v2552 = vrot.slane %v2537, %v2551
      %v2553 = vmul.f32 %v2524, %v2544
      %v2554 = vmul.f32 %v2524, %v2548
      %v2555 = vmul.f32 %v2524, %v2552
      %v2556 = vadd.f32 %v2519, %v2553
      %v2557 = vadd.f32 %v2520, %v2554
      %v2558 = vadd.f32 %v2521, %v2555
      %2559 = vset.pattern.permute.xlu0 3
      %2560 = vperm.xlu0 %2559, %v2447
      %v2561 = vpop.permute.xlu0 %2560
      %v2563 = vlaneseq
      %v2564 = vshrl.u32 %v2563, 7
      %v2565 = vsub.s32 3, %v2564
      %v2566 = vrot.slane %v2444, %v2565
      %v2567 = vlaneseq
      %v2568 = vshrl.u32 %v2567, 7
      %v2569 = vsub.s32 7, %v2568
      %v2570 = vrot.slane %v2444, %v2569
      %v2571 = vlaneseq
      %v2572 = vshrl.u32 %v2571, 7
      %v2573 = vsub.s32 3, %v2572
      %v2574 = vrot.slane %v2445, %v2573
      %v2578 = vlaneseq
      %v2579 = vshrl.u32 %v2578, 7
      %v2580 = vsub.s32 3, %v2579
      %v2581 = vrot.slane %v2566, %v2580
      %v2582 = vlaneseq
      %v2583 = vshrl.u32 %v2582, 7
      %v2584 = vsub.s32 3, %v2583
      %v2585 = vrot.slane %v2570, %v2584
      %v2586 = vlaneseq
      %v2587 = vshrl.u32 %v2586, 7
      %v2588 = vsub.s32 3, %v2587
      %v2589 = vrot.slane %v2574, %v2588
      %v2590 = vmul.f32 %v2561, %v2581
      %v2591 = vmul.f32 %v2561, %v2585
      %v2592 = vmul.f32 %v2561, %v2589
      %v2593 = vadd.f32 %v2556, %v2590
      %v2594 = vadd.f32 %v2557, %v2591
      %v2595 = vadd.f32 %v2558, %v2592
      %2599 = vrot.lane.b32.xlu0 %v2593, 112
      %v2600 = vpop.permute.xlu0 %2599
      %2601 = vrot.lane.b32.xlu0 %v2594, 112
      %v2602 = vpop.permute.xlu0 %2601
      %2603 = vrot.lane.b32.xlu0 %v2595, 112
      %v2604 = vpop.permute.xlu0 %2603
      %v2605 = vsel %vm1582, %v2600, %v2602
      %v2606 = vsel %vm1582, %v2602, %v2604
      %v2609 = vadd.f32 %v2442, %v2605
      %v2610 = vadd.f32 %v2443, %v2606
      %v2611 = vcombine.high %v2444, %v2444
      %2612 = vrot.lane.b32.xlu0 %v2444, 111
      %v2613 = vpop.permute.xlu0 %2612
      %2614 = vrot.lane.b32.xlu0 %v2611, 111
      %v2615 = vpop.permute.xlu0 %2614
      %2616 = vrot.lane.b32.xlu0 %v2445, 111
      %v2617 = vpop.permute.xlu0 %2616
      %v2618 = vsel %vm1595, %v2613, %v2615
      %v2619 = vsel %vm1595, %v2615, %v2617
      %v2622 = vsel %vm746, %v2618, 0.0
      %v2623 = vsel %vm747, %v2619, 0.0
      %s2624 = scalar_lea.vmem %s3, 32
      %v2625 = vld [vmem:[%s2624] sm:$0xf]
      %2627 = vset.pattern.permute.xlu0 0
      %2628 = vperm.xlu0 %2627, %v2625
      %v2629 = vpop.permute.xlu0 %2628
      %v2631 = vlaneseq
      %v2632 = vshrl.u32 %v2631, 7
      %v2633 = vsub.s32 0, %v2632
      %v2634 = vrot.slane %v2622, %v2633
      %v2635 = vlaneseq
      %v2636 = vshrl.u32 %v2635, 7
      %v2637 = vsub.s32 0, %v2636
      %v2638 = vrot.slane %v2623, %v2637
      %v2639 = vmul.f32 %v2629, %v2634
      %v2640 = vmul.f32 %v2629, %v2638
      %2641 = vset.pattern.permute.xlu0 1
      %2642 = vperm.xlu0 %2641, %v2625
      %v2643 = vpop.permute.xlu0 %2642
      %v2645 = vlaneseq
      %v2646 = vshrl.u32 %v2645, 7
      %v2647 = vsub.s32 1, %v2646
      %v2648 = vrot.slane %v2622, %v2647
      %v2649 = vlaneseq
      %v2650 = vshrl.u32 %v2649, 7
      %v2651 = vsub.s32 1, %v2650
      %v2652 = vrot.slane %v2623, %v2651
      %v2653 = vmul.f32 %v2643, %v2648
      %v2654 = vmul.f32 %v2643, %v2652
      %v2655 = vadd.f32 %v2639, %v2653
      %v2656 = vadd.f32 %v2640, %v2654
      %2657 = vset.pattern.permute.xlu0 2
      %2658 = vperm.xlu0 %2657, %v2625
      %v2659 = vpop.permute.xlu0 %2658
      %v2661 = vlaneseq
      %v2662 = vshrl.u32 %v2661, 7
      %v2663 = vsub.s32 2, %v2662
      %v2664 = vrot.slane %v2622, %v2663
      %v2665 = vlaneseq
      %v2666 = vshrl.u32 %v2665, 7
      %v2667 = vsub.s32 2, %v2666
      %v2668 = vrot.slane %v2623, %v2667
      %v2669 = vmul.f32 %v2659, %v2664
      %v2670 = vmul.f32 %v2659, %v2668
      %v2671 = vadd.f32 %v2655, %v2669
      %v2672 = vadd.f32 %v2656, %v2670
      %2673 = vset.pattern.permute.xlu0 3
      %2674 = vperm.xlu0 %2673, %v2625
      %v2675 = vpop.permute.xlu0 %2674
      %v2677 = vlaneseq
      %v2678 = vshrl.u32 %v2677, 7
      %v2679 = vsub.s32 3, %v2678
      %v2680 = vrot.slane %v2622, %v2679
      %v2681 = vlaneseq
      %v2682 = vshrl.u32 %v2681, 7
      %v2683 = vsub.s32 3, %v2682
      %v2684 = vrot.slane %v2623, %v2683
      %v2685 = vmul.f32 %v2675, %v2680
      %v2686 = vmul.f32 %v2675, %v2684
      %v2687 = vadd.f32 %v2671, %v2685
      %v2688 = vadd.f32 %v2672, %v2686
      %v2689 = vadd.f32 %v2609, %v2687
      %v2690 = vadd.f32 %v2610, %v2688
      %v2691 = vld [vmem:[%s4] sm:$0xf]
      %2693 = vset.pattern.permute.xlu0 0
      %2694 = vperm.xlu0 %2693, %v2691
      %v2695 = vpop.permute.xlu0 %2694
      %v2697 = vadd.f32 %v2689, %v2695
      %v2698 = vadd.f32 %v2690, %v2695
      %v2699 = vld [vmem:[%s5] sm:$0xf]
      %2701 = vset.pattern.permute.xlu0 0
      %2702 = vperm.xlu0 %2701, %v2699
      %v2703 = vpop.permute.xlu0 %2702
      %v2705 = vlaneseq
      %v2706 = vshrl.u32 %v2705, 7
      %v2707 = vsub.s32 0, %v2706
      %v2708 = vrot.slane %v389, %v2707
      %v2709 = vlaneseq
      %v2710 = vshrl.u32 %v2709, 7
      %v2711 = vsub.s32 0, %v2710
      %v2712 = vrot.slane %v390, %v2711
      %v2713 = vmul.f32 %v2703, %v2708
      %v2714 = vmul.f32 %v2703, %v2712
      %2715 = vset.pattern.permute.xlu0 1
      %2716 = vperm.xlu0 %2715, %v2699
      %v2717 = vpop.permute.xlu0 %2716
      %v2719 = vlaneseq
      %v2720 = vshrl.u32 %v2719, 7
      %v2721 = vsub.s32 1, %v2720
      %v2722 = vrot.slane %v389, %v2721
      %v2723 = vlaneseq
      %v2724 = vshrl.u32 %v2723, 7
      %v2725 = vsub.s32 1, %v2724
      %v2726 = vrot.slane %v390, %v2725
      %v2727 = vmul.f32 %v2717, %v2722
      %v2728 = vmul.f32 %v2717, %v2726
      %v2729 = vadd.f32 %v2713, %v2727
      %v2730 = vadd.f32 %v2714, %v2728
      %2731 = vset.pattern.permute.xlu0 2
      %2732 = vperm.xlu0 %2731, %v2699
      %v2733 = vpop.permute.xlu0 %2732
      %v2735 = vlaneseq
      %v2736 = vshrl.u32 %v2735, 7
      %v2737 = vsub.s32 2, %v2736
      %v2738 = vrot.slane %v389, %v2737
      %v2739 = vlaneseq
      %v2740 = vshrl.u32 %v2739, 7
      %v2741 = vsub.s32 2, %v2740
      %v2742 = vrot.slane %v390, %v2741
      %v2743 = vmul.f32 %v2733, %v2738
      %v2744 = vmul.f32 %v2733, %v2742
      %v2745 = vadd.f32 %v2729, %v2743
      %v2746 = vadd.f32 %v2730, %v2744
      %2747 = vset.pattern.permute.xlu0 3
      %2748 = vperm.xlu0 %2747, %v2699
      %v2749 = vpop.permute.xlu0 %2748
      %v2751 = vlaneseq
      %v2752 = vshrl.u32 %v2751, 7
      %v2753 = vsub.s32 3, %v2752
      %v2754 = vrot.slane %v389, %v2753
      %v2755 = vlaneseq
      %v2756 = vshrl.u32 %v2755, 7
      %v2757 = vsub.s32 3, %v2756
      %v2758 = vrot.slane %v390, %v2757
      %v2759 = vmul.f32 %v2749, %v2754
      %v2760 = vmul.f32 %v2749, %v2758
      %v2761 = vadd.f32 %v2745, %v2759
      %v2762 = vadd.f32 %v2746, %v2760
      %2763 = vset.pattern.permute.xlu0 4
      %2764 = vperm.xlu0 %2763, %v2699
      %v2765 = vpop.permute.xlu0 %2764
      %v2767 = vlaneseq
      %v2768 = vshrl.u32 %v2767, 7
      %v2769 = vsub.s32 4, %v2768
      %v2770 = vrot.slane %v389, %v2769
      %v2771 = vlaneseq
      %v2772 = vshrl.u32 %v2771, 7
      %v2773 = vsub.s32 4, %v2772
      %v2774 = vrot.slane %v390, %v2773
      %v2775 = vmul.f32 %v2765, %v2770
      %v2776 = vmul.f32 %v2765, %v2774
      %v2777 = vadd.f32 %v2761, %v2775
      %v2778 = vadd.f32 %v2762, %v2776
      %2779 = vset.pattern.permute.xlu0 5
      %2780 = vperm.xlu0 %2779, %v2699
      %v2781 = vpop.permute.xlu0 %2780
      %v2783 = vlaneseq
      %v2784 = vshrl.u32 %v2783, 7
      %v2785 = vsub.s32 5, %v2784
      %v2786 = vrot.slane %v389, %v2785
      %v2787 = vlaneseq
      %v2788 = vshrl.u32 %v2787, 7
      %v2789 = vsub.s32 5, %v2788
      %v2790 = vrot.slane %v390, %v2789
      %v2791 = vmul.f32 %v2781, %v2786
      %v2792 = vmul.f32 %v2781, %v2790
      %v2793 = vadd.f32 %v2777, %v2791
      %v2794 = vadd.f32 %v2778, %v2792
      %2795 = vset.pattern.permute.xlu0 6
      %2796 = vperm.xlu0 %2795, %v2699
      %v2797 = vpop.permute.xlu0 %2796
      %v2799 = vlaneseq
      %v2800 = vshrl.u32 %v2799, 7
      %v2801 = vsub.s32 6, %v2800
      %v2802 = vrot.slane %v389, %v2801
      %v2803 = vlaneseq
      %v2804 = vshrl.u32 %v2803, 7
      %v2805 = vsub.s32 6, %v2804
      %v2806 = vrot.slane %v390, %v2805
      %v2807 = vmul.f32 %v2797, %v2802
      %v2808 = vmul.f32 %v2797, %v2806
      %v2809 = vadd.f32 %v2793, %v2807
      %v2810 = vadd.f32 %v2794, %v2808
      %2811 = vset.pattern.permute.xlu0 7
      %2812 = vperm.xlu0 %2811, %v2699
      %v2813 = vpop.permute.xlu0 %2812
      %v2815 = vlaneseq
      %v2816 = vshrl.u32 %v2815, 7
      %v2817 = vsub.s32 7, %v2816
      %v2818 = vrot.slane %v389, %v2817
      %v2819 = vlaneseq
      %v2820 = vshrl.u32 %v2819, 7
      %v2821 = vsub.s32 7, %v2820
      %v2822 = vrot.slane %v390, %v2821
      %v2823 = vmul.f32 %v2813, %v2818
      %v2824 = vmul.f32 %v2813, %v2822
      %v2825 = vadd.f32 %v2809, %v2823
      %v2826 = vadd.f32 %v2810, %v2824
      %v2827 = vld [vmem:[%s6] sm:$0xf]
      %2829 = vset.pattern.permute.xlu0 0
      %2830 = vperm.xlu0 %2829, %v2827
      %v2831 = vpop.permute.xlu0 %2830
      %v2833 = vadd.f32 %v2825, %v2831
      %v2834 = vadd.f32 %v2826, %v2831
      %v2835 = vld [vmem:[%s7] sm:$0xf]
      %v2836 = vadd.f32 %v2697, %v2833
      %v2837 = vadd.f32 %v2698, %v2834
      %2839 = vset.pattern.permute.xlu0 0
      %2840 = vperm.xlu0 %2839, %v2835
      %v2841 = vpop.permute.xlu0 %2840
      %v2843 = vmul.f32 %v2841, %v2836
      %v2844 = vmul.f32 %v2841, %v2837
      %v2845 = vld [vmem:[%s8] sm:$0xf]
      %2847 = vset.pattern.permute.xlu0 0
      %2848 = vperm.xlu0 %2847, %v2845
      %v2849 = vpop.permute.xlu0 %2848
      %v2851 = vadd.f32 %v2843, %v2849
      %v2852 = vadd.f32 %v2844, %v2849
      %vm2853 = vcmp.ge.f32.partialorder %v2851, 0.0
      %vm2854 = vcmp.ge.f32.partialorder %v2852, 0.0
      %v2855 = vmul.f32 %v1743, %v2851
      %v2856 = vmul.f32 %v1743, %v2852
      %v2857 = vsel %vm2853, %v2851, %v2855
      %v2858 = vsel %vm2854, %v2852, %v2856
      %v2861 = vcombine.low %v2857, %v2858
      %2863 = vst [vmem:[%s360] sm:$0xff] %v2861
      %p2864 = scmp.lt.s32.totalorder %s22, 1
      %s2865 = scalar_select %p2864, %s22, 1
      %s2866 = smul.addr %s2865, 2
      %s2867 = smul.addr %s2866, 4
      %s2868 = scalar_lea.vmem %s10, %s2867
      // Predicated region
      $region61: #{decoder_block_forward.1} parent=59 // pred_check
        %p2869 = pneg %p255
      $region62: #{decoder_block_forward.1} parent=59 // pred_check_branch
        %2871 = sbr.rel (%p2869) target = $region64
      $region63: #{decoder_block_forward.1} parent=59 // pred_region
        _
      $region64: #{decoder_block_forward.1} parent=59 // pred_fallthru
        _
    $region60: #{decoder_block_forward.1} parent=5 // pred_fallthru
      _
    %p2872 = scmp.le.s32.totalorder 2, %s17
    // Predicated region
    $region65: #{decoder_block_forward.1} parent=5 // pred_check
      %p2873 = pneg %p2872
    $region66: #{decoder_block_forward.1} parent=5 // pred_check_branch
      %2875 = sbr.rel (%p2873) target = $region68
    $region67: #{decoder_block_forward.1} parent=5 // pred_region
      %s2876 = ssub.s32 %s17, 2
      // Predicated region
      $region69: #{decoder_block_forward.1} parent=67 // pred_check
        %p2877 = pneg %p261
      $region70: #{decoder_block_forward.1} parent=67 // pred_check_branch
        %2879 = sbr.rel (%p2877) target = $region72
      $region71: #{decoder_block_forward.1} parent=67 // pred_region
        %p2880 = scmp.lt.s32.totalorder %s23, 1
        %s2881 = scalar_select %p2880, %s23, 1
        %s2882 = smul.addr %s2881, 2
        %s2883 = smul.addr %s2882, 4
        %s2884 = scalar_lea.vmem %s10, %s2883
      $region72: #{decoder_block_forward.1} parent=67 // pred_fallthru
        _
    $region68: #{decoder_block_forward.1} parent=5 // pred_fallthru
      _
  $region6: #{decoder_block_forward.1} parent=0 // loop_footer
    %s21 = sadd.s32 1, %s17
  $region7: #{decoder_block_forward.1} parent=0 // loop_footer_branch
    %16 = sbr.rel target = $region3
  $region8: #{decoder_block_forward.1} parent=0 // loop_exit
    _

</llo_original>
